<compile_context>
chip_gen: v6e
topology: v6e:2x2x1
jax: 0.10.0
libtpu: 0.0.40
codegen_flags: <defaults>
</compile_context>

<pallas_src>
import numpy as np

import jax
import jax.numpy as jnp
from jax import lax
from jax.experimental import pallas as pl
from jax.experimental.pallas import tpu as pltpu

NEG_BIG = -1e30  # bias value for the padded (fake) fc2 output columns


def _choose_tile_b(batch):
    """Pick the per-grid-step batch tile (multiple of 8).

    Prefer large tiles (MXU occupancy, amortized step overhead) but keep at
    least 2 grid steps when the batch allows so v7x megacore can split work.
    """
    for tb in (64, 32, 16):
        if batch >= 2 * tb:
            return tb
    return 8


# ----------------------------- fused Pallas kernel -----------------------------
#
# In-kernel layouts (per batch tile of TB images):
#   a1 : (TB, 24, 256)  rows=(b, oh)   cols = dw*128 + q*10 + co   (ow = 2q+dw)
#   s2 : (TB, 12, 128)  rows=(b, oh')  cols = q*10 + ci            (lanes >=120 zero)
#   a2 : (TB, 8, 256)   rows=(b, oh2)  cols = dw2*128 + q2*20 + co2 (ow2 = 2q2+dw2)
#   s4 : (TB, 4, 128)   rows=(b, r2)   cols = q2*20 + co2          (lanes >=80 zero)
# All reshapes below only merge/split leading dims with the sublane dim in
# groups that are multiples of 8, so they are layout-preserving (f32 refs).

def _fused_mnist_kernel(x_ref,        # (TB, 28, 28) f32
                        wb1_ref,      # (5, 28, 256)  bf16 banded conv1 weights
                        b1_ref,       # (1, 256) f32
                        wb2_ref,      # (5, 128, 256) bf16 banded conv2 weights
                        b2_ref,       # (1, 256) f32
                        wf1_ref,      # (4, 128, 60)  f32 fc1, split by pooled H row
                        bf1_ref,      # (1, 60) f32
                        wf2_ref,      # (60, 128) f32 (fc2, lane-padded outputs)
                        bf2_ref,      # (1, 128) f32 (pad lanes = NEG_BIG)
                        out_ref,      # (TB, 128) f32
                        a1, s1, s2, a2, s3, s4):
    f32 = jnp.float32
    bf16 = jnp.bfloat16
    TB = x_ref.shape[0]

    # ---------------- conv1 (5x5, 1->10) as 5 banded MXU matmuls ----------------
    # VMEM-scratch accumulation keeps the (TB*24, 256) f32 accumulator out of
    # vregs (no spills, batch-tile-size independent); bias folded into band 0.
    for ki in range(5):
        xs = x_ref[:, ki:ki + 24, :].reshape(TB * 24, 28).astype(bf16)
        band = jnp.dot(xs, wb1_ref[ki], preferred_element_type=f32)
        if ki == 0:
            a1[...] = (band + b1_ref[...]).reshape(TB, 24, 256)
        else:
            a1[...] += band.reshape(TB, 24, 256)

    # 2x2 max-pool + relu (matches F.relu(F.max_pool2d)).  W-pool pairs live in
    # the two 128-lane halves of a1; H-pool pairs are adjacent rows, taken with
    # stride-2 reads of the s1 scratch ref.
    s1[...] = jnp.maximum(a1[:, :, 0:128], a1[:, :, 128:256])          # (TB,24,128)
    p1 = jnp.maximum(s1[:, pl.ds(0, 12, 2), :], s1[:, pl.ds(1, 12, 2), :])
    s2[...] = jnp.maximum(p1, 0.0)                                     # (TB,12,128)

    # TODO(synk): Dropout2d would act on the conv2 output here; eval-mode identity.

    # ---------------- conv2 (5x5, 10->20) as 5 banded MXU matmuls ----------------
    for ki in range(5):
        ps = s2[:, ki:ki + 8, :].reshape(TB * 8, 128).astype(bf16)
        band = jnp.dot(ps, wb2_ref[ki], preferred_element_type=f32)
        if ki == 0:
            a2[...] = (band + b2_ref[...]).reshape(TB, 8, 256)
        else:
            a2[...] += band.reshape(TB, 8, 256)

    s3[...] = jnp.maximum(a2[:, :, 0:128], a2[:, :, 128:256])          # (TB,8,128)
    p2 = jnp.maximum(s3[:, pl.ds(0, 4, 2), :], s3[:, pl.ds(1, 4, 2), :])
    s4[...] = jnp.maximum(p2, 0.0)                                     # (TB,4,128)

    # ---------------- flatten (order baked into wf1) + fc1 + relu ----------------
    h = bf1_ref[...]                                                   # (1, 60) -> broadcast
    for r2 in range(4):
        h = h + jnp.dot(s4[:, r2, :], wf1_ref[r2], preferred_element_type=f32)
    h = jnp.maximum(h, 0.0)                                            # (TB, 60)

    # ---------------- fc2 + log_softmax (lane-dense 128-col output) ----------------
    logits = jnp.dot(h, wf2_ref[...], preferred_element_type=f32) + bf2_ref[...]
    m = jnp.max(logits, axis=-1, keepdims=True)
    e = jnp.exp(logits - m)
    lse = jnp.log(jnp.sum(e, axis=-1, keepdims=True))
    out_ref[...] = (logits - m - lse).astype(out_ref.dtype)


# ------------------------------- parameter prep -------------------------------

def init_params(key):
    ks = jax.random.split(key, 8)
    s = 0.1
    return {
        "conv1_w": s * jax.random.normal(ks[0], (10, 1, 5, 5), jnp.float32),
        "conv1_b": s * jax.random.normal(ks[1], (10,), jnp.float32),
        "conv2_w": s * jax.random.normal(ks[2], (20, 10, 5, 5), jnp.float32),
        "conv2_b": s * jax.random.normal(ks[3], (20,), jnp.float32),
        "fc1_w":  s * jax.random.normal(ks[4], (60, 320), jnp.float32),
        "fc1_b":  s * jax.random.normal(ks[5], (60,), jnp.float32),
        "fc2_w":  s * jax.random.normal(ks[6], (10, 60), jnp.float32),
        "fc2_b":  s * jax.random.normal(ks[7], (10,), jnp.float32),
    }


def prepare_params(params):
    """One-time host-side weight preprocessing (banded conv matrices, FC perms)."""
    w1 = np.asarray(params["conv1_w"], np.float32)    # (10, 1, 5, 5)
    b1 = np.asarray(params["conv1_b"], np.float32)    # (10,)
    w2 = np.asarray(params["conv2_w"], np.float32)    # (20, 10, 5, 5)
    b2 = np.asarray(params["conv2_b"], np.float32)    # (20,)
    fw1 = np.asarray(params["fc1_w"], np.float32)     # (60, 320)
    fb1 = np.asarray(params["fc1_b"], np.float32)
    fw2 = np.asarray(params["fc2_w"], np.float32)     # (10, 60)
    fb2 = np.asarray(params["fc2_b"], np.float32)

    # conv1 banded matrices: wb1[ki, w_in, dw*128 + q*10 + co] = w1[co,0,ki, w_in-(2q+dw)]
    wb1 = np.zeros((5, 28, 256), np.float32)
    b1c = np.zeros((1, 256), np.float32)
    for dw in range(2):
        for q in range(12):
            ow = 2 * q + dw
            col0 = dw * 128 + q * 10
            b1c[0, col0:col0 + 10] = b1
            for kj in range(5):
                wb1[:, ow + kj, col0:col0 + 10] = w1[:, 0, :, kj].T   # (5 ki, 10 co)

    # conv2 banded matrices: in-col = s*10+ci, out-col = dw2*128 + q2*20 + co2
    wb2 = np.zeros((5, 128, 256), np.float32)
    b2c = np.zeros((1, 256), np.float32)
    for dw2 in range(2):
        for q2 in range(4):
            ow2 = 2 * q2 + dw2
            col0 = dw2 * 128 + q2 * 20
            b2c[0, col0:col0 + 20] = b2
            for kj in range(5):
                s_in = ow2 + kj
                for ci in range(10):
                    wb2[:, s_in * 10 + ci, col0:col0 + 20] = w2[:, ci, :, kj].T  # (5 ki, 20 co2)

    # fc1: kernel flat order is (r2, q2*20+co2); torch flat index = co2*16 + r2*4 + q2
    wf1 = np.zeros((4, 128, 60), np.float32)
    for r2 in range(4):
        for q2 in range(4):
            for co in range(20):
                wf1[r2, q2 * 20 + co, :] = fw1[:, co * 16 + r2 * 4 + q2]

    # fc2: pre-transposed and lane-padded to 128 output columns.  Pad biases to a
    # huge negative so the in-kernel log_softmax over 128 lanes ignores them.
    wf2p = np.zeros((60, 128), np.float32)
    wf2p[:, :10] = fw2.T
    bf2p = np.full((1, 128), NEG_BIG, np.float32)
    bf2p[0, :10] = fb2

    return {
        "wb1": jnp.asarray(wb1, jnp.bfloat16), "b1c": jnp.asarray(b1c),
        "wb2": jnp.asarray(wb2, jnp.bfloat16), "b2c": jnp.asarray(b2c),
        "wf1": jnp.asarray(wf1), "fb1": jnp.asarray(fb1.reshape(1, 60)),
        "wf2": jnp.asarray(wf2p), "fb2": jnp.asarray(bf2p),
    }


# --------------------------------- forward ---------------------------------

def network_forward(prepared, x_nchw):
    """Forward pass of `Network`.  x_nchw: (B, 1, 28, 28) float32."""
    B = x_nchw.shape[0]
    x = x_nchw.reshape(B, 28, 28).astype(jnp.float32)     # Cin == 1
    tile_b = _choose_tile_b(B)
    Bp = ((B + tile_b - 1) // tile_b) * tile_b
    if Bp != B:
        x = jnp.pad(x, ((0, Bp - B), (0, 0), (0, 0)))

    out = pl.pallas_call(
        _fused_mnist_kernel,
        out_shape=jax.ShapeDtypeStruct((Bp, 128), jnp.float32),
        grid_spec=pltpu.PrefetchScalarGridSpec(
            num_scalar_prefetch=0,
            grid=(Bp // tile_b,),
            in_specs=[
                pl.BlockSpec((tile_b, 28, 28), lambda g: (g, 0, 0)),   # x (tiled over batch)
                pl.BlockSpec((5, 28, 256), lambda g: (0, 0, 0)),       # wb1 (resident)
                pl.BlockSpec((1, 256), lambda g: (0, 0)),              # b1c
                pl.BlockSpec((5, 128, 256), lambda g: (0, 0, 0)),      # wb2
                pl.BlockSpec((1, 256), lambda g: (0, 0)),              # b2c
                pl.BlockSpec((4, 128, 60), lambda g: (0, 0, 0)),       # wf1
                pl.BlockSpec((1, 60), lambda g: (0, 0)),               # bf1
                pl.BlockSpec((60, 128), lambda g: (0, 0)),             # wf2 (padded)
                pl.BlockSpec((1, 128), lambda g: (0, 0)),              # bf2 (padded)
            ],
            out_specs=pl.BlockSpec((tile_b, 128), lambda g: (g, 0)),
            scratch_shapes=[
                pltpu.VMEM((tile_b, 24, 256), jnp.float32),  # a1: conv1 accumulator
                pltpu.VMEM((tile_b, 24, 128), jnp.float32),  # s1: conv1 W-pooled, pre H-pool
                pltpu.VMEM((tile_b, 12, 128), jnp.float32),  # s2: p1 (pool+relu)
                pltpu.VMEM((tile_b, 8, 256), jnp.float32),   # a2: conv2 accumulator
                pltpu.VMEM((tile_b, 8, 128), jnp.float32),   # s3: conv2 W-pooled, pre H-pool
                pltpu.VMEM((tile_b, 4, 128), jnp.float32),   # s4: p2 (pool+relu)
            ],
        ),
        compiler_params=pltpu.CompilerParams(
            dimension_semantics=("parallel",)),
    )(x, prepared["wb1"], prepared["b1c"], prepared["wb2"], prepared["b2c"],
      prepared["wf1"], prepared["fb1"], prepared["wf2"], prepared["fb2"])

    return out[:B, :10]


# ------------------------- pure-JAX reference (for checking) -------------------------

def reference_forward(params, x_nchw):
    dn = ("NCHW", "OIHW", "NCHW")
    hi = jax.lax.Precision.HIGHEST
    c1 = lax.conv_general_dilated(x_nchw, params["conv1_w"], (1, 1), "VALID",
                                  dimension_numbers=dn, precision=hi)
    c1 = c1 + params["conv1_b"][None, :, None, None]
    p1 = lax.reduce_window(c1, -jnp.inf, lax.max, (1, 1, 2, 2), (1, 1, 2, 2), "VALID")
    p1 = jnp.maximum(p1, 0.0)
    c2 = lax.conv_general_dilated(p1, params["conv2_w"], (1, 1), "VALID",
                                  dimension_numbers=dn, precision=hi)
    c2 = c2 + params["conv2_b"][None, :, None, None]
    p2 = lax.reduce_window(c2, -jnp.inf, lax.max, (1, 1, 2, 2), (1, 1, 2, 2), "VALID")
    p2 = jnp.maximum(p2, 0.0)
    flat = p2.reshape(p2.shape[0], 320)
    h = jnp.maximum(jnp.dot(flat, params["fc1_w"].T, precision=hi) + params["fc1_b"], 0.0)
    logits = jnp.dot(h, params["fc2_w"].T, precision=hi) + params["fc2_b"]
    return jax.nn.log_softmax(logits, axis=-1)


if __name__ == "__main__":
    key = jax.random.PRNGKey(0)
    k_param, k_input = jax.random.split(key)

    params = init_params(k_param)
    prepared = prepare_params(params)           # one-time weight preprocessing
    x = jax.random.normal(k_input, (2, 1, 28, 28), jnp.float32)

    fwd = jax.jit(network_forward)
    out = jax.block_until_ready(fwd(prepared, x))

    assert out.shape == (2, 10), out.shape
    assert bool(jnp.all(jnp.isfinite(out)))
    row_sums = jnp.sum(jnp.exp(out), axis=-1)
    assert bool(jnp.all(jnp.abs(row_sums - 1.0) < 1e-4)), row_sums

    ref = reference_forward(params, x)
    max_diff = float(jnp.max(jnp.abs(out - ref)))
    # Tolerance relaxed vs the pure-f32 version: conv weights/LHS are bf16 now.
    assert max_diff < 5e-2, ("kernel vs reference mismatch", max_diff)

    print("KERNEL_OK")
</pallas_src>

<mosaic_0001>
module attributes {stable_mosaic.version = 11 : i64} {
  func.func @_fused_mnist_kernel(%arg0: i32, %arg1: memref<8x28x28xf32, #tpu.memory_space<vmem>>, %arg2: memref<5x28x256xbf16, #tpu.memory_space<vmem>>, %arg3: memref<1x256xf32, #tpu.memory_space<vmem>>, %arg4: memref<5x128x256xbf16, #tpu.memory_space<vmem>>, %arg5: memref<1x256xf32, #tpu.memory_space<vmem>>, %arg6: memref<4x128x60xf32, #tpu.memory_space<vmem>>, %arg7: memref<1x60xf32, #tpu.memory_space<vmem>>, %arg8: memref<60x128xf32, #tpu.memory_space<vmem>>, %arg9: memref<1x128xf32, #tpu.memory_space<vmem>>, %arg10: memref<8x128xf32, #tpu.memory_space<vmem>>, %arg11: memref<8x24x256xf32, #tpu.memory_space<vmem>>, %arg12: memref<8x24x128xf32, #tpu.memory_space<vmem>>, %arg13: memref<8x12x128xf32, #tpu.memory_space<vmem>>, %arg14: memref<8x8x256xf32, #tpu.memory_space<vmem>>, %arg15: memref<8x8x128xf32, #tpu.memory_space<vmem>>, %arg16: memref<8x4x128xf32, #tpu.memory_space<vmem>>) attributes {dimension_semantics = [#tpu.dimension_semantics<parallel>], iteration_bounds = array<i64: 1>, scalar_prefetch = 0 : i64, scratch_operands = 6 : i64, tpu.core_type = #tpu.core_type<tc>, window_params = [{transform_indices = @transform_0, window_bounds = array<i64: 8, 28, 28>}, {pipeline_mode = #tpu.pipeline_mode<synchronous>, transform_indices = @transform_1, window_bounds = array<i64: 5, 28, 256>}, {pipeline_mode = #tpu.pipeline_mode<synchronous>, transform_indices = @transform_2, window_bounds = array<i64: 1, 256>}, {pipeline_mode = #tpu.pipeline_mode<synchronous>, transform_indices = @transform_3, window_bounds = array<i64: 5, 128, 256>}, {pipeline_mode = #tpu.pipeline_mode<synchronous>, transform_indices = @transform_4, window_bounds = array<i64: 1, 256>}, {pipeline_mode = #tpu.pipeline_mode<synchronous>, transform_indices = @transform_5, window_bounds = array<i64: 4, 128, 60>}, {pipeline_mode = #tpu.pipeline_mode<synchronous>, transform_indices = @transform_6, window_bounds = array<i64: 1, 60>}, {pipeline_mode = #tpu.pipeline_mode<synchronous>, transform_indices = @transform_7, window_bounds = array<i64: 60, 128>}, {pipeline_mode = #tpu.pipeline_mode<synchronous>, transform_indices = @transform_8, window_bounds = array<i64: 1, 128>}, {transform_indices = @transform_9, window_bounds = array<i64: 8, 128>}]} {
    %c0 = arith.constant 0 : index
    %c0_0 = arith.constant 0 : index
    %c0_1 = arith.constant 0 : index
    %0 = vector.load %arg1[%c0, %c0_0, %c0_1] : memref<8x28x28xf32, #tpu.memory_space<vmem>>, vector<8x24x28xf32>
    %1 = vector.shape_cast %0 : vector<8x24x28xf32> to vector<192x28xf32>
    %2 = arith.truncf %1 : vector<192x28xf32> to vector<192x28xbf16>
    %c0_2 = arith.constant 0 : index
    %c0_3 = arith.constant 0 : index
    %c0_4 = arith.constant 0 : index
    %3 = vector.load %arg2[%c0_2, %c0_3, %c0_4] : memref<5x28x256xbf16, #tpu.memory_space<vmem>>, vector<1x28x256xbf16>
    %4 = vector.shape_cast %3 : vector<1x28x256xbf16> to vector<28x256xbf16>
    %cst = arith.constant dense<0.000000e+00> : vector<192x256xf32>
    %5 = tpu.matmul %2, %4, %cst {dimension_numbers = #tpu.dot_dimension_numbers<[1], [0], [0], [1], [0, 0, 1, 1], [], []>} : vector<192x28xbf16>, vector<28x256xbf16>, vector<192x256xf32> -> vector<192x256xf32>
    %c0_5 = arith.constant 0 : index
    %c0_6 = arith.constant 0 : index
    %6 = vector.load %arg3[%c0_5, %c0_6] : memref<1x256xf32, #tpu.memory_space<vmem>>, vector<1x256xf32>
    %7 = vector.broadcast %6 : vector<1x256xf32> to vector<192x256xf32>
    %8 = arith.addf %5, %7 : vector<192x256xf32>
    %9 = vector.shape_cast %8 : vector<192x256xf32> to vector<8x24x256xf32>
    %c0_7 = arith.constant 0 : index
    %c0_8 = arith.constant 0 : index
    %c0_9 = arith.constant 0 : index
    %10 = vector.load %arg11[%c0_7, %c0_8, %c0_9] : memref<8x24x256xf32, #tpu.memory_space<vmem>>, vector<8x24x256xf32>
    tpu.vector_store %arg11[%c0_7, %c0_8, %c0_9], %9 {strides = array<i32>} : memref<8x24x256xf32, #tpu.memory_space<vmem>>, vector<8x24x256xf32>,
    %c0_10 = arith.constant 0 : index
    %c1 = arith.constant 1 : index
    %c0_11 = arith.constant 0 : index
    %11 = vector.load %arg1[%c0_10, %c1, %c0_11] : memref<8x28x28xf32, #tpu.memory_space<vmem>>, vector<8x24x28xf32>
    %12 = vector.shape_cast %11 : vector<8x24x28xf32> to vector<192x28xf32>
    %13 = arith.truncf %12 : vector<192x28xf32> to vector<192x28xbf16>
    %c1_12 = arith.constant 1 : index
    %c0_13 = arith.constant 0 : index
    %c0_14 = arith.constant 0 : index
    %14 = vector.load %arg2[%c1_12, %c0_13, %c0_14] : memref<5x28x256xbf16, #tpu.memory_space<vmem>>, vector<1x28x256xbf16>
    %15 = vector.shape_cast %14 : vector<1x28x256xbf16> to vector<28x256xbf16>
    %cst_15 = arith.constant dense<0.000000e+00> : vector<192x256xf32>
    %16 = tpu.matmul %13, %15, %cst_15 {dimension_numbers = #tpu.dot_dimension_numbers<[1], [0], [0], [1], [0, 0, 1, 1], [], []>} : vector<192x28xbf16>, vector<28x256xbf16>, vector<192x256xf32> -> vector<192x256xf32>
    %c0_16 = arith.constant 0 : index
    %c0_17 = arith.constant 0 : index
    %c0_18 = arith.constant 0 : index
    %17 = vector.load %arg11[%c0_16, %c0_17, %c0_18] : memref<8x24x256xf32, #tpu.memory_space<vmem>>, vector<8x24x256xf32>
    %18 = vector.shape_cast %16 : vector<192x256xf32> to vector<8x24x256xf32>
    %19 = arith.addf %17, %18 : vector<8x24x256xf32>
    %c0_19 = arith.constant 0 : index
    %c0_20 = arith.constant 0 : index
    %c0_21 = arith.constant 0 : index
    %20 = vector.load %arg11[%c0_19, %c0_20, %c0_21] : memref<8x24x256xf32, #tpu.memory_space<vmem>>, vector<8x24x256xf32>
    tpu.vector_store %arg11[%c0_19, %c0_20, %c0_21], %19 {strides = array<i32>} : memref<8x24x256xf32, #tpu.memory_space<vmem>>, vector<8x24x256xf32>,
    %c0_22 = arith.constant 0 : index
    %c2 = arith.constant 2 : index
    %c0_23 = arith.constant 0 : index
    %21 = vector.load %arg1[%c0_22, %c2, %c0_23] : memref<8x28x28xf32, #tpu.memory_space<vmem>>, vector<8x24x28xf32>
    %22 = vector.shape_cast %21 : vector<8x24x28xf32> to vector<192x28xf32>
    %23 = arith.truncf %22 : vector<192x28xf32> to vector<192x28xbf16>
    %c2_24 = arith.constant 2 : index
    %c0_25 = arith.constant 0 : index
    %c0_26 = arith.constant 0 : index
    %24 = vector.load %arg2[%c2_24, %c0_25, %c0_26] : memref<5x28x256xbf16, #tpu.memory_space<vmem>>, vector<1x28x256xbf16>
    %25 = vector.shape_cast %24 : vector<1x28x256xbf16> to vector<28x256xbf16>
    %cst_27 = arith.constant dense<0.000000e+00> : vector<192x256xf32>
    %26 = tpu.matmul %23, %25, %cst_27 {dimension_numbers = #tpu.dot_dimension_numbers<[1], [0], [0], [1], [0, 0, 1, 1], [], []>} : vector<192x28xbf16>, vector<28x256xbf16>, vector<192x256xf32> -> vector<192x256xf32>
    %c0_28 = arith.constant 0 : index
    %c0_29 = arith.constant 0 : index
    %c0_30 = arith.constant 0 : index
    %27 = vector.load %arg11[%c0_28, %c0_29, %c0_30] : memref<8x24x256xf32, #tpu.memory_space<vmem>>, vector<8x24x256xf32>
    %28 = vector.shape_cast %26 : vector<192x256xf32> to vector<8x24x256xf32>
    %29 = arith.addf %27, %28 : vector<8x24x256xf32>
    %c0_31 = arith.constant 0 : index
    %c0_32 = arith.constant 0 : index
    %c0_33 = arith.constant 0 : index
    %30 = vector.load %arg11[%c0_31, %c0_32, %c0_33] : memref<8x24x256xf32, #tpu.memory_space<vmem>>, vector<8x24x256xf32>
    tpu.vector_store %arg11[%c0_31, %c0_32, %c0_33], %29 {strides = array<i32>} : memref<8x24x256xf32, #tpu.memory_space<vmem>>, vector<8x24x256xf32>,
    %c0_34 = arith.constant 0 : index
    %c3 = arith.constant 3 : index
    %c0_35 = arith.constant 0 : index
    %31 = vector.load %arg1[%c0_34, %c3, %c0_35] : memref<8x28x28xf32, #tpu.memory_space<vmem>>, vector<8x24x28xf32>
    %32 = vector.shape_cast %31 : vector<8x24x28xf32> to vector<192x28xf32>
    %33 = arith.truncf %32 : vector<192x28xf32> to vector<192x28xbf16>
    %c3_36 = arith.constant 3 : index
    %c0_37 = arith.constant 0 : index
    %c0_38 = arith.constant 0 : index
    %34 = vector.load %arg2[%c3_36, %c0_37, %c0_38] : memref<5x28x256xbf16, #tpu.memory_space<vmem>>, vector<1x28x256xbf16>
    %35 = vector.shape_cast %34 : vector<1x28x256xbf16> to vector<28x256xbf16>
    %cst_39 = arith.constant dense<0.000000e+00> : vector<192x256xf32>
    %36 = tpu.matmul %33, %35, %cst_39 {dimension_numbers = #tpu.dot_dimension_numbers<[1], [0], [0], [1], [0, 0, 1, 1], [], []>} : vector<192x28xbf16>, vector<28x256xbf16>, vector<192x256xf32> -> vector<192x256xf32>
    %c0_40 = arith.constant 0 : index
    %c0_41 = arith.constant 0 : index
    %c0_42 = arith.constant 0 : index
    %37 = vector.load %arg11[%c0_40, %c0_41, %c0_42] : memref<8x24x256xf32, #tpu.memory_space<vmem>>, vector<8x24x256xf32>
    %38 = vector.shape_cast %36 : vector<192x256xf32> to vector<8x24x256xf32>
    %39 = arith.addf %37, %38 : vector<8x24x256xf32>
    %c0_43 = arith.constant 0 : index
    %c0_44 = arith.constant 0 : index
    %c0_45 = arith.constant 0 : index
    %40 = vector.load %arg11[%c0_43, %c0_44, %c0_45] : memref<8x24x256xf32, #tpu.memory_space<vmem>>, vector<8x24x256xf32>
    tpu.vector_store %arg11[%c0_43, %c0_44, %c0_45], %39 {strides = array<i32>} : memref<8x24x256xf32, #tpu.memory_space<vmem>>, vector<8x24x256xf32>,
    %c0_46 = arith.constant 0 : index
    %c4 = arith.constant 4 : index
    %c0_47 = arith.constant 0 : index
    %41 = vector.load %arg1[%c0_46, %c4, %c0_47] : memref<8x28x28xf32, #tpu.memory_space<vmem>>, vector<8x24x28xf32>
    %42 = vector.shape_cast %41 : vector<8x24x28xf32> to vector<192x28xf32>
    %43 = arith.truncf %42 : vector<192x28xf32> to vector<192x28xbf16>
    %c4_48 = arith.constant 4 : index
    %c0_49 = arith.constant 0 : index
    %c0_50 = arith.constant 0 : index
    %44 = vector.load %arg2[%c4_48, %c0_49, %c0_50] : memref<5x28x256xbf16, #tpu.memory_space<vmem>>, vector<1x28x256xbf16>
    %45 = vector.shape_cast %44 : vector<1x28x256xbf16> to vector<28x256xbf16>
    %cst_51 = arith.constant dense<0.000000e+00> : vector<192x256xf32>
    %46 = tpu.matmul %43, %45, %cst_51 {dimension_numbers = #tpu.dot_dimension_numbers<[1], [0], [0], [1], [0, 0, 1, 1], [], []>} : vector<192x28xbf16>, vector<28x256xbf16>, vector<192x256xf32> -> vector<192x256xf32>
    %c0_52 = arith.constant 0 : index
    %c0_53 = arith.constant 0 : index
    %c0_54 = arith.constant 0 : index
    %47 = vector.load %arg11[%c0_52, %c0_53, %c0_54] : memref<8x24x256xf32, #tpu.memory_space<vmem>>, vector<8x24x256xf32>
    %48 = vector.shape_cast %46 : vector<192x256xf32> to vector<8x24x256xf32>
    %49 = arith.addf %47, %48 : vector<8x24x256xf32>
    %c0_55 = arith.constant 0 : index
    %c0_56 = arith.constant 0 : index
    %c0_57 = arith.constant 0 : index
    %50 = vector.load %arg11[%c0_55, %c0_56, %c0_57] : memref<8x24x256xf32, #tpu.memory_space<vmem>>, vector<8x24x256xf32>
    tpu.vector_store %arg11[%c0_55, %c0_56, %c0_57], %49 {strides = array<i32>} : memref<8x24x256xf32, #tpu.memory_space<vmem>>, vector<8x24x256xf32>,
    %c0_58 = arith.constant 0 : index
    %c0_59 = arith.constant 0 : index
    %c0_60 = arith.constant 0 : index
    %51 = vector.load %arg11[%c0_58, %c0_59, %c0_60] : memref<8x24x256xf32, #tpu.memory_space<vmem>>, vector<8x24x128xf32>
    %c0_61 = arith.constant 0 : index
    %c0_62 = arith.constant 0 : index
    %c128 = arith.constant 128 : index
    %52 = vector.load %arg11[%c0_61, %c0_62, %c128] : memref<8x24x256xf32, #tpu.memory_space<vmem>>, vector<8x24x128xf32>
    %53 = arith.maximumf %51, %52 : vector<8x24x128xf32>
    %c0_63 = arith.constant 0 : index
    %c0_64 = arith.constant 0 : index
    %c0_65 = arith.constant 0 : index
    %54 = vector.load %arg12[%c0_63, %c0_64, %c0_65] : memref<8x24x128xf32, #tpu.memory_space<vmem>>, vector<8x24x128xf32>
    tpu.vector_store %arg12[%c0_63, %c0_64, %c0_65], %53 {strides = array<i32>} : memref<8x24x128xf32, #tpu.memory_space<vmem>>, vector<8x24x128xf32>,
    %c0_66 = arith.constant 0 : index
    %c0_67 = arith.constant 0 : index
    %c0_68 = arith.constant 0 : index
    %55 = tpu.strided_load %arg12[%c0_66, %c0_67, %c0_68] {strides = array<i32: 1, 2, 1>} : memref<8x24x128xf32, #tpu.memory_space<vmem>>, vector<8x12x128xf32>
    %c0_69 = arith.constant 0 : index
    %c1_70 = arith.constant 1 : index
    %c0_71 = arith.constant 0 : index
    %56 = tpu.strided_load %arg12[%c0_69, %c1_70, %c0_71] {strides = array<i32: 1, 2, 1>} : memref<8x24x128xf32, #tpu.memory_space<vmem>>, vector<8x12x128xf32>
    %57 = arith.maximumf %55, %56 : vector<8x12x128xf32>
    %cst_72 = arith.constant 0.000000e+00 : f32
    %58 = vector.broadcast %cst_72 : f32 to vector<8x12x128xf32>
    %59 = arith.maximumf %57, %58 : vector<8x12x128xf32>
    %c0_73 = arith.constant 0 : index
    %c0_74 = arith.constant 0 : index
    %c0_75 = arith.constant 0 : index
    %60 = vector.load %arg13[%c0_73, %c0_74, %c0_75] : memref<8x12x128xf32, #tpu.memory_space<vmem>>, vector<8x12x128xf32>
    tpu.vector_store %arg13[%c0_73, %c0_74, %c0_75], %59 {strides = array<i32>} : memref<8x12x128xf32, #tpu.memory_space<vmem>>, vector<8x12x128xf32>,
    %c0_76 = arith.constant 0 : index
    %c0_77 = arith.constant 0 : index
    %c0_78 = arith.constant 0 : index
    %61 = vector.load %arg13[%c0_76, %c0_77, %c0_78] : memref<8x12x128xf32, #tpu.memory_space<vmem>>, vector<8x8x128xf32>
    %62 = vector.shape_cast %61 : vector<8x8x128xf32> to vector<64x128xf32>
    %63 = arith.truncf %62 : vector<64x128xf32> to vector<64x128xbf16>
    %c0_79 = arith.constant 0 : index
    %c0_80 = arith.constant 0 : index
    %c0_81 = arith.constant 0 : index
    %64 = vector.load %arg4[%c0_79, %c0_80, %c0_81] : memref<5x128x256xbf16, #tpu.memory_space<vmem>>, vector<1x128x256xbf16>
    %65 = vector.shape_cast %64 : vector<1x128x256xbf16> to vector<128x256xbf16>
    %cst_82 = arith.constant dense<0.000000e+00> : vector<64x256xf32>
    %66 = tpu.matmul %63, %65, %cst_82 {dimension_numbers = #tpu.dot_dimension_numbers<[1], [0], [0], [1], [0, 0, 1, 1], [], []>} : vector<64x128xbf16>, vector<128x256xbf16>, vector<64x256xf32> -> vector<64x256xf32>
    %c0_83 = arith.constant 0 : index
    %c0_84 = arith.constant 0 : index
    %67 = vector.load %arg5[%c0_83, %c0_84] : memref<1x256xf32, #tpu.memory_space<vmem>>, vector<1x256xf32>
    %68 = vector.broadcast %67 : vector<1x256xf32> to vector<64x256xf32>
    %69 = arith.addf %66, %68 : vector<64x256xf32>
    %70 = vector.shape_cast %69 : vector<64x256xf32> to vector<8x8x256xf32>
    %c0_85 = arith.constant 0 : index
    %c0_86 = arith.constant 0 : index
    %c0_87 = arith.constant 0 : index
    %71 = vector.load %arg14[%c0_85, %c0_86, %c0_87] : memref<8x8x256xf32, #tpu.memory_space<vmem>>, vector<8x8x256xf32>
    tpu.vector_store %arg14[%c0_85, %c0_86, %c0_87], %70 {strides = array<i32>} : memref<8x8x256xf32, #tpu.memory_space<vmem>>, vector<8x8x256xf32>,
    %c0_88 = arith.constant 0 : index
    %c1_89 = arith.constant 1 : index
    %c0_90 = arith.constant 0 : index
    %72 = vector.load %arg13[%c0_88, %c1_89, %c0_90] : memref<8x12x128xf32, #tpu.memory_space<vmem>>, vector<8x8x128xf32>
    %73 = vector.shape_cast %72 : vector<8x8x128xf32> to vector<64x128xf32>
    %74 = arith.truncf %73 : vector<64x128xf32> to vector<64x128xbf16>
    %c1_91 = arith.constant 1 : index
    %c0_92 = arith.constant 0 : index
    %c0_93 = arith.constant 0 : index
    %75 = vector.load %arg4[%c1_91, %c0_92, %c0_93] : memref<5x128x256xbf16, #tpu.memory_space<vmem>>, vector<1x128x256xbf16>
    %76 = vector.shape_cast %75 : vector<1x128x256xbf16> to vector<128x256xbf16>
    %cst_94 = arith.constant dense<0.000000e+00> : vector<64x256xf32>
    %77 = tpu.matmul %74, %76, %cst_94 {dimension_numbers = #tpu.dot_dimension_numbers<[1], [0], [0], [1], [0, 0, 1, 1], [], []>} : vector<64x128xbf16>, vector<128x256xbf16>, vector<64x256xf32> -> vector<64x256xf32>
    %c0_95 = arith.constant 0 : index
    %c0_96 = arith.constant 0 : index
    %c0_97 = arith.constant 0 : index
    %78 = vector.load %arg14[%c0_95, %c0_96, %c0_97] : memref<8x8x256xf32, #tpu.memory_space<vmem>>, vector<8x8x256xf32>
    %79 = vector.shape_cast %77 : vector<64x256xf32> to vector<8x8x256xf32>
    %80 = arith.addf %78, %79 : vector<8x8x256xf32>
    %c0_98 = arith.constant 0 : index
    %c0_99 = arith.constant 0 : index
    %c0_100 = arith.constant 0 : index
    %81 = vector.load %arg14[%c0_98, %c0_99, %c0_100] : memref<8x8x256xf32, #tpu.memory_space<vmem>>, vector<8x8x256xf32>
    tpu.vector_store %arg14[%c0_98, %c0_99, %c0_100], %80 {strides = array<i32>} : memref<8x8x256xf32, #tpu.memory_space<vmem>>, vector<8x8x256xf32>,
    %c0_101 = arith.constant 0 : index
    %c2_102 = arith.constant 2 : index
    %c0_103 = arith.constant 0 : index
    %82 = vector.load %arg13[%c0_101, %c2_102, %c0_103] : memref<8x12x128xf32, #tpu.memory_space<vmem>>, vector<8x8x128xf32>
    %83 = vector.shape_cast %82 : vector<8x8x128xf32> to vector<64x128xf32>
    %84 = arith.truncf %83 : vector<64x128xf32> to vector<64x128xbf16>
    %c2_104 = arith.constant 2 : index
    %c0_105 = arith.constant 0 : index
    %c0_106 = arith.constant 0 : index
    %85 = vector.load %arg4[%c2_104, %c0_105, %c0_106] : memref<5x128x256xbf16, #tpu.memory_space<vmem>>, vector<1x128x256xbf16>
    %86 = vector.shape_cast %85 : vector<1x128x256xbf16> to vector<128x256xbf16>
    %cst_107 = arith.constant dense<0.000000e+00> : vector<64x256xf32>
    %87 = tpu.matmul %84, %86, %cst_107 {dimension_numbers = #tpu.dot_dimension_numbers<[1], [0], [0], [1], [0, 0, 1, 1], [], []>} : vector<64x128xbf16>, vector<128x256xbf16>, vector<64x256xf32> -> vector<64x256xf32>
    %c0_108 = arith.constant 0 : index
    %c0_109 = arith.constant 0 : index
    %c0_110 = arith.constant 0 : index
    %88 = vector.load %arg14[%c0_108, %c0_109, %c0_110] : memref<8x8x256xf32, #tpu.memory_space<vmem>>, vector<8x8x256xf32>
    %89 = vector.shape_cast %87 : vector<64x256xf32> to vector<8x8x256xf32>
    %90 = arith.addf %88, %89 : vector<8x8x256xf32>
    %c0_111 = arith.constant 0 : index
    %c0_112 = arith.constant 0 : index
    %c0_113 = arith.constant 0 : index
    %91 = vector.load %arg14[%c0_111, %c0_112, %c0_113] : memref<8x8x256xf32, #tpu.memory_space<vmem>>, vector<8x8x256xf32>
    tpu.vector_store %arg14[%c0_111, %c0_112, %c0_113], %90 {strides = array<i32>} : memref<8x8x256xf32, #tpu.memory_space<vmem>>, vector<8x8x256xf32>,
    %c0_114 = arith.constant 0 : index
    %c3_115 = arith.constant 3 : index
    %c0_116 = arith.constant 0 : index
    %92 = vector.load %arg13[%c0_114, %c3_115, %c0_116] : memref<8x12x128xf32, #tpu.memory_space<vmem>>, vector<8x8x128xf32>
    %93 = vector.shape_cast %92 : vector<8x8x128xf32> to vector<64x128xf32>
    %94 = arith.truncf %93 : vector<64x128xf32> to vector<64x128xbf16>
    %c3_117 = arith.constant 3 : index
    %c0_118 = arith.constant 0 : index
    %c0_119 = arith.constant 0 : index
    %95 = vector.load %arg4[%c3_117, %c0_118, %c0_119] : memref<5x128x256xbf16, #tpu.memory_space<vmem>>, vector<1x128x256xbf16>
    %96 = vector.shape_cast %95 : vector<1x128x256xbf16> to vector<128x256xbf16>
    %cst_120 = arith.constant dense<0.000000e+00> : vector<64x256xf32>
    %97 = tpu.matmul %94, %96, %cst_120 {dimension_numbers = #tpu.dot_dimension_numbers<[1], [0], [0], [1], [0, 0, 1, 1], [], []>} : vector<64x128xbf16>, vector<128x256xbf16>, vector<64x256xf32> -> vector<64x256xf32>
    %c0_121 = arith.constant 0 : index
    %c0_122 = arith.constant 0 : index
    %c0_123 = arith.constant 0 : index
    %98 = vector.load %arg14[%c0_121, %c0_122, %c0_123] : memref<8x8x256xf32, #tpu.memory_space<vmem>>, vector<8x8x256xf32>
    %99 = vector.shape_cast %97 : vector<64x256xf32> to vector<8x8x256xf32>
    %100 = arith.addf %98, %99 : vector<8x8x256xf32>
    %c0_124 = arith.constant 0 : index
    %c0_125 = arith.constant 0 : index
    %c0_126 = arith.constant 0 : index
    %101 = vector.load %arg14[%c0_124, %c0_125, %c0_126] : memref<8x8x256xf32, #tpu.memory_space<vmem>>, vector<8x8x256xf32>
    tpu.vector_store %arg14[%c0_124, %c0_125, %c0_126], %100 {strides = array<i32>} : memref<8x8x256xf32, #tpu.memory_space<vmem>>, vector<8x8x256xf32>,
    %c0_127 = arith.constant 0 : index
    %c4_128 = arith.constant 4 : index
    %c0_129 = arith.constant 0 : index
    %102 = vector.load %arg13[%c0_127, %c4_128, %c0_129] : memref<8x12x128xf32, #tpu.memory_space<vmem>>, vector<8x8x128xf32>
    %103 = vector.shape_cast %102 : vector<8x8x128xf32> to vector<64x128xf32>
    %104 = arith.truncf %103 : vector<64x128xf32> to vector<64x128xbf16>
    %c4_130 = arith.constant 4 : index
    %c0_131 = arith.constant 0 : index
    %c0_132 = arith.constant 0 : index
    %105 = vector.load %arg4[%c4_130, %c0_131, %c0_132] : memref<5x128x256xbf16, #tpu.memory_space<vmem>>, vector<1x128x256xbf16>
    %106 = vector.shape_cast %105 : vector<1x128x256xbf16> to vector<128x256xbf16>
    %cst_133 = arith.constant dense<0.000000e+00> : vector<64x256xf32>
    %107 = tpu.matmul %104, %106, %cst_133 {dimension_numbers = #tpu.dot_dimension_numbers<[1], [0], [0], [1], [0, 0, 1, 1], [], []>} : vector<64x128xbf16>, vector<128x256xbf16>, vector<64x256xf32> -> vector<64x256xf32>
    %c0_134 = arith.constant 0 : index
    %c0_135 = arith.constant 0 : index
    %c0_136 = arith.constant 0 : index
    %108 = vector.load %arg14[%c0_134, %c0_135, %c0_136] : memref<8x8x256xf32, #tpu.memory_space<vmem>>, vector<8x8x256xf32>
    %109 = vector.shape_cast %107 : vector<64x256xf32> to vector<8x8x256xf32>
    %110 = arith.addf %108, %109 : vector<8x8x256xf32>
    %c0_137 = arith.constant 0 : index
    %c0_138 = arith.constant 0 : index
    %c0_139 = arith.constant 0 : index
    %111 = vector.load %arg14[%c0_137, %c0_138, %c0_139] : memref<8x8x256xf32, #tpu.memory_space<vmem>>, vector<8x8x256xf32>
    tpu.vector_store %arg14[%c0_137, %c0_138, %c0_139], %110 {strides = array<i32>} : memref<8x8x256xf32, #tpu.memory_space<vmem>>, vector<8x8x256xf32>,
    %c0_140 = arith.constant 0 : index
    %c0_141 = arith.constant 0 : index
    %c0_142 = arith.constant 0 : index
    %112 = vector.load %arg14[%c0_140, %c0_141, %c0_142] : memref<8x8x256xf32, #tpu.memory_space<vmem>>, vector<8x8x128xf32>
    %c0_143 = arith.constant 0 : index
    %c0_144 = arith.constant 0 : index
    %c128_145 = arith.constant 128 : index
    %113 = vector.load %arg14[%c0_143, %c0_144, %c128_145] : memref<8x8x256xf32, #tpu.memory_space<vmem>>, vector<8x8x128xf32>
    %114 = arith.maximumf %112, %113 : vector<8x8x128xf32>
    %c0_146 = arith.constant 0 : index
    %c0_147 = arith.constant 0 : index
    %c0_148 = arith.constant 0 : index
    %115 = vector.load %arg15[%c0_146, %c0_147, %c0_148] : memref<8x8x128xf32, #tpu.memory_space<vmem>>, vector<8x8x128xf32>
    tpu.vector_store %arg15[%c0_146, %c0_147, %c0_148], %114 {strides = array<i32>} : memref<8x8x128xf32, #tpu.memory_space<vmem>>, vector<8x8x128xf32>,
    %c0_149 = arith.constant 0 : index
    %c0_150 = arith.constant 0 : index
    %c0_151 = arith.constant 0 : index
    %116 = tpu.strided_load %arg15[%c0_149, %c0_150, %c0_151] {strides = array<i32: 1, 2, 1>} : memref<8x8x128xf32, #tpu.memory_space<vmem>>, vector<8x4x128xf32>
    %c0_152 = arith.constant 0 : index
    %c1_153 = arith.constant 1 : index
    %c0_154 = arith.constant 0 : index
    %117 = tpu.strided_load %arg15[%c0_152, %c1_153, %c0_154] {strides = array<i32: 1, 2, 1>} : memref<8x8x128xf32, #tpu.memory_space<vmem>>, vector<8x4x128xf32>
    %118 = arith.maximumf %116, %117 : vector<8x4x128xf32>
    %cst_155 = arith.constant 0.000000e+00 : f32
    %119 = vector.broadcast %cst_155 : f32 to vector<8x4x128xf32>
    %120 = arith.maximumf %118, %119 : vector<8x4x128xf32>
    %c0_156 = arith.constant 0 : index
    %c0_157 = arith.constant 0 : index
    %c0_158 = arith.constant 0 : index
    %121 = vector.load %arg16[%c0_156, %c0_157, %c0_158] : memref<8x4x128xf32, #tpu.memory_space<vmem>>, vector<8x4x128xf32>
    tpu.vector_store %arg16[%c0_156, %c0_157, %c0_158], %120 {strides = array<i32>} : memref<8x4x128xf32, #tpu.memory_space<vmem>>, vector<8x4x128xf32>,
    %c0_159 = arith.constant 0 : index
    %c0_160 = arith.constant 0 : index
    %122 = vector.load %arg7[%c0_159, %c0_160] : memref<1x60xf32, #tpu.memory_space<vmem>>, vector<1x60xf32>
    %c0_161 = arith.constant 0 : index
    %c0_162 = arith.constant 0 : index
    %c0_163 = arith.constant 0 : index
    %123 = vector.load %arg16[%c0_161, %c0_162, %c0_163] : memref<8x4x128xf32, #tpu.memory_space<vmem>>, vector<8x1x128xf32>
    %124 = vector.shape_cast %123 : vector<8x1x128xf32> to vector<8x128xf32>
    %c0_164 = arith.constant 0 : index
    %c0_165 = arith.constant 0 : index
    %c0_166 = arith.constant 0 : index
    %125 = vector.load %arg6[%c0_164, %c0_165, %c0_166] : memref<4x128x60xf32, #tpu.memory_space<vmem>>, vector<1x128x60xf32>
    %126 = vector.shape_cast %125 : vector<1x128x60xf32> to vector<128x60xf32>
    %cst_167 = arith.constant dense<0.000000e+00> : vector<8x60xf32>
    %127 = tpu.matmul %124, %126, %cst_167 {dimension_numbers = #tpu.dot_dimension_numbers<[1], [0], [0], [1], [0, 0, 1, 1], [], []>} : vector<8x128xf32>, vector<128x60xf32>, vector<8x60xf32> -> vector<8x60xf32>
    %128 = vector.broadcast %122 : vector<1x60xf32> to vector<8x60xf32>
    %129 = arith.addf %128, %127 : vector<8x60xf32>
    %c0_168 = arith.constant 0 : index
    %c1_169 = arith.constant 1 : index
    %c0_170 = arith.constant 0 : index
    %130 = vector.load %arg16[%c0_168, %c1_169, %c0_170] : memref<8x4x128xf32, #tpu.memory_space<vmem>>, vector<8x1x128xf32>
    %131 = vector.shape_cast %130 : vector<8x1x128xf32> to vector<8x128xf32>
    %c1_171 = arith.constant 1 : index
    %c0_172 = arith.constant 0 : index
    %c0_173 = arith.constant 0 : index
    %132 = vector.load %arg6[%c1_171, %c0_172, %c0_173] : memref<4x128x60xf32, #tpu.memory_space<vmem>>, vector<1x128x60xf32>
    %133 = vector.shape_cast %132 : vector<1x128x60xf32> to vector<128x60xf32>
    %cst_174 = arith.constant dense<0.000000e+00> : vector<8x60xf32>
    %134 = tpu.matmul %131, %133, %cst_174 {dimension_numbers = #tpu.dot_dimension_numbers<[1], [0], [0], [1], [0, 0, 1, 1], [], []>} : vector<8x128xf32>, vector<128x60xf32>, vector<8x60xf32> -> vector<8x60xf32>
    %135 = arith.addf %129, %134 : vector<8x60xf32>
    %c0_175 = arith.constant 0 : index
    %c2_176 = arith.constant 2 : index
    %c0_177 = arith.constant 0 : index
    %136 = vector.load %arg16[%c0_175, %c2_176, %c0_177] : memref<8x4x128xf32, #tpu.memory_space<vmem>>, vector<8x1x128xf32>
    %137 = vector.shape_cast %136 : vector<8x1x128xf32> to vector<8x128xf32>
    %c2_178 = arith.constant 2 : index
    %c0_179 = arith.constant 0 : index
    %c0_180 = arith.constant 0 : index
    %138 = vector.load %arg6[%c2_178, %c0_179, %c0_180] : memref<4x128x60xf32, #tpu.memory_space<vmem>>, vector<1x128x60xf32>
    %139 = vector.shape_cast %138 : vector<1x128x60xf32> to vector<128x60xf32>
    %cst_181 = arith.constant dense<0.000000e+00> : vector<8x60xf32>
    %140 = tpu.matmul %137, %139, %cst_181 {dimension_numbers = #tpu.dot_dimension_numbers<[1], [0], [0], [1], [0, 0, 1, 1], [], []>} : vector<8x128xf32>, vector<128x60xf32>, vector<8x60xf32> -> vector<8x60xf32>
    %141 = arith.addf %135, %140 : vector<8x60xf32>
    %c0_182 = arith.constant 0 : index
    %c3_183 = arith.constant 3 : index
    %c0_184 = arith.constant 0 : index
    %142 = vector.load %arg16[%c0_182, %c3_183, %c0_184] : memref<8x4x128xf32, #tpu.memory_space<vmem>>, vector<8x1x128xf32>
    %143 = vector.shape_cast %142 : vector<8x1x128xf32> to vector<8x128xf32>
    %c3_185 = arith.constant 3 : index
    %c0_186 = arith.constant 0 : index
    %c0_187 = arith.constant 0 : index
    %144 = vector.load %arg6[%c3_185, %c0_186, %c0_187] : memref<4x128x60xf32, #tpu.memory_space<vmem>>, vector<1x128x60xf32>
    %145 = vector.shape_cast %144 : vector<1x128x60xf32> to vector<128x60xf32>
    %cst_188 = arith.constant dense<0.000000e+00> : vector<8x60xf32>
    %146 = tpu.matmul %143, %145, %cst_188 {dimension_numbers = #tpu.dot_dimension_numbers<[1], [0], [0], [1], [0, 0, 1, 1], [], []>} : vector<8x128xf32>, vector<128x60xf32>, vector<8x60xf32> -> vector<8x60xf32>
    %147 = arith.addf %141, %146 : vector<8x60xf32>
    %cst_189 = arith.constant 0.000000e+00 : f32
    %148 = vector.broadcast %cst_189 : f32 to vector<8x60xf32>
    %149 = arith.maximumf %147, %148 : vector<8x60xf32>
    %c0_190 = arith.constant 0 : index
    %c0_191 = arith.constant 0 : index
    %150 = vector.load %arg8[%c0_190, %c0_191] : memref<60x128xf32, #tpu.memory_space<vmem>>, vector<60x128xf32>
    %cst_192 = arith.constant dense<0.000000e+00> : vector<8x128xf32>
    %151 = tpu.matmul %149, %150, %cst_192 {dimension_numbers = #tpu.dot_dimension_numbers<[1], [0], [0], [1], [0, 0, 1, 1], [], []>} : vector<8x60xf32>, vector<60x128xf32>, vector<8x128xf32> -> vector<8x128xf32>
    %c0_193 = arith.constant 0 : index
    %c0_194 = arith.constant 0 : index
    %152 = vector.load %arg9[%c0_193, %c0_194] : memref<1x128xf32, #tpu.memory_space<vmem>>, vector<1x128xf32>
    %153 = vector.broadcast %152 : vector<1x128xf32> to vector<8x128xf32>
    %154 = arith.addf %151, %153 : vector<8x128xf32>
    %cst_195 = arith.constant dense<0xFF800000> : vector<8xf32>
    %155 = vector.multi_reduction <maximumf>, %154, %cst_195 [1] : vector<8x128xf32> to vector<8xf32>
    %156 = vector.shape_cast %155 : vector<8xf32> to vector<8x1xf32>
    %157 = vector.broadcast %156 : vector<8x1xf32> to vector<8x128xf32>
    %158 = arith.subf %154, %157 : vector<8x128xf32>
    %159 = math.exp %158 : vector<8x128xf32>
    %cst_196 = arith.constant dense<0.000000e+00> : vector<8xf32>
    %160 = vector.multi_reduction <add>, %159, %cst_196 [1] : vector<8x128xf32> to vector<8xf32>
    %161 = vector.shape_cast %160 : vector<8xf32> to vector<8x1xf32>
    %162 = math.log %161 : vector<8x1xf32>
    %163 = vector.broadcast %156 : vector<8x1xf32> to vector<8x128xf32>
    %164 = arith.subf %154, %163 : vector<8x128xf32>
    %165 = vector.broadcast %162 : vector<8x1xf32> to vector<8x128xf32>
    %166 = arith.subf %164, %165 : vector<8x128xf32>
    %c0_197 = arith.constant 0 : index
    %c0_198 = arith.constant 0 : index
    %167 = vector.load %arg10[%c0_197, %c0_198] : memref<8x128xf32, #tpu.memory_space<vmem>>, vector<8x128xf32>
    tpu.vector_store %arg10[%c0_197, %c0_198], %166 {strides = array<i32>} : memref<8x128xf32, #tpu.memory_space<vmem>>, vector<8x128xf32>,
    return
  }
  func.func @transform_0(%arg0: i32) -> (i32, i32, i32) {
    %c0_i32 = arith.constant 0 : i32
    %c0_i32_0 = arith.constant 0 : i32
    %c0_i32_1 = arith.constant 0 : i32
    return %arg0, %c0_i32, %c0_i32_0 : i32, i32, i32
  }
  func.func @transform_1(%arg0: i32) -> (i32, i32, i32) {
    %c0_i32 = arith.constant 0 : i32
    %c0_i32_0 = arith.constant 0 : i32
    %c0_i32_1 = arith.constant 0 : i32
    %c0_i32_2 = arith.constant 0 : i32
    return %c0_i32, %c0_i32_0, %c0_i32_1 : i32, i32, i32
  }
  func.func @transform_2(%arg0: i32) -> (i32, i32) {
    %c0_i32 = arith.constant 0 : i32
    %c0_i32_0 = arith.constant 0 : i32
    %c0_i32_1 = arith.constant 0 : i32
    return %c0_i32, %c0_i32_0 : i32, i32
  }
  func.func @transform_3(%arg0: i32) -> (i32, i32, i32) {
    %c0_i32 = arith.constant 0 : i32
    %c0_i32_0 = arith.constant 0 : i32
    %c0_i32_1 = arith.constant 0 : i32
    %c0_i32_2 = arith.constant 0 : i32
    return %c0_i32, %c0_i32_0, %c0_i32_1 : i32, i32, i32
  }
  func.func @transform_4(%arg0: i32) -> (i32, i32) {
    %c0_i32 = arith.constant 0 : i32
    %c0_i32_0 = arith.constant 0 : i32
    %c0_i32_1 = arith.constant 0 : i32
    return %c0_i32, %c0_i32_0 : i32, i32
  }
  func.func @transform_5(%arg0: i32) -> (i32, i32, i32) {
    %c0_i32 = arith.constant 0 : i32
    %c0_i32_0 = arith.constant 0 : i32
    %c0_i32_1 = arith.constant 0 : i32
    %c0_i32_2 = arith.constant 0 : i32
    return %c0_i32, %c0_i32_0, %c0_i32_1 : i32, i32, i32
  }
  func.func @transform_6(%arg0: i32) -> (i32, i32) {
    %c0_i32 = arith.constant 0 : i32
    %c0_i32_0 = arith.constant 0 : i32
    %c0_i32_1 = arith.constant 0 : i32
    return %c0_i32, %c0_i32_0 : i32, i32
  }
  func.func @transform_7(%arg0: i32) -> (i32, i32) {
    %c0_i32 = arith.constant 0 : i32
    %c0_i32_0 = arith.constant 0 : i32
    %c0_i32_1 = arith.constant 0 : i32
    return %c0_i32, %c0_i32_0 : i32, i32
  }
  func.func @transform_8(%arg0: i32) -> (i32, i32) {
    %c0_i32 = arith.constant 0 : i32
    %c0_i32_0 = arith.constant 0 : i32
    %c0_i32_1 = arith.constant 0 : i32
    return %c0_i32, %c0_i32_0 : i32, i32
  }
  func.func @transform_9(%arg0: i32) -> (i32, i32) {
    %c0_i32 = arith.constant 0 : i32
    %c0_i32_0 = arith.constant 0 : i32
    return %arg0, %c0_i32 : i32, i32
  }
}

</mosaic_0001>

<llo_original>
// kernel: network_forward.1
$region0: #{network_forward.1}
  #allocation0 [shape = 'u32[]', space=smem, size = 0x4, offset = 0x4, fixed_abs, tag = 'smem constant byte address 0x4 - core index']
  #allocation1 [shape = 'u32[144,128]{1,0:T(1,128)}', space=vmem, size = 0x12000, scoped, tag = 'internal scratch']
  #allocation2 [shape = 'f32[8,24,256]{2,1,0:T(8,128)}', space=vmem, size = 0x30000, scoped, tag = 'scratch operand']
  #allocation3 [shape = 'f32[8,24,128]{2,1,0:T(8,128)}', space=vmem, size = 0x18000, scoped, tag = 'scratch operand']
  #allocation4 [shape = 'f32[8,12,128]{2,1,0:T(8,128)}', space=vmem, size = 0x10000, scoped, tag = 'scratch operand']
  #allocation5 [shape = 'f32[8,8,256]{2,1,0:T(8,128)}', space=vmem, size = 0x10000, scoped, tag = 'scratch operand']
  #allocation6 [shape = 'f32[8,8,128]{2,1,0:T(8,128)}', space=vmem, size = 0x8000, scoped, tag = 'scratch operand']
  #allocation7 [shape = 'f32[8,4,128]{2,1,0:T(4,128)}', space=vmem, size = 0x4000, scoped, tag = 'scratch operand']
  %s0 = inlined_call_operand.vmem [shape: f32[8,28,28], index: 0, kind: input, shape index: {}]
  %s1 = inlined_call_operand.vmem [shape: bf16[5,28,256], index: 1, kind: input, shape index: {}]
  %s2 = inlined_call_operand.vmem [shape: f32[1,256], index: 2, kind: input, shape index: {}]
  %s3 = inlined_call_operand.vmem [shape: bf16[5,128,256], index: 3, kind: input, shape index: {}]
  %s4 = inlined_call_operand.vmem [shape: f32[1,256], index: 4, kind: input, shape index: {}]
  %s5 = inlined_call_operand.vmem [shape: f32[4,128,60], index: 5, kind: input, shape index: {}]
  %s6 = inlined_call_operand.vmem [shape: f32[1,60], index: 6, kind: input, shape index: {}]
  %s7 = inlined_call_operand.vmem [shape: f32[60,128], index: 7, kind: input, shape index: {}]
  %s8 = inlined_call_operand.vmem [shape: f32[1,128], index: 8, kind: input, shape index: {}]
  %s9 = inlined_call_operand.vmem [shape: f32[8,128], index: 9, kind: output, shape index: {}]
  %s10 = sld [smem:[#allocation0]]
  $region46: #{network_forward.1} parent=0
    _
  %s12 = ssub.s32 1, %s10
  %s13 = scalar_select 0, %s12, %s10
  // Predicated region
  $region2: #{network_forward.1} parent=0 // pred_check
    _
  $region3: #{network_forward.1} parent=0 // pred_check_branch
    %15 = sbr.rel (0) target = $region5
  $region4: #{network_forward.1} parent=0 // pred_region
    _
  $region5: #{network_forward.1} parent=0 // pred_fallthru
    _
  // Predicated region
  $region6: #{network_forward.1} parent=0 // pred_check
    _
  $region7: #{network_forward.1} parent=0 // pred_check_branch
    %17 = sbr.rel (0) target = $region9
  $region8: #{network_forward.1} parent=0 // pred_region
    _
  $region9: #{network_forward.1} parent=0 // pred_fallthru
    _
  // Predicated region
  $region10: #{network_forward.1} parent=0 // pred_check
    _
  $region11: #{network_forward.1} parent=0 // pred_check_branch
    %19 = sbr.rel (0) target = $region13
  $region12: #{network_forward.1} parent=0 // pred_region
    _
  $region13: #{network_forward.1} parent=0 // pred_fallthru
    _
  // Predicated region
  $region14: #{network_forward.1} parent=0 // pred_check
    _
  $region15: #{network_forward.1} parent=0 // pred_check_branch
    %21 = sbr.rel (0) target = $region17
  $region16: #{network_forward.1} parent=0 // pred_region
    _
  $region17: #{network_forward.1} parent=0 // pred_fallthru
    _
  // Predicated region
  $region18: #{network_forward.1} parent=0 // pred_check
    _
  $region19: #{network_forward.1} parent=0 // pred_check_branch
    %23 = sbr.rel (0) target = $region21
  $region20: #{network_forward.1} parent=0 // pred_region
    _
  $region21: #{network_forward.1} parent=0 // pred_fallthru
    _
  // Predicated region
  $region22: #{network_forward.1} parent=0 // pred_check
    _
  $region23: #{network_forward.1} parent=0 // pred_check_branch
    %25 = sbr.rel (0) target = $region25
  $region24: #{network_forward.1} parent=0 // pred_region
    _
  $region25: #{network_forward.1} parent=0 // pred_fallthru
    _
  // Predicated region
  $region26: #{network_forward.1} parent=0 // pred_check
    _
  $region27: #{network_forward.1} parent=0 // pred_check_branch
    %27 = sbr.rel (0) target = $region29
  $region28: #{network_forward.1} parent=0 // pred_region
    _
  $region29: #{network_forward.1} parent=0 // pred_fallthru
    _
  // Predicated region
  $region30: #{network_forward.1} parent=0 // pred_check
    _
  $region31: #{network_forward.1} parent=0 // pred_check_branch
    %29 = sbr.rel (0) target = $region33
  $region32: #{network_forward.1} parent=0 // pred_region
    _
  $region33: #{network_forward.1} parent=0 // pred_fallthru
    _
  // Predicated region
  $region34: #{network_forward.1} parent=0 // pred_check
    _
  $region35: #{network_forward.1} parent=0 // pred_check_branch
    %31 = sbr.rel (0) target = $region37
  $region36: #{network_forward.1} parent=0 // pred_region
    _
  $region37: #{network_forward.1} parent=0 // pred_fallthru
    _
  %v33 = vld [vmem:[%s0] sm:$0xff]
  %v34 = vld [vmem:[%s0 + $0x8] sm:$0xff]
  %v35 = vld [vmem:[%s0 + $0x10] sm:$0xff]
  %v36 = vld [vmem:[%s0 + $0x20] sm:$0xff]
  %v37 = vld [vmem:[%s0 + $0x28] sm:$0xff]
  %v38 = vld [vmem:[%s0 + $0x30] sm:$0xff]
  %v39 = vld [vmem:[%s0 + $0x40] sm:$0xff]
  %v40 = vld [vmem:[%s0 + $0x48] sm:$0xff]
  %v41 = vld [vmem:[%s0 + $0x50] sm:$0xff]
  %v42 = vld [vmem:[%s0 + $0x60] sm:$0xff]
  %v43 = vld [vmem:[%s0 + $0x68] sm:$0xff]
  %v44 = vld [vmem:[%s0 + $0x70] sm:$0xff]
  %v45 = vld [vmem:[%s0 + $0x80] sm:$0xff]
  %v46 = vld [vmem:[%s0 + $0x88] sm:$0xff]
  %v47 = vld [vmem:[%s0 + $0x90] sm:$0xff]
  %v48 = vld [vmem:[%s0 + $0xa0] sm:$0xff]
  %v49 = vld [vmem:[%s0 + $0xa8] sm:$0xff]
  %v50 = vld [vmem:[%s0 + $0xb0] sm:$0xff]
  %v51 = vld [vmem:[%s0 + $0xc0] sm:$0xff]
  %v52 = vld [vmem:[%s0 + $0xc8] sm:$0xff]
  %v53 = vld [vmem:[%s0 + $0xd0] sm:$0xff]
  %v54 = vld [vmem:[%s0 + $0xe0] sm:$0xff]
  %v55 = vld [vmem:[%s0 + $0xe8] sm:$0xff]
  %v56 = vld [vmem:[%s0 + $0xf0] sm:$0xff]
  %v57 = vpack.c.bf16 %v34, %v33
  %v58 = vpack.c.bf16 %v36, %v35
  %v59 = vpack.c.bf16 %v38, %v37
  %v60 = vpack.c.bf16 %v40, %v39
  %v61 = vpack.c.bf16 %v42, %v41
  %v62 = vpack.c.bf16 %v44, %v43
  %v63 = vpack.c.bf16 %v46, %v45
  %v64 = vpack.c.bf16 %v48, %v47
  %v65 = vpack.c.bf16 %v50, %v49
  %v66 = vpack.c.bf16 %v52, %v51
  %v67 = vpack.c.bf16 %v54, %v53
  %v68 = vpack.c.bf16 %v56, %v55
  %v69 = vld [vmem:[%s1] sm:$0xff]
  %v70 = vld [vmem:[%s1 + $0x8] sm:$0xff]
  %v71 = vld [vmem:[%s1 + $0x10] sm:$0xff]
  %v72 = vld [vmem:[%s1 + $0x18] sm:$0x33]
  %v73 = vld [vmem:[%s2] sm:$0x3]
  %v75 = vlaneseq
  %v76 = vshrl.u32 %v75, 7
  %v77 = vsub.s32 0, %v76
  %v78 = vrot.slane %v73, %v77
  %v79 = vlaneseq
  %v80 = vshrl.u32 %v79, 7
  %v81 = vsub.s32 1, %v80
  %v82 = vrot.slane %v73, %v81
  %v89 = vunpack.c.l.b16 %v69
  %v90 = vunpack.c.h.b16 %v69
  %v91 = vunpack.c.l.b16 %v70
  %v92 = vunpack.c.h.b16 %v70
  %v93 = vunpack.c.l.b16 %v71
  %v94 = vunpack.c.h.b16 %v71
  %v95 = vunpack.c.l.b16 %v72
  %v96 = vunpack.c.h.b16 %v72
  %v97 = vpack.c.b16 %v91, %v89
  %v98 = vpack.c.b16 %v92, %v90
  %v99 = vpack.c.b16 %v95, %v93
  %v100 = vpack.c.b16 %v96, %v94
  %vm103 = vcmask 228352
  %v105 = vsel %vm103, %v57, 0
  %v108 = vsel %vm103, %v58, 0
  %v111 = vsel %vm103, %v59, 0
  %v114 = vsel %vm103, %v60, 0
  %v117 = vsel %vm103, %v61, 0
  %v120 = vsel %vm103, %v62, 0
  %v123 = vsel %vm103, %v63, 0
  %v126 = vsel %vm103, %v64, 0
  %v129 = vsel %vm103, %v65, 0
  %v132 = vsel %vm103, %v66, 0
  %v135 = vsel %vm103, %v67, 0
  %v138 = vsel %vm103, %v68, 0
  %vm140 = vcmask 1045504
  %v142 = vsel %vm140, %v99, 0
  %v145 = vsel %vm140, %v100, 0
  %147 = vmatprep.subr.bf16.mxu0 0
  %148 = vmatpush1.bf16.msra.mxu0 0
  %149 = vmatprep.subr.bf16.mxu0 0
  %150 = vmatpush1.bf16.msra.mxu0 0
  %151 = vmatprep.subr.bf16.mxu0 0
  %152 = vmatpush1.bf16.msra.mxu0 0
  %153 = vmatprep.subr.bf16.mxu0 0
  %154 = vmatpush1.bf16.msra.mxu0 0
  %155 = vmatprep.subr.bf16.mxu0 0
  %156 = vmatpush1.bf16.msra.mxu0 0
  %157 = vmatprep.subr.bf16.mxu0 0
  %158 = vmatpush1.bf16.msra.mxu0 0
  %159 = vmatprep.subr.bf16.mxu0 %v145
  %160 = vmatpush1.bf16.msra.mxu0 %v142
  %161 = vmatprep.subr.bf16.mxu0 %v98
  %162 = vmatpush1.bf16.msra.mxu0 %v97
  %163 = vmatprep.subr.bf16.mxu0 0
  %164 = vmatpush2.bf16.msra.mxu0 0
  %165 = vmatprep.subr.bf16.mxu0 0
  %166 = vmatpush2.bf16.msra.mxu0 0
  %167 = vmatprep.subr.bf16.mxu0 0
  %168 = vmatpush2.bf16.msra.mxu0 0
  %169 = vmatprep.subr.bf16.mxu0 0
  %170 = vmatpush2.bf16.msra.mxu0 0
  %171 = vmatprep.subr.bf16.mxu0 0
  %172 = vmatpush2.bf16.msra.mxu0 0
  %173 = vmatprep.subr.bf16.mxu0 0
  %174 = vmatpush2.bf16.msra.mxu0 0
  %175 = vmatprep.subr.bf16.mxu0 0
  %176 = vmatpush2.bf16.msra.mxu0 0
  %177 = vmatprep.subr.bf16.mxu0 0
  %178 = vmatpush2.bf16.msra.mxu0 0
  %179 = vmatprep.mubr.bf16.mxu0 0
  %180 = vmatmul.mubr.bf16.gmra.mxu0 %v105
  %v181 = vpop.f32.mrf.mxu0
  %v182 = vadd.f32 %v78, %v181
  %v183 = vpop.f32.mrf.mxu0
  %v184 = vadd.f32 %v82, %v183
  %v185 = vpop.f32.mrf.mxu0
  %v186 = vadd.f32 %v78, %v185
  %v187 = vpop.f32.mrf.mxu0
  %v188 = vadd.f32 %v82, %v187
  %189 = vmatprep.mubr.bf16.mxu0 0
  %190 = vmatmul.mubr.bf16.gmra.mxu0 %v108
  %v191 = vpop.f32.mrf.mxu0
  %v192 = vadd.f32 %v78, %v191
  %v193 = vpop.f32.mrf.mxu0
  %v194 = vadd.f32 %v82, %v193
  %v195 = vpop.f32.mrf.mxu0
  %v196 = vadd.f32 %v78, %v195
  %v197 = vpop.f32.mrf.mxu0
  %v198 = vadd.f32 %v82, %v197
  %199 = vmatprep.mubr.bf16.mxu0 0
  %200 = vmatmul.mubr.bf16.gmra.mxu0 %v111
  %v201 = vpop.f32.mrf.mxu0
  %v202 = vadd.f32 %v78, %v201
  %v203 = vpop.f32.mrf.mxu0
  %v204 = vadd.f32 %v82, %v203
  %v205 = vpop.f32.mrf.mxu0
  %v206 = vadd.f32 %v78, %v205
  %v207 = vpop.f32.mrf.mxu0
  %v208 = vadd.f32 %v82, %v207
  %209 = vmatprep.mubr.bf16.mxu0 0
  %210 = vmatmul.mubr.bf16.gmra.mxu0 %v114
  %v211 = vpop.f32.mrf.mxu0
  %v212 = vadd.f32 %v78, %v211
  %v213 = vpop.f32.mrf.mxu0
  %v214 = vadd.f32 %v82, %v213
  %v215 = vpop.f32.mrf.mxu0
  %v216 = vadd.f32 %v78, %v215
  %v217 = vpop.f32.mrf.mxu0
  %v218 = vadd.f32 %v82, %v217
  %219 = vmatprep.mubr.bf16.mxu0 0
  %220 = vmatmul.mubr.bf16.gmra.mxu0 %v117
  %v221 = vpop.f32.mrf.mxu0
  %v222 = vadd.f32 %v78, %v221
  %v223 = vpop.f32.mrf.mxu0
  %v224 = vadd.f32 %v82, %v223
  %v225 = vpop.f32.mrf.mxu0
  %v226 = vadd.f32 %v78, %v225
  %v227 = vpop.f32.mrf.mxu0
  %v228 = vadd.f32 %v82, %v227
  %229 = vmatprep.mubr.bf16.mxu0 0
  %230 = vmatmul.mubr.bf16.gmra.mxu0 %v120
  %v231 = vpop.f32.mrf.mxu0
  %v232 = vadd.f32 %v78, %v231
  %v233 = vpop.f32.mrf.mxu0
  %v234 = vadd.f32 %v82, %v233
  %v235 = vpop.f32.mrf.mxu0
  %v236 = vadd.f32 %v78, %v235
  %v237 = vpop.f32.mrf.mxu0
  %v238 = vadd.f32 %v82, %v237
  %239 = vmatprep.mubr.bf16.mxu0 0
  %240 = vmatmul.mubr.bf16.gmra.mxu0 %v123
  %v241 = vpop.f32.mrf.mxu0
  %v242 = vadd.f32 %v78, %v241
  %v243 = vpop.f32.mrf.mxu0
  %v244 = vadd.f32 %v82, %v243
  %v245 = vpop.f32.mrf.mxu0
  %v246 = vadd.f32 %v78, %v245
  %v247 = vpop.f32.mrf.mxu0
  %v248 = vadd.f32 %v82, %v247
  %249 = vmatprep.mubr.bf16.mxu0 0
  %250 = vmatmul.mubr.bf16.gmra.mxu0 %v126
  %v251 = vpop.f32.mrf.mxu0
  %v252 = vadd.f32 %v78, %v251
  %v253 = vpop.f32.mrf.mxu0
  %v254 = vadd.f32 %v82, %v253
  %v255 = vpop.f32.mrf.mxu0
  %v256 = vadd.f32 %v78, %v255
  %v257 = vpop.f32.mrf.mxu0
  %v258 = vadd.f32 %v82, %v257
  %259 = vmatprep.mubr.bf16.mxu0 0
  %260 = vmatmul.mubr.bf16.gmra.mxu0 %v129
  %v261 = vpop.f32.mrf.mxu0
  %v262 = vadd.f32 %v78, %v261
  %v263 = vpop.f32.mrf.mxu0
  %v264 = vadd.f32 %v82, %v263
  %v265 = vpop.f32.mrf.mxu0
  %v266 = vadd.f32 %v78, %v265
  %v267 = vpop.f32.mrf.mxu0
  %v268 = vadd.f32 %v82, %v267
  %269 = vmatprep.mubr.bf16.mxu0 0
  %270 = vmatmul.mubr.bf16.gmra.mxu0 %v132
  %v271 = vpop.f32.mrf.mxu0
  %v272 = vadd.f32 %v78, %v271
  %v273 = vpop.f32.mrf.mxu0
  %v274 = vadd.f32 %v82, %v273
  %v275 = vpop.f32.mrf.mxu0
  %v276 = vadd.f32 %v78, %v275
  %v277 = vpop.f32.mrf.mxu0
  %v278 = vadd.f32 %v82, %v277
  %279 = vmatprep.mubr.bf16.mxu0 0
  %280 = vmatmul.mubr.bf16.gmra.mxu0 %v135
  %v281 = vpop.f32.mrf.mxu0
  %v282 = vadd.f32 %v78, %v281
  %v283 = vpop.f32.mrf.mxu0
  %v284 = vadd.f32 %v82, %v283
  %v285 = vpop.f32.mrf.mxu0
  %v286 = vadd.f32 %v78, %v285
  %v287 = vpop.f32.mrf.mxu0
  %v288 = vadd.f32 %v82, %v287
  %289 = vmatprep.mubr.bf16.mxu0 0
  %290 = vmatmul.mubr.bf16.gmra.mxu0 %v138
  %v291 = vpop.f32.mrf.mxu0
  %v292 = vadd.f32 %v78, %v291
  %v293 = vpop.f32.mrf.mxu0
  %v294 = vadd.f32 %v82, %v293
  %v295 = vpop.f32.mrf.mxu0
  %v296 = vadd.f32 %v78, %v295
  %v297 = vpop.f32.mrf.mxu0
  %v298 = vadd.f32 %v82, %v297
  %299 = vdwg.mxu0
  %300 = vst [vmem:[#allocation2] sm:$0xff] %v182
  %301 = vst [vmem:[#allocation2 + $0x8] sm:$0xff] %v184
  %302 = vst [vmem:[#allocation2 + $0x10] sm:$0xff] %v186
  %303 = vst [vmem:[#allocation2 + $0x18] sm:$0xff] %v188
  %304 = vst [vmem:[#allocation2 + $0x20] sm:$0xff] %v192
  %305 = vst [vmem:[#allocation2 + $0x28] sm:$0xff] %v194
  %306 = vst [vmem:[#allocation2 + $0x30] sm:$0xff] %v196
  %307 = vst [vmem:[#allocation2 + $0x38] sm:$0xff] %v198
  %308 = vst [vmem:[#allocation2 + $0x40] sm:$0xff] %v202
  %309 = vst [vmem:[#allocation2 + $0x48] sm:$0xff] %v204
  %310 = vst [vmem:[#allocation2 + $0x50] sm:$0xff] %v206
  %311 = vst [vmem:[#allocation2 + $0x58] sm:$0xff] %v208
  %312 = vst [vmem:[#allocation2 + $0x60] sm:$0xff] %v212
  %313 = vst [vmem:[#allocation2 + $0x68] sm:$0xff] %v214
  %314 = vst [vmem:[#allocation2 + $0x70] sm:$0xff] %v216
  %315 = vst [vmem:[#allocation2 + $0x78] sm:$0xff] %v218
  %316 = vst [vmem:[#allocation2 + $0x80] sm:$0xff] %v222
  %317 = vst [vmem:[#allocation2 + $0x88] sm:$0xff] %v224
  %318 = vst [vmem:[#allocation2 + $0x90] sm:$0xff] %v226
  %319 = vst [vmem:[#allocation2 + $0x98] sm:$0xff] %v228
  %320 = vst [vmem:[#allocation2 + $0xa0] sm:$0xff] %v232
  %321 = vst [vmem:[#allocation2 + $0xa8] sm:$0xff] %v234
  %322 = vst [vmem:[#allocation2 + $0xb0] sm:$0xff] %v236
  %323 = vst [vmem:[#allocation2 + $0xb8] sm:$0xff] %v238
  %324 = vst [vmem:[#allocation2 + $0xc0] sm:$0xff] %v242
  %325 = vst [vmem:[#allocation2 + $0xc8] sm:$0xff] %v244
  %326 = vst [vmem:[#allocation2 + $0xd0] sm:$0xff] %v246
  %327 = vst [vmem:[#allocation2 + $0xd8] sm:$0xff] %v248
  %328 = vst [vmem:[#allocation2 + $0xe0] sm:$0xff] %v252
  %329 = vst [vmem:[#allocation2 + $0xe8] sm:$0xff] %v254
  %330 = vst [vmem:[#allocation2 + $0xf0] sm:$0xff] %v256
  %331 = vst [vmem:[#allocation2 + $0xf8] sm:$0xff] %v258
  %332 = vst [vmem:[#allocation2 + $0x100] sm:$0xff] %v262
  %333 = vst [vmem:[#allocation2 + $0x108] sm:$0xff] %v264
  %334 = vst [vmem:[#allocation2 + $0x110] sm:$0xff] %v266
  %335 = vst [vmem:[#allocation2 + $0x118] sm:$0xff] %v268
  %336 = vst [vmem:[#allocation2 + $0x120] sm:$0xff] %v272
  %337 = vst [vmem:[#allocation2 + $0x128] sm:$0xff] %v274
  %338 = vst [vmem:[#allocation2 + $0x130] sm:$0xff] %v276
  %339 = vst [vmem:[#allocation2 + $0x138] sm:$0xff] %v278
  %340 = vst [vmem:[#allocation2 + $0x140] sm:$0xff] %v282
  %341 = vst [vmem:[#allocation2 + $0x148] sm:$0xff] %v284
  %342 = vst [vmem:[#allocation2 + $0x150] sm:$0xff] %v286
  %343 = vst [vmem:[#allocation2 + $0x158] sm:$0xff] %v288
  %344 = vst [vmem:[#allocation2 + $0x160] sm:$0xff] %v292
  %345 = vst [vmem:[#allocation2 + $0x168] sm:$0xff] %v294
  %346 = vst [vmem:[#allocation2 + $0x170] sm:$0xff] %v296
  %347 = vst [vmem:[#allocation2 + $0x178] sm:$0xff] %v298
  %v348 = vld [vmem:[%s0 + $0x1] sm:$0xff]
  %v349 = vld [vmem:[%s0 + $0x9] sm:$0xff]
  %v350 = vld [vmem:[%s0 + $0x11] sm:$0xff]
  %v351 = vld [vmem:[%s0 + $0x21] sm:$0xff]
  %v352 = vld [vmem:[%s0 + $0x29] sm:$0xff]
  %v353 = vld [vmem:[%s0 + $0x31] sm:$0xff]
  %v354 = vld [vmem:[%s0 + $0x41] sm:$0xff]
  %v355 = vld [vmem:[%s0 + $0x49] sm:$0xff]
  %v356 = vld [vmem:[%s0 + $0x51] sm:$0xff]
  %v357 = vld [vmem:[%s0 + $0x61] sm:$0xff]
  %v358 = vld [vmem:[%s0 + $0x69] sm:$0xff]
  %v359 = vld [vmem:[%s0 + $0x71] sm:$0xff]
  %v360 = vld [vmem:[%s0 + $0x81] sm:$0xff]
  %v361 = vld [vmem:[%s0 + $0x89] sm:$0xff]
  %v362 = vld [vmem:[%s0 + $0x91] sm:$0xff]
  %v363 = vld [vmem:[%s0 + $0xa1] sm:$0xff]
  %v364 = vld [vmem:[%s0 + $0xa9] sm:$0xff]
  %v365 = vld [vmem:[%s0 + $0xb1] sm:$0xff]
  %v366 = vld [vmem:[%s0 + $0xc1] sm:$0xff]
  %v367 = vld [vmem:[%s0 + $0xc9] sm:$0xff]
  %v368 = vld [vmem:[%s0 + $0xd1] sm:$0xff]
  %v369 = vld [vmem:[%s0 + $0xe1] sm:$0xff]
  %v370 = vld [vmem:[%s0 + $0xe9] sm:$0xff]
  %v371 = vld [vmem:[%s0 + $0xf1] sm:$0xff]
  %v372 = vpack.c.bf16 %v349, %v348
  %v373 = vpack.c.bf16 %v351, %v350
  %v374 = vpack.c.bf16 %v353, %v352
  %v375 = vpack.c.bf16 %v355, %v354
  %v376 = vpack.c.bf16 %v357, %v356
  %v377 = vpack.c.bf16 %v359, %v358
  %v378 = vpack.c.bf16 %v361, %v360
  %v379 = vpack.c.bf16 %v363, %v362
  %v380 = vpack.c.bf16 %v365, %v364
  %v381 = vpack.c.bf16 %v367, %v366
  %v382 = vpack.c.bf16 %v369, %v368
  %v383 = vpack.c.bf16 %v371, %v370
  %s384 = scalar_lea.vmem %s1, 32
  %v385 = vld [vmem:[%s384] sm:$0xff]
  %v386 = vld [vmem:[%s384 + $0x8] sm:$0xff]
  %v387 = vld [vmem:[%s384 + $0x10] sm:$0xff]
  %v388 = vld [vmem:[%s384 + $0x18] sm:$0x33]
  %v393 = vunpack.c.l.b16 %v385
  %v394 = vunpack.c.h.b16 %v385
  %v395 = vunpack.c.l.b16 %v386
  %v396 = vunpack.c.h.b16 %v386
  %v397 = vunpack.c.l.b16 %v387
  %v398 = vunpack.c.h.b16 %v387
  %v399 = vunpack.c.l.b16 %v388
  %v400 = vunpack.c.h.b16 %v388
  %v401 = vpack.c.b16 %v395, %v393
  %v402 = vpack.c.b16 %v396, %v394
  %v403 = vpack.c.b16 %v399, %v397
  %v404 = vpack.c.b16 %v400, %v398
  %v408 = vsel %vm103, %v372, 0
  %v411 = vsel %vm103, %v373, 0
  %v414 = vsel %vm103, %v374, 0
  %v417 = vsel %vm103, %v375, 0
  %v420 = vsel %vm103, %v376, 0
  %v423 = vsel %vm103, %v377, 0
  %v426 = vsel %vm103, %v378, 0
  %v429 = vsel %vm103, %v379, 0
  %v432 = vsel %vm103, %v380, 0
  %v435 = vsel %vm103, %v381, 0
  %v438 = vsel %vm103, %v382, 0
  %v441 = vsel %vm103, %v383, 0
  %v444 = vsel %vm140, %v403, 0
  %v447 = vsel %vm140, %v404, 0
  %449 = vmatprep.subr.bf16.mxu0 0
  %450 = vmatpush1.bf16.msra.mxu0 0
  %451 = vmatprep.subr.bf16.mxu0 0
  %452 = vmatpush1.bf16.msra.mxu0 0
  %453 = vmatprep.subr.bf16.mxu0 0
  %454 = vmatpush1.bf16.msra.mxu0 0
  %455 = vmatprep.subr.bf16.mxu0 0
  %456 = vmatpush1.bf16.msra.mxu0 0
  %457 = vmatprep.subr.bf16.mxu0 0
  %458 = vmatpush1.bf16.msra.mxu0 0
  %459 = vmatprep.subr.bf16.mxu0 0
  %460 = vmatpush1.bf16.msra.mxu0 0
  %461 = vmatprep.subr.bf16.mxu0 %v447
  %462 = vmatpush1.bf16.msra.mxu0 %v444
  %463 = vmatprep.subr.bf16.mxu0 %v402
  %464 = vmatpush1.bf16.msra.mxu0 %v401
  %465 = vmatprep.subr.bf16.mxu0 0
  %466 = vmatpush2.bf16.msra.mxu0 0
  %467 = vmatprep.subr.bf16.mxu0 0
  %468 = vmatpush2.bf16.msra.mxu0 0
  %469 = vmatprep.subr.bf16.mxu0 0
  %470 = vmatpush2.bf16.msra.mxu0 0
  %471 = vmatprep.subr.bf16.mxu0 0
  %472 = vmatpush2.bf16.msra.mxu0 0
  %473 = vmatprep.subr.bf16.mxu0 0
  %474 = vmatpush2.bf16.msra.mxu0 0
  %475 = vmatprep.subr.bf16.mxu0 0
  %476 = vmatpush2.bf16.msra.mxu0 0
  %477 = vmatprep.subr.bf16.mxu0 0
  %478 = vmatpush2.bf16.msra.mxu0 0
  %479 = vmatprep.subr.bf16.mxu0 0
  %480 = vmatpush2.bf16.msra.mxu0 0
  %481 = vmatprep.mubr.bf16.mxu0 0
  %482 = vmatmul.mubr.bf16.gmra.mxu0 %v408
  %v483 = vpop.f32.mrf.mxu0
  %v484 = vadd.f32 0.0, %v483
  %v485 = vpop.f32.mrf.mxu0
  %v486 = vadd.f32 0.0, %v485
  %v487 = vpop.f32.mrf.mxu0
  %v488 = vadd.f32 0.0, %v487
  %v489 = vpop.f32.mrf.mxu0
  %v490 = vadd.f32 0.0, %v489
  %491 = vmatprep.mubr.bf16.mxu0 0
  %492 = vmatmul.mubr.bf16.gmra.mxu0 %v411
  %v493 = vpop.f32.mrf.mxu0
  %v494 = vadd.f32 0.0, %v493
  %v495 = vpop.f32.mrf.mxu0
  %v496 = vadd.f32 0.0, %v495
  %v497 = vpop.f32.mrf.mxu0
  %v498 = vadd.f32 0.0, %v497
  %v499 = vpop.f32.mrf.mxu0
  %v500 = vadd.f32 0.0, %v499
  %501 = vmatprep.mubr.bf16.mxu0 0
  %502 = vmatmul.mubr.bf16.gmra.mxu0 %v414
  %v503 = vpop.f32.mrf.mxu0
  %v504 = vadd.f32 0.0, %v503
  %v505 = vpop.f32.mrf.mxu0
  %v506 = vadd.f32 0.0, %v505
  %v507 = vpop.f32.mrf.mxu0
  %v508 = vadd.f32 0.0, %v507
  %v509 = vpop.f32.mrf.mxu0
  %v510 = vadd.f32 0.0, %v509
  %511 = vmatprep.mubr.bf16.mxu0 0
  %512 = vmatmul.mubr.bf16.gmra.mxu0 %v417
  %v513 = vpop.f32.mrf.mxu0
  %v514 = vadd.f32 0.0, %v513
  %v515 = vpop.f32.mrf.mxu0
  %v516 = vadd.f32 0.0, %v515
  %v517 = vpop.f32.mrf.mxu0
  %v518 = vadd.f32 0.0, %v517
  %v519 = vpop.f32.mrf.mxu0
  %v520 = vadd.f32 0.0, %v519
  %521 = vmatprep.mubr.bf16.mxu0 0
  %522 = vmatmul.mubr.bf16.gmra.mxu0 %v420
  %v523 = vpop.f32.mrf.mxu0
  %v524 = vadd.f32 0.0, %v523
  %v525 = vpop.f32.mrf.mxu0
  %v526 = vadd.f32 0.0, %v525
  %v527 = vpop.f32.mrf.mxu0
  %v528 = vadd.f32 0.0, %v527
  %v529 = vpop.f32.mrf.mxu0
  %v530 = vadd.f32 0.0, %v529
  %531 = vmatprep.mubr.bf16.mxu0 0
  %532 = vmatmul.mubr.bf16.gmra.mxu0 %v423
  %v533 = vpop.f32.mrf.mxu0
  %v534 = vadd.f32 0.0, %v533
  %v535 = vpop.f32.mrf.mxu0
  %v536 = vadd.f32 0.0, %v535
  %v537 = vpop.f32.mrf.mxu0
  %v538 = vadd.f32 0.0, %v537
  %v539 = vpop.f32.mrf.mxu0
  %v540 = vadd.f32 0.0, %v539
  %541 = vmatprep.mubr.bf16.mxu0 0
  %542 = vmatmul.mubr.bf16.gmra.mxu0 %v426
  %v543 = vpop.f32.mrf.mxu0
  %v544 = vadd.f32 0.0, %v543
  %v545 = vpop.f32.mrf.mxu0
  %v546 = vadd.f32 0.0, %v545
  %v547 = vpop.f32.mrf.mxu0
  %v548 = vadd.f32 0.0, %v547
  %v549 = vpop.f32.mrf.mxu0
  %v550 = vadd.f32 0.0, %v549
  %551 = vmatprep.mubr.bf16.mxu0 0
  %552 = vmatmul.mubr.bf16.gmra.mxu0 %v429
  %v553 = vpop.f32.mrf.mxu0
  %v554 = vadd.f32 0.0, %v553
  %v555 = vpop.f32.mrf.mxu0
  %v556 = vadd.f32 0.0, %v555
  %v557 = vpop.f32.mrf.mxu0
  %v558 = vadd.f32 0.0, %v557
  %v559 = vpop.f32.mrf.mxu0
  %v560 = vadd.f32 0.0, %v559
  %561 = vmatprep.mubr.bf16.mxu0 0
  %562 = vmatmul.mubr.bf16.gmra.mxu0 %v432
  %v563 = vpop.f32.mrf.mxu0
  %v564 = vadd.f32 0.0, %v563
  %v565 = vpop.f32.mrf.mxu0
  %v566 = vadd.f32 0.0, %v565
  %v567 = vpop.f32.mrf.mxu0
  %v568 = vadd.f32 0.0, %v567
  %v569 = vpop.f32.mrf.mxu0
  %v570 = vadd.f32 0.0, %v569
  %571 = vmatprep.mubr.bf16.mxu0 0
  %572 = vmatmul.mubr.bf16.gmra.mxu0 %v435
  %v573 = vpop.f32.mrf.mxu0
  %v574 = vadd.f32 0.0, %v573
  %v575 = vpop.f32.mrf.mxu0
  %v576 = vadd.f32 0.0, %v575
  %v577 = vpop.f32.mrf.mxu0
  %v578 = vadd.f32 0.0, %v577
  %v579 = vpop.f32.mrf.mxu0
  %v580 = vadd.f32 0.0, %v579
  %581 = vmatprep.mubr.bf16.mxu0 0
  %582 = vmatmul.mubr.bf16.gmra.mxu0 %v438
  %v583 = vpop.f32.mrf.mxu0
  %v584 = vadd.f32 0.0, %v583
  %v585 = vpop.f32.mrf.mxu0
  %v586 = vadd.f32 0.0, %v585
  %v587 = vpop.f32.mrf.mxu0
  %v588 = vadd.f32 0.0, %v587
  %v589 = vpop.f32.mrf.mxu0
  %v590 = vadd.f32 0.0, %v589
  %591 = vmatprep.mubr.bf16.mxu0 0
  %592 = vmatmul.mubr.bf16.gmra.mxu0 %v441
  %v593 = vpop.f32.mrf.mxu0
  %v594 = vadd.f32 0.0, %v593
  %v595 = vpop.f32.mrf.mxu0
  %v596 = vadd.f32 0.0, %v595
  %v597 = vpop.f32.mrf.mxu0
  %v598 = vadd.f32 0.0, %v597
  %v599 = vpop.f32.mrf.mxu0
  %v600 = vadd.f32 0.0, %v599
  %601 = vdwg.mxu0
  %v602 = vld [vmem:[#allocation2] sm:$0xff]
  %v603 = vld [vmem:[#allocation2 + $0x8] sm:$0xff]
  %v604 = vld [vmem:[#allocation2 + $0x10] sm:$0xff]
  %v605 = vld [vmem:[#allocation2 + $0x18] sm:$0xff]
  %v606 = vld [vmem:[#allocation2 + $0x20] sm:$0xff]
  %v607 = vld [vmem:[#allocation2 + $0x28] sm:$0xff]
  %v608 = vld [vmem:[#allocation2 + $0x30] sm:$0xff]
  %v609 = vld [vmem:[#allocation2 + $0x38] sm:$0xff]
  %v610 = vld [vmem:[#allocation2 + $0x40] sm:$0xff]
  %v611 = vld [vmem:[#allocation2 + $0x48] sm:$0xff]
  %v612 = vld [vmem:[#allocation2 + $0x50] sm:$0xff]
  %v613 = vld [vmem:[#allocation2 + $0x58] sm:$0xff]
  %v614 = vld [vmem:[#allocation2 + $0x60] sm:$0xff]
  %v615 = vld [vmem:[#allocation2 + $0x68] sm:$0xff]
  %v616 = vld [vmem:[#allocation2 + $0x70] sm:$0xff]
  %v617 = vld [vmem:[#allocation2 + $0x78] sm:$0xff]
  %v618 = vld [vmem:[#allocation2 + $0x80] sm:$0xff]
  %v619 = vld [vmem:[#allocation2 + $0x88] sm:$0xff]
  %v620 = vld [vmem:[#allocation2 + $0x90] sm:$0xff]
  %v621 = vld [vmem:[#allocation2 + $0x98] sm:$0xff]
  %v622 = vld [vmem:[#allocation2 + $0xa0] sm:$0xff]
  %v623 = vld [vmem:[#allocation2 + $0xa8] sm:$0xff]
  %v624 = vld [vmem:[#allocation2 + $0xb0] sm:$0xff]
  %v625 = vld [vmem:[#allocation2 + $0xb8] sm:$0xff]
  %v626 = vld [vmem:[#allocation2 + $0xc0] sm:$0xff]
  %v627 = vld [vmem:[#allocation2 + $0xc8] sm:$0xff]
  %v628 = vld [vmem:[#allocation2 + $0xd0] sm:$0xff]
  %v629 = vld [vmem:[#allocation2 + $0xd8] sm:$0xff]
  %v630 = vld [vmem:[#allocation2 + $0xe0] sm:$0xff]
  %v631 = vld [vmem:[#allocation2 + $0xe8] sm:$0xff]
  %v632 = vld [vmem:[#allocation2 + $0xf0] sm:$0xff]
  %v633 = vld [vmem:[#allocation2 + $0xf8] sm:$0xff]
  %v634 = vld [vmem:[#allocation2 + $0x100] sm:$0xff]
  %v635 = vld [vmem:[#allocation2 + $0x108] sm:$0xff]
  %v636 = vld [vmem:[#allocation2 + $0x110] sm:$0xff]
  %v637 = vld [vmem:[#allocation2 + $0x118] sm:$0xff]
  %v638 = vld [vmem:[#allocation2 + $0x120] sm:$0xff]
  %v639 = vld [vmem:[#allocation2 + $0x128] sm:$0xff]
  %v640 = vld [vmem:[#allocation2 + $0x130] sm:$0xff]
  %v641 = vld [vmem:[#allocation2 + $0x138] sm:$0xff]
  %v642 = vld [vmem:[#allocation2 + $0x140] sm:$0xff]
  %v643 = vld [vmem:[#allocation2 + $0x148] sm:$0xff]
  %v644 = vld [vmem:[#allocation2 + $0x150] sm:$0xff]
  %v645 = vld [vmem:[#allocation2 + $0x158] sm:$0xff]
  %v646 = vld [vmem:[#allocation2 + $0x160] sm:$0xff]
  %v647 = vld [vmem:[#allocation2 + $0x168] sm:$0xff]
  %v648 = vld [vmem:[#allocation2 + $0x170] sm:$0xff]
  %v649 = vld [vmem:[#allocation2 + $0x178] sm:$0xff]
  %v650 = vadd.f32 %v602, %v484
  %v651 = vadd.f32 %v603, %v486
  %v652 = vadd.f32 %v604, %v488
  %v653 = vadd.f32 %v605, %v490
  %v654 = vadd.f32 %v606, %v494
  %v655 = vadd.f32 %v607, %v496
  %v656 = vadd.f32 %v608, %v498
  %v657 = vadd.f32 %v609, %v500
  %v658 = vadd.f32 %v610, %v504
  %v659 = vadd.f32 %v611, %v506
  %v660 = vadd.f32 %v612, %v508
  %v661 = vadd.f32 %v613, %v510
  %v662 = vadd.f32 %v614, %v514
  %v663 = vadd.f32 %v615, %v516
  %v664 = vadd.f32 %v616, %v518
  %v665 = vadd.f32 %v617, %v520
  %v666 = vadd.f32 %v618, %v524
  %v667 = vadd.f32 %v619, %v526
  %v668 = vadd.f32 %v620, %v528
  %v669 = vadd.f32 %v621, %v530
  %v670 = vadd.f32 %v622, %v534
  %v671 = vadd.f32 %v623, %v536
  %v672 = vadd.f32 %v624, %v538
  %v673 = vadd.f32 %v625, %v540
  %v674 = vadd.f32 %v626, %v544
  %v675 = vadd.f32 %v627, %v546
  %v676 = vadd.f32 %v628, %v548
  %v677 = vadd.f32 %v629, %v550
  %v678 = vadd.f32 %v630, %v554
  %v679 = vadd.f32 %v631, %v556
  %v680 = vadd.f32 %v632, %v558
  %v681 = vadd.f32 %v633, %v560
  %v682 = vadd.f32 %v634, %v564
  %v683 = vadd.f32 %v635, %v566
  %v684 = vadd.f32 %v636, %v568
  %v685 = vadd.f32 %v637, %v570
  %v686 = vadd.f32 %v638, %v574
  %v687 = vadd.f32 %v639, %v576
  %v688 = vadd.f32 %v640, %v578
  %v689 = vadd.f32 %v641, %v580
  %v690 = vadd.f32 %v642, %v584
  %v691 = vadd.f32 %v643, %v586
  %v692 = vadd.f32 %v644, %v588
  %v693 = vadd.f32 %v645, %v590
  %v694 = vadd.f32 %v646, %v594
  %v695 = vadd.f32 %v647, %v596
  %v696 = vadd.f32 %v648, %v598
  %v697 = vadd.f32 %v649, %v600
  %698 = vst [vmem:[#allocation2] sm:$0xff] %v650
  %699 = vst [vmem:[#allocation2 + $0x8] sm:$0xff] %v651
  %700 = vst [vmem:[#allocation2 + $0x10] sm:$0xff] %v652
  %701 = vst [vmem:[#allocation2 + $0x18] sm:$0xff] %v653
  %702 = vst [vmem:[#allocation2 + $0x20] sm:$0xff] %v654
  %703 = vst [vmem:[#allocation2 + $0x28] sm:$0xff] %v655
  %704 = vst [vmem:[#allocation2 + $0x30] sm:$0xff] %v656
  %705 = vst [vmem:[#allocation2 + $0x38] sm:$0xff] %v657
  %706 = vst [vmem:[#allocation2 + $0x40] sm:$0xff] %v658
  %707 = vst [vmem:[#allocation2 + $0x48] sm:$0xff] %v659
  %708 = vst [vmem:[#allocation2 + $0x50] sm:$0xff] %v660
  %709 = vst [vmem:[#allocation2 + $0x58] sm:$0xff] %v661
  %710 = vst [vmem:[#allocation2 + $0x60] sm:$0xff] %v662
  %711 = vst [vmem:[#allocation2 + $0x68] sm:$0xff] %v663
  %712 = vst [vmem:[#allocation2 + $0x70] sm:$0xff] %v664
  %713 = vst [vmem:[#allocation2 + $0x78] sm:$0xff] %v665
  %714 = vst [vmem:[#allocation2 + $0x80] sm:$0xff] %v666
  %715 = vst [vmem:[#allocation2 + $0x88] sm:$0xff] %v667
  %716 = vst [vmem:[#allocation2 + $0x90] sm:$0xff] %v668
  %717 = vst [vmem:[#allocation2 + $0x98] sm:$0xff] %v669
  %718 = vst [vmem:[#allocation2 + $0xa0] sm:$0xff] %v670
  %719 = vst [vmem:[#allocation2 + $0xa8] sm:$0xff] %v671
  %720 = vst [vmem:[#allocation2 + $0xb0] sm:$0xff] %v672
  %721 = vst [vmem:[#allocation2 + $0xb8] sm:$0xff] %v673
  %722 = vst [vmem:[#allocation2 + $0xc0] sm:$0xff] %v674
  %723 = vst [vmem:[#allocation2 + $0xc8] sm:$0xff] %v675
  %724 = vst [vmem:[#allocation2 + $0xd0] sm:$0xff] %v676
  %725 = vst [vmem:[#allocation2 + $0xd8] sm:$0xff] %v677
  %726 = vst [vmem:[#allocation2 + $0xe0] sm:$0xff] %v678
  %727 = vst [vmem:[#allocation2 + $0xe8] sm:$0xff] %v679
  %728 = vst [vmem:[#allocation2 + $0xf0] sm:$0xff] %v680
  %729 = vst [vmem:[#allocation2 + $0xf8] sm:$0xff] %v681
  %730 = vst [vmem:[#allocation2 + $0x100] sm:$0xff] %v682
  %731 = vst [vmem:[#allocation2 + $0x108] sm:$0xff] %v683
  %732 = vst [vmem:[#allocation2 + $0x110] sm:$0xff] %v684
  %733 = vst [vmem:[#allocation2 + $0x118] sm:$0xff] %v685
  %734 = vst [vmem:[#allocation2 + $0x120] sm:$0xff] %v686
  %735 = vst [vmem:[#allocation2 + $0x128] sm:$0xff] %v687
  %736 = vst [vmem:[#allocation2 + $0x130] sm:$0xff] %v688
  %737 = vst [vmem:[#allocation2 + $0x138] sm:$0xff] %v689
  %738 = vst [vmem:[#allocation2 + $0x140] sm:$0xff] %v690
  %739 = vst [vmem:[#allocation2 + $0x148] sm:$0xff] %v691
  %740 = vst [vmem:[#allocation2 + $0x150] sm:$0xff] %v692
  %741 = vst [vmem:[#allocation2 + $0x158] sm:$0xff] %v693
  %742 = vst [vmem:[#allocation2 + $0x160] sm:$0xff] %v694
  %743 = vst [vmem:[#allocation2 + $0x168] sm:$0xff] %v695
  %744 = vst [vmem:[#allocation2 + $0x170] sm:$0xff] %v696
  %745 = vst [vmem:[#allocation2 + $0x178] sm:$0xff] %v697
  %v746 = vld [vmem:[%s0 + $0x2] sm:$0xff]
  %v747 = vld [vmem:[%s0 + $0xa] sm:$0xff]
  %v748 = vld [vmem:[%s0 + $0x12] sm:$0xff]
  %v749 = vld [vmem:[%s0 + $0x22] sm:$0xff]
  %v750 = vld [vmem:[%s0 + $0x2a] sm:$0xff]
  %v751 = vld [vmem:[%s0 + $0x32] sm:$0xff]
  %v752 = vld [vmem:[%s0 + $0x42] sm:$0xff]
  %v753 = vld [vmem:[%s0 + $0x4a] sm:$0xff]
  %v754 = vld [vmem:[%s0 + $0x52] sm:$0xff]
  %v755 = vld [vmem:[%s0 + $0x62] sm:$0xff]
  %v756 = vld [vmem:[%s0 + $0x6a] sm:$0xff]
  %v757 = vld [vmem:[%s0 + $0x72] sm:$0xff]
  %v758 = vld [vmem:[%s0 + $0x82] sm:$0xff]
  %v759 = vld [vmem:[%s0 + $0x8a] sm:$0xff]
  %v760 = vld [vmem:[%s0 + $0x92] sm:$0xff]
  %v761 = vld [vmem:[%s0 + $0xa2] sm:$0xff]
  %v762 = vld [vmem:[%s0 + $0xaa] sm:$0xff]
  %v763 = vld [vmem:[%s0 + $0xb2] sm:$0xff]
  %v764 = vld [vmem:[%s0 + $0xc2] sm:$0xff]
  %v765 = vld [vmem:[%s0 + $0xca] sm:$0xff]
  %v766 = vld [vmem:[%s0 + $0xd2] sm:$0xff]
  %v767 = vld [vmem:[%s0 + $0xe2] sm:$0xff]
  %v768 = vld [vmem:[%s0 + $0xea] sm:$0xff]
  %v769 = vld [vmem:[%s0 + $0xf2] sm:$0xff]
  %v770 = vpack.c.bf16 %v747, %v746
  %v771 = vpack.c.bf16 %v749, %v748
  %v772 = vpack.c.bf16 %v751, %v750
  %v773 = vpack.c.bf16 %v753, %v752
  %v774 = vpack.c.bf16 %v755, %v754
  %v775 = vpack.c.bf16 %v757, %v756
  %v776 = vpack.c.bf16 %v759, %v758
  %v777 = vpack.c.bf16 %v761, %v760
  %v778 = vpack.c.bf16 %v763, %v762
  %v779 = vpack.c.bf16 %v765, %v764
  %v780 = vpack.c.bf16 %v767, %v766
  %v781 = vpack.c.bf16 %v769, %v768
  %s782 = scalar_lea.vmem %s1, 64
  %v783 = vld [vmem:[%s782] sm:$0xff]
  %v784 = vld [vmem:[%s782 + $0x8] sm:$0xff]
  %v785 = vld [vmem:[%s782 + $0x10] sm:$0xff]
  %v786 = vld [vmem:[%s782 + $0x18] sm:$0x33]
  %v791 = vunpack.c.l.b16 %v783
  %v792 = vunpack.c.h.b16 %v783
  %v793 = vunpack.c.l.b16 %v784
  %v794 = vunpack.c.h.b16 %v784
  %v795 = vunpack.c.l.b16 %v785
  %v796 = vunpack.c.h.b16 %v785
  %v797 = vunpack.c.l.b16 %v786
  %v798 = vunpack.c.h.b16 %v786
  %v799 = vpack.c.b16 %v793, %v791
  %v800 = vpack.c.b16 %v794, %v792
  %v801 = vpack.c.b16 %v797, %v795
  %v802 = vpack.c.b16 %v798, %v796
  %v806 = vsel %vm103, %v770, 0
  %v809 = vsel %vm103, %v771, 0
  %v812 = vsel %vm103, %v772, 0
  %v815 = vsel %vm103, %v773, 0
  %v818 = vsel %vm103, %v774, 0
  %v821 = vsel %vm103, %v775, 0
  %v824 = vsel %vm103, %v776, 0
  %v827 = vsel %vm103, %v777, 0
  %v830 = vsel %vm103, %v778, 0
  %v833 = vsel %vm103, %v779, 0
  %v836 = vsel %vm103, %v780, 0
  %v839 = vsel %vm103, %v781, 0
  %v842 = vsel %vm140, %v801, 0
  %v845 = vsel %vm140, %v802, 0
  %847 = vmatprep.subr.bf16.mxu0 0
  %848 = vmatpush1.bf16.msra.mxu0 0
  %849 = vmatprep.subr.bf16.mxu0 0
  %850 = vmatpush1.bf16.msra.mxu0 0
  %851 = vmatprep.subr.bf16.mxu0 0
  %852 = vmatpush1.bf16.msra.mxu0 0
  %853 = vmatprep.subr.bf16.mxu0 0
  %854 = vmatpush1.bf16.msra.mxu0 0
  %855 = vmatprep.subr.bf16.mxu0 0
  %856 = vmatpush1.bf16.msra.mxu0 0
  %857 = vmatprep.subr.bf16.mxu0 0
  %858 = vmatpush1.bf16.msra.mxu0 0
  %859 = vmatprep.subr.bf16.mxu0 %v845
  %860 = vmatpush1.bf16.msra.mxu0 %v842
  %861 = vmatprep.subr.bf16.mxu0 %v800
  %862 = vmatpush1.bf16.msra.mxu0 %v799
  %863 = vmatprep.subr.bf16.mxu0 0
  %864 = vmatpush2.bf16.msra.mxu0 0
  %865 = vmatprep.subr.bf16.mxu0 0
  %866 = vmatpush2.bf16.msra.mxu0 0
  %867 = vmatprep.subr.bf16.mxu0 0
  %868 = vmatpush2.bf16.msra.mxu0 0
  %869 = vmatprep.subr.bf16.mxu0 0
  %870 = vmatpush2.bf16.msra.mxu0 0
  %871 = vmatprep.subr.bf16.mxu0 0
  %872 = vmatpush2.bf16.msra.mxu0 0
  %873 = vmatprep.subr.bf16.mxu0 0
  %874 = vmatpush2.bf16.msra.mxu0 0
  %875 = vmatprep.subr.bf16.mxu0 0
  %876 = vmatpush2.bf16.msra.mxu0 0
  %877 = vmatprep.subr.bf16.mxu0 0
  %878 = vmatpush2.bf16.msra.mxu0 0
  %879 = vmatprep.mubr.bf16.mxu0 0
  %880 = vmatmul.mubr.bf16.gmra.mxu0 %v806
  %v881 = vpop.f32.mrf.mxu0
  %v882 = vadd.f32 0.0, %v881
  %v883 = vpop.f32.mrf.mxu0
  %v884 = vadd.f32 0.0, %v883
  %v885 = vpop.f32.mrf.mxu0
  %v886 = vadd.f32 0.0, %v885
  %v887 = vpop.f32.mrf.mxu0
  %v888 = vadd.f32 0.0, %v887
  %889 = vmatprep.mubr.bf16.mxu0 0
  %890 = vmatmul.mubr.bf16.gmra.mxu0 %v809
  %v891 = vpop.f32.mrf.mxu0
  %v892 = vadd.f32 0.0, %v891
  %v893 = vpop.f32.mrf.mxu0
  %v894 = vadd.f32 0.0, %v893
  %v895 = vpop.f32.mrf.mxu0
  %v896 = vadd.f32 0.0, %v895
  %v897 = vpop.f32.mrf.mxu0
  %v898 = vadd.f32 0.0, %v897
  %899 = vmatprep.mubr.bf16.mxu0 0
  %900 = vmatmul.mubr.bf16.gmra.mxu0 %v812
  %v901 = vpop.f32.mrf.mxu0
  %v902 = vadd.f32 0.0, %v901
  %v903 = vpop.f32.mrf.mxu0
  %v904 = vadd.f32 0.0, %v903
  %v905 = vpop.f32.mrf.mxu0
  %v906 = vadd.f32 0.0, %v905
  %v907 = vpop.f32.mrf.mxu0
  %v908 = vadd.f32 0.0, %v907
  %909 = vmatprep.mubr.bf16.mxu0 0
  %910 = vmatmul.mubr.bf16.gmra.mxu0 %v815
  %v911 = vpop.f32.mrf.mxu0
  %v912 = vadd.f32 0.0, %v911
  %v913 = vpop.f32.mrf.mxu0
  %v914 = vadd.f32 0.0, %v913
  %v915 = vpop.f32.mrf.mxu0
  %v916 = vadd.f32 0.0, %v915
  %v917 = vpop.f32.mrf.mxu0
  %v918 = vadd.f32 0.0, %v917
  %919 = vmatprep.mubr.bf16.mxu0 0
  %920 = vmatmul.mubr.bf16.gmra.mxu0 %v818
  %v921 = vpop.f32.mrf.mxu0
  %v922 = vadd.f32 0.0, %v921
  %v923 = vpop.f32.mrf.mxu0
  %v924 = vadd.f32 0.0, %v923
  %v925 = vpop.f32.mrf.mxu0
  %v926 = vadd.f32 0.0, %v925
  %v927 = vpop.f32.mrf.mxu0
  %v928 = vadd.f32 0.0, %v927
  %929 = vmatprep.mubr.bf16.mxu0 0
  %930 = vmatmul.mubr.bf16.gmra.mxu0 %v821
  %v931 = vpop.f32.mrf.mxu0
  %v932 = vadd.f32 0.0, %v931
  %v933 = vpop.f32.mrf.mxu0
  %v934 = vadd.f32 0.0, %v933
  %v935 = vpop.f32.mrf.mxu0
  %v936 = vadd.f32 0.0, %v935
  %v937 = vpop.f32.mrf.mxu0
  %v938 = vadd.f32 0.0, %v937
  %939 = vmatprep.mubr.bf16.mxu0 0
  %940 = vmatmul.mubr.bf16.gmra.mxu0 %v824
  %v941 = vpop.f32.mrf.mxu0
  %v942 = vadd.f32 0.0, %v941
  %v943 = vpop.f32.mrf.mxu0
  %v944 = vadd.f32 0.0, %v943
  %v945 = vpop.f32.mrf.mxu0
  %v946 = vadd.f32 0.0, %v945
  %v947 = vpop.f32.mrf.mxu0
  %v948 = vadd.f32 0.0, %v947
  %949 = vmatprep.mubr.bf16.mxu0 0
  %950 = vmatmul.mubr.bf16.gmra.mxu0 %v827
  %v951 = vpop.f32.mrf.mxu0
  %v952 = vadd.f32 0.0, %v951
  %v953 = vpop.f32.mrf.mxu0
  %v954 = vadd.f32 0.0, %v953
  %v955 = vpop.f32.mrf.mxu0
  %v956 = vadd.f32 0.0, %v955
  %v957 = vpop.f32.mrf.mxu0
  %v958 = vadd.f32 0.0, %v957
  %959 = vmatprep.mubr.bf16.mxu0 0
  %960 = vmatmul.mubr.bf16.gmra.mxu0 %v830
  %v961 = vpop.f32.mrf.mxu0
  %v962 = vadd.f32 0.0, %v961
  %v963 = vpop.f32.mrf.mxu0
  %v964 = vadd.f32 0.0, %v963
  %v965 = vpop.f32.mrf.mxu0
  %v966 = vadd.f32 0.0, %v965
  %v967 = vpop.f32.mrf.mxu0
  %v968 = vadd.f32 0.0, %v967
  %969 = vmatprep.mubr.bf16.mxu0 0
  %970 = vmatmul.mubr.bf16.gmra.mxu0 %v833
  %v971 = vpop.f32.mrf.mxu0
  %v972 = vadd.f32 0.0, %v971
  %v973 = vpop.f32.mrf.mxu0
  %v974 = vadd.f32 0.0, %v973
  %v975 = vpop.f32.mrf.mxu0
  %v976 = vadd.f32 0.0, %v975
  %v977 = vpop.f32.mrf.mxu0
  %v978 = vadd.f32 0.0, %v977
  %979 = vmatprep.mubr.bf16.mxu0 0
  %980 = vmatmul.mubr.bf16.gmra.mxu0 %v836
  %v981 = vpop.f32.mrf.mxu0
  %v982 = vadd.f32 0.0, %v981
  %v983 = vpop.f32.mrf.mxu0
  %v984 = vadd.f32 0.0, %v983
  %v985 = vpop.f32.mrf.mxu0
  %v986 = vadd.f32 0.0, %v985
  %v987 = vpop.f32.mrf.mxu0
  %v988 = vadd.f32 0.0, %v987
  %989 = vmatprep.mubr.bf16.mxu0 0
  %990 = vmatmul.mubr.bf16.gmra.mxu0 %v839
  %v991 = vpop.f32.mrf.mxu0
  %v992 = vadd.f32 0.0, %v991
  %v993 = vpop.f32.mrf.mxu0
  %v994 = vadd.f32 0.0, %v993
  %v995 = vpop.f32.mrf.mxu0
  %v996 = vadd.f32 0.0, %v995
  %v997 = vpop.f32.mrf.mxu0
  %v998 = vadd.f32 0.0, %v997
  %999 = vdwg.mxu0
  %v1000 = vld [vmem:[#allocation2] sm:$0xff]
  %v1001 = vld [vmem:[#allocation2 + $0x8] sm:$0xff]
  %v1002 = vld [vmem:[#allocation2 + $0x10] sm:$0xff]
  %v1003 = vld [vmem:[#allocation2 + $0x18] sm:$0xff]
  %v1004 = vld [vmem:[#allocation2 + $0x20] sm:$0xff]
  %v1005 = vld [vmem:[#allocation2 + $0x28] sm:$0xff]
  %v1006 = vld [vmem:[#allocation2 + $0x30] sm:$0xff]
  %v1007 = vld [vmem:[#allocation2 + $0x38] sm:$0xff]
  %v1008 = vld [vmem:[#allocation2 + $0x40] sm:$0xff]
  %v1009 = vld [vmem:[#allocation2 + $0x48] sm:$0xff]
  %v1010 = vld [vmem:[#allocation2 + $0x50] sm:$0xff]
  %v1011 = vld [vmem:[#allocation2 + $0x58] sm:$0xff]
  %v1012 = vld [vmem:[#allocation2 + $0x60] sm:$0xff]
  %v1013 = vld [vmem:[#allocation2 + $0x68] sm:$0xff]
  %v1014 = vld [vmem:[#allocation2 + $0x70] sm:$0xff]
  %v1015 = vld [vmem:[#allocation2 + $0x78] sm:$0xff]
  %v1016 = vld [vmem:[#allocation2 + $0x80] sm:$0xff]
  %v1017 = vld [vmem:[#allocation2 + $0x88] sm:$0xff]
  %v1018 = vld [vmem:[#allocation2 + $0x90] sm:$0xff]
  %v1019 = vld [vmem:[#allocation2 + $0x98] sm:$0xff]
  %v1020 = vld [vmem:[#allocation2 + $0xa0] sm:$0xff]
  %v1021 = vld [vmem:[#allocation2 + $0xa8] sm:$0xff]
  %v1022 = vld [vmem:[#allocation2 + $0xb0] sm:$0xff]
  %v1023 = vld [vmem:[#allocation2 + $0xb8] sm:$0xff]
  %v1024 = vld [vmem:[#allocation2 + $0xc0] sm:$0xff]
  %v1025 = vld [vmem:[#allocation2 + $0xc8] sm:$0xff]
  %v1026 = vld [vmem:[#allocation2 + $0xd0] sm:$0xff]
  %v1027 = vld [vmem:[#allocation2 + $0xd8] sm:$0xff]
  %v1028 = vld [vmem:[#allocation2 + $0xe0] sm:$0xff]
  %v1029 = vld [vmem:[#allocation2 + $0xe8] sm:$0xff]
  %v1030 = vld [vmem:[#allocation2 + $0xf0] sm:$0xff]
  %v1031 = vld [vmem:[#allocation2 + $0xf8] sm:$0xff]
  %v1032 = vld [vmem:[#allocation2 + $0x100] sm:$0xff]
  %v1033 = vld [vmem:[#allocation2 + $0x108] sm:$0xff]
  %v1034 = vld [vmem:[#allocation2 + $0x110] sm:$0xff]
  %v1035 = vld [vmem:[#allocation2 + $0x118] sm:$0xff]
  %v1036 = vld [vmem:[#allocation2 + $0x120] sm:$0xff]
  %v1037 = vld [vmem:[#allocation2 + $0x128] sm:$0xff]
  %v1038 = vld [vmem:[#allocation2 + $0x130] sm:$0xff]
  %v1039 = vld [vmem:[#allocation2 + $0x138] sm:$0xff]
  %v1040 = vld [vmem:[#allocation2 + $0x140] sm:$0xff]
  %v1041 = vld [vmem:[#allocation2 + $0x148] sm:$0xff]
  %v1042 = vld [vmem:[#allocation2 + $0x150] sm:$0xff]
  %v1043 = vld [vmem:[#allocation2 + $0x158] sm:$0xff]
  %v1044 = vld [vmem:[#allocation2 + $0x160] sm:$0xff]
  %v1045 = vld [vmem:[#allocation2 + $0x168] sm:$0xff]
  %v1046 = vld [vmem:[#allocation2 + $0x170] sm:$0xff]
  %v1047 = vld [vmem:[#allocation2 + $0x178] sm:$0xff]
  %v1048 = vadd.f32 %v1000, %v882
  %v1049 = vadd.f32 %v1001, %v884
  %v1050 = vadd.f32 %v1002, %v886
  %v1051 = vadd.f32 %v1003, %v888
  %v1052 = vadd.f32 %v1004, %v892
  %v1053 = vadd.f32 %v1005, %v894
  %v1054 = vadd.f32 %v1006, %v896
  %v1055 = vadd.f32 %v1007, %v898
  %v1056 = vadd.f32 %v1008, %v902
  %v1057 = vadd.f32 %v1009, %v904
  %v1058 = vadd.f32 %v1010, %v906
  %v1059 = vadd.f32 %v1011, %v908
  %v1060 = vadd.f32 %v1012, %v912
  %v1061 = vadd.f32 %v1013, %v914
  %v1062 = vadd.f32 %v1014, %v916
  %v1063 = vadd.f32 %v1015, %v918
  %v1064 = vadd.f32 %v1016, %v922
  %v1065 = vadd.f32 %v1017, %v924
  %v1066 = vadd.f32 %v1018, %v926
  %v1067 = vadd.f32 %v1019, %v928
  %v1068 = vadd.f32 %v1020, %v932
  %v1069 = vadd.f32 %v1021, %v934
  %v1070 = vadd.f32 %v1022, %v936
  %v1071 = vadd.f32 %v1023, %v938
  %v1072 = vadd.f32 %v1024, %v942
  %v1073 = vadd.f32 %v1025, %v944
  %v1074 = vadd.f32 %v1026, %v946
  %v1075 = vadd.f32 %v1027, %v948
  %v1076 = vadd.f32 %v1028, %v952
  %v1077 = vadd.f32 %v1029, %v954
  %v1078 = vadd.f32 %v1030, %v956
  %v1079 = vadd.f32 %v1031, %v958
  %v1080 = vadd.f32 %v1032, %v962
  %v1081 = vadd.f32 %v1033, %v964
  %v1082 = vadd.f32 %v1034, %v966
  %v1083 = vadd.f32 %v1035, %v968
  %v1084 = vadd.f32 %v1036, %v972
  %v1085 = vadd.f32 %v1037, %v974
  %v1086 = vadd.f32 %v1038, %v976
  %v1087 = vadd.f32 %v1039, %v978
  %v1088 = vadd.f32 %v1040, %v982
  %v1089 = vadd.f32 %v1041, %v984
  %v1090 = vadd.f32 %v1042, %v986
  %v1091 = vadd.f32 %v1043, %v988
  %v1092 = vadd.f32 %v1044, %v992
  %v1093 = vadd.f32 %v1045, %v994
  %v1094 = vadd.f32 %v1046, %v996
  %v1095 = vadd.f32 %v1047, %v998
  %1096 = vst [vmem:[#allocation2] sm:$0xff] %v1048
  %1097 = vst [vmem:[#allocation2 + $0x8] sm:$0xff] %v1049
  %1098 = vst [vmem:[#allocation2 + $0x10] sm:$0xff] %v1050
  %1099 = vst [vmem:[#allocation2 + $0x18] sm:$0xff] %v1051
  %1100 = vst [vmem:[#allocation2 + $0x20] sm:$0xff] %v1052
  %1101 = vst [vmem:[#allocation2 + $0x28] sm:$0xff] %v1053
  %1102 = vst [vmem:[#allocation2 + $0x30] sm:$0xff] %v1054
  %1103 = vst [vmem:[#allocation2 + $0x38] sm:$0xff] %v1055
  %1104 = vst [vmem:[#allocation2 + $0x40] sm:$0xff] %v1056
  %1105 = vst [vmem:[#allocation2 + $0x48] sm:$0xff] %v1057
  %1106 = vst [vmem:[#allocation2 + $0x50] sm:$0xff] %v1058
  %1107 = vst [vmem:[#allocation2 + $0x58] sm:$0xff] %v1059
  %1108 = vst [vmem:[#allocation2 + $0x60] sm:$0xff] %v1060
  %1109 = vst [vmem:[#allocation2 + $0x68] sm:$0xff] %v1061
  %1110 = vst [vmem:[#allocation2 + $0x70] sm:$0xff] %v1062
  %1111 = vst [vmem:[#allocation2 + $0x78] sm:$0xff] %v1063
  %1112 = vst [vmem:[#allocation2 + $0x80] sm:$0xff] %v1064
  %1113 = vst [vmem:[#allocation2 + $0x88] sm:$0xff] %v1065
  %1114 = vst [vmem:[#allocation2 + $0x90] sm:$0xff] %v1066
  %1115 = vst [vmem:[#allocation2 + $0x98] sm:$0xff] %v1067
  %1116 = vst [vmem:[#allocation2 + $0xa0] sm:$0xff] %v1068
  %1117 = vst [vmem:[#allocation2 + $0xa8] sm:$0xff] %v1069
  %1118 = vst [vmem:[#allocation2 + $0xb0] sm:$0xff] %v1070
  %1119 = vst [vmem:[#allocation2 + $0xb8] sm:$0xff] %v1071
  %1120 = vst [vmem:[#allocation2 + $0xc0] sm:$0xff] %v1072
  %1121 = vst [vmem:[#allocation2 + $0xc8] sm:$0xff] %v1073
  %1122 = vst [vmem:[#allocation2 + $0xd0] sm:$0xff] %v1074
  %1123 = vst [vmem:[#allocation2 + $0xd8] sm:$0xff] %v1075
  %1124 = vst [vmem:[#allocation2 + $0xe0] sm:$0xff] %v1076
  %1125 = vst [vmem:[#allocation2 + $0xe8] sm:$0xff] %v1077
  %1126 = vst [vmem:[#allocation2 + $0xf0] sm:$0xff] %v1078
  %1127 = vst [vmem:[#allocation2 + $0xf8] sm:$0xff] %v1079
  %1128 = vst [vmem:[#allocation2 + $0x100] sm:$0xff] %v1080
  %1129 = vst [vmem:[#allocation2 + $0x108] sm:$0xff] %v1081
  %1130 = vst [vmem:[#allocation2 + $0x110] sm:$0xff] %v1082
  %1131 = vst [vmem:[#allocation2 + $0x118] sm:$0xff] %v1083
  %1132 = vst [vmem:[#allocation2 + $0x120] sm:$0xff] %v1084
  %1133 = vst [vmem:[#allocation2 + $0x128] sm:$0xff] %v1085
  %1134 = vst [vmem:[#allocation2 + $0x130] sm:$0xff] %v1086
  %1135 = vst [vmem:[#allocation2 + $0x138] sm:$0xff] %v1087
  %1136 = vst [vmem:[#allocation2 + $0x140] sm:$0xff] %v1088
  %1137 = vst [vmem:[#allocation2 + $0x148] sm:$0xff] %v1089
  %1138 = vst [vmem:[#allocation2 + $0x150] sm:$0xff] %v1090
  %1139 = vst [vmem:[#allocation2 + $0x158] sm:$0xff] %v1091
  %1140 = vst [vmem:[#allocation2 + $0x160] sm:$0xff] %v1092
  %1141 = vst [vmem:[#allocation2 + $0x168] sm:$0xff] %v1093
  %1142 = vst [vmem:[#allocation2 + $0x170] sm:$0xff] %v1094
  %1143 = vst [vmem:[#allocation2 + $0x178] sm:$0xff] %v1095
  %v1144 = vld [vmem:[%s0 + $0x3] sm:$0xff]
  %v1145 = vld [vmem:[%s0 + $0xb] sm:$0xff]
  %v1146 = vld [vmem:[%s0 + $0x13] sm:$0xff]
  %v1147 = vld [vmem:[%s0 + $0x23] sm:$0xff]
  %v1148 = vld [vmem:[%s0 + $0x2b] sm:$0xff]
  %v1149 = vld [vmem:[%s0 + $0x33] sm:$0xff]
  %v1150 = vld [vmem:[%s0 + $0x43] sm:$0xff]
  %v1151 = vld [vmem:[%s0 + $0x4b] sm:$0xff]
  %v1152 = vld [vmem:[%s0 + $0x53] sm:$0xff]
  %v1153 = vld [vmem:[%s0 + $0x63] sm:$0xff]
  %v1154 = vld [vmem:[%s0 + $0x6b] sm:$0xff]
  %v1155 = vld [vmem:[%s0 + $0x73] sm:$0xff]
  %v1156 = vld [vmem:[%s0 + $0x83] sm:$0xff]
  %v1157 = vld [vmem:[%s0 + $0x8b] sm:$0xff]
  %v1158 = vld [vmem:[%s0 + $0x93] sm:$0xff]
  %v1159 = vld [vmem:[%s0 + $0xa3] sm:$0xff]
  %v1160 = vld [vmem:[%s0 + $0xab] sm:$0xff]
  %v1161 = vld [vmem:[%s0 + $0xb3] sm:$0xff]
  %v1162 = vld [vmem:[%s0 + $0xc3] sm:$0xff]
  %v1163 = vld [vmem:[%s0 + $0xcb] sm:$0xff]
  %v1164 = vld [vmem:[%s0 + $0xd3] sm:$0xff]
  %v1165 = vld [vmem:[%s0 + $0xe3] sm:$0xff]
  %v1166 = vld [vmem:[%s0 + $0xeb] sm:$0xff]
  %v1167 = vld [vmem:[%s0 + $0xf3] sm:$0xff]
  %v1168 = vpack.c.bf16 %v1145, %v1144
  %v1169 = vpack.c.bf16 %v1147, %v1146
  %v1170 = vpack.c.bf16 %v1149, %v1148
  %v1171 = vpack.c.bf16 %v1151, %v1150
  %v1172 = vpack.c.bf16 %v1153, %v1152
  %v1173 = vpack.c.bf16 %v1155, %v1154
  %v1174 = vpack.c.bf16 %v1157, %v1156
  %v1175 = vpack.c.bf16 %v1159, %v1158
  %v1176 = vpack.c.bf16 %v1161, %v1160
  %v1177 = vpack.c.bf16 %v1163, %v1162
  %v1178 = vpack.c.bf16 %v1165, %v1164
  %v1179 = vpack.c.bf16 %v1167, %v1166
  %s1180 = scalar_lea.vmem %s1, 96
  %v1181 = vld [vmem:[%s1180] sm:$0xff]
  %v1182 = vld [vmem:[%s1180 + $0x8] sm:$0xff]
  %v1183 = vld [vmem:[%s1180 + $0x10] sm:$0xff]
  %v1184 = vld [vmem:[%s1180 + $0x18] sm:$0x33]
  %v1189 = vunpack.c.l.b16 %v1181
  %v1190 = vunpack.c.h.b16 %v1181
  %v1191 = vunpack.c.l.b16 %v1182
  %v1192 = vunpack.c.h.b16 %v1182
  %v1193 = vunpack.c.l.b16 %v1183
  %v1194 = vunpack.c.h.b16 %v1183
  %v1195 = vunpack.c.l.b16 %v1184
  %v1196 = vunpack.c.h.b16 %v1184
  %v1197 = vpack.c.b16 %v1191, %v1189
  %v1198 = vpack.c.b16 %v1192, %v1190
  %v1199 = vpack.c.b16 %v1195, %v1193
  %v1200 = vpack.c.b16 %v1196, %v1194
  %v1204 = vsel %vm103, %v1168, 0
  %v1207 = vsel %vm103, %v1169, 0
  %v1210 = vsel %vm103, %v1170, 0
  %v1213 = vsel %vm103, %v1171, 0
  %v1216 = vsel %vm103, %v1172, 0
  %v1219 = vsel %vm103, %v1173, 0
  %v1222 = vsel %vm103, %v1174, 0
  %v1225 = vsel %vm103, %v1175, 0
  %v1228 = vsel %vm103, %v1176, 0
  %v1231 = vsel %vm103, %v1177, 0
  %v1234 = vsel %vm103, %v1178, 0
  %v1237 = vsel %vm103, %v1179, 0
  %v1240 = vsel %vm140, %v1199, 0
  %v1243 = vsel %vm140, %v1200, 0
  %1245 = vmatprep.subr.bf16.mxu0 0
  %1246 = vmatpush1.bf16.msra.mxu0 0
  %1247 = vmatprep.subr.bf16.mxu0 0
  %1248 = vmatpush1.bf16.msra.mxu0 0
  %1249 = vmatprep.subr.bf16.mxu0 0
  %1250 = vmatpush1.bf16.msra.mxu0 0
  %1251 = vmatprep.subr.bf16.mxu0 0
  %1252 = vmatpush1.bf16.msra.mxu0 0
  %1253 = vmatprep.subr.bf16.mxu0 0
  %1254 = vmatpush1.bf16.msra.mxu0 0
  %1255 = vmatprep.subr.bf16.mxu0 0
  %1256 = vmatpush1.bf16.msra.mxu0 0
  %1257 = vmatprep.subr.bf16.mxu0 %v1243
  %1258 = vmatpush1.bf16.msra.mxu0 %v1240
  %1259 = vmatprep.subr.bf16.mxu0 %v1198
  %1260 = vmatpush1.bf16.msra.mxu0 %v1197
  %1261 = vmatprep.subr.bf16.mxu0 0
  %1262 = vmatpush2.bf16.msra.mxu0 0
  %1263 = vmatprep.subr.bf16.mxu0 0
  %1264 = vmatpush2.bf16.msra.mxu0 0
  %1265 = vmatprep.subr.bf16.mxu0 0
  %1266 = vmatpush2.bf16.msra.mxu0 0
  %1267 = vmatprep.subr.bf16.mxu0 0
  %1268 = vmatpush2.bf16.msra.mxu0 0
  %1269 = vmatprep.subr.bf16.mxu0 0
  %1270 = vmatpush2.bf16.msra.mxu0 0
  %1271 = vmatprep.subr.bf16.mxu0 0
  %1272 = vmatpush2.bf16.msra.mxu0 0
  %1273 = vmatprep.subr.bf16.mxu0 0
  %1274 = vmatpush2.bf16.msra.mxu0 0
  %1275 = vmatprep.subr.bf16.mxu0 0
  %1276 = vmatpush2.bf16.msra.mxu0 0
  %1277 = vmatprep.mubr.bf16.mxu0 0
  %1278 = vmatmul.mubr.bf16.gmra.mxu0 %v1204
  %v1279 = vpop.f32.mrf.mxu0
  %v1280 = vadd.f32 0.0, %v1279
  %v1281 = vpop.f32.mrf.mxu0
  %v1282 = vadd.f32 0.0, %v1281
  %v1283 = vpop.f32.mrf.mxu0
  %v1284 = vadd.f32 0.0, %v1283
  %v1285 = vpop.f32.mrf.mxu0
  %v1286 = vadd.f32 0.0, %v1285
  %1287 = vmatprep.mubr.bf16.mxu0 0
  %1288 = vmatmul.mubr.bf16.gmra.mxu0 %v1207
  %v1289 = vpop.f32.mrf.mxu0
  %v1290 = vadd.f32 0.0, %v1289
  %v1291 = vpop.f32.mrf.mxu0
  %v1292 = vadd.f32 0.0, %v1291
  %v1293 = vpop.f32.mrf.mxu0
  %v1294 = vadd.f32 0.0, %v1293
  %v1295 = vpop.f32.mrf.mxu0
  %v1296 = vadd.f32 0.0, %v1295
  %1297 = vmatprep.mubr.bf16.mxu0 0
  %1298 = vmatmul.mubr.bf16.gmra.mxu0 %v1210
  %v1299 = vpop.f32.mrf.mxu0
  %v1300 = vadd.f32 0.0, %v1299
  %v1301 = vpop.f32.mrf.mxu0
  %v1302 = vadd.f32 0.0, %v1301
  %v1303 = vpop.f32.mrf.mxu0
  %v1304 = vadd.f32 0.0, %v1303
  %v1305 = vpop.f32.mrf.mxu0
  %v1306 = vadd.f32 0.0, %v1305
  %1307 = vmatprep.mubr.bf16.mxu0 0
  %1308 = vmatmul.mubr.bf16.gmra.mxu0 %v1213
  %v1309 = vpop.f32.mrf.mxu0
  %v1310 = vadd.f32 0.0, %v1309
  %v1311 = vpop.f32.mrf.mxu0
  %v1312 = vadd.f32 0.0, %v1311
  %v1313 = vpop.f32.mrf.mxu0
  %v1314 = vadd.f32 0.0, %v1313
  %v1315 = vpop.f32.mrf.mxu0
  %v1316 = vadd.f32 0.0, %v1315
  %1317 = vmatprep.mubr.bf16.mxu0 0
  %1318 = vmatmul.mubr.bf16.gmra.mxu0 %v1216
  %v1319 = vpop.f32.mrf.mxu0
  %v1320 = vadd.f32 0.0, %v1319
  %v1321 = vpop.f32.mrf.mxu0
  %v1322 = vadd.f32 0.0, %v1321
  %v1323 = vpop.f32.mrf.mxu0
  %v1324 = vadd.f32 0.0, %v1323
  %v1325 = vpop.f32.mrf.mxu0
  %v1326 = vadd.f32 0.0, %v1325
  %1327 = vmatprep.mubr.bf16.mxu0 0
  %1328 = vmatmul.mubr.bf16.gmra.mxu0 %v1219
  %v1329 = vpop.f32.mrf.mxu0
  %v1330 = vadd.f32 0.0, %v1329
  %v1331 = vpop.f32.mrf.mxu0
  %v1332 = vadd.f32 0.0, %v1331
  %v1333 = vpop.f32.mrf.mxu0
  %v1334 = vadd.f32 0.0, %v1333
  %v1335 = vpop.f32.mrf.mxu0
  %v1336 = vadd.f32 0.0, %v1335
  %1337 = vmatprep.mubr.bf16.mxu0 0
  %1338 = vmatmul.mubr.bf16.gmra.mxu0 %v1222
  %v1339 = vpop.f32.mrf.mxu0
  %v1340 = vadd.f32 0.0, %v1339
  %v1341 = vpop.f32.mrf.mxu0
  %v1342 = vadd.f32 0.0, %v1341
  %v1343 = vpop.f32.mrf.mxu0
  %v1344 = vadd.f32 0.0, %v1343
  %v1345 = vpop.f32.mrf.mxu0
  %v1346 = vadd.f32 0.0, %v1345
  %1347 = vmatprep.mubr.bf16.mxu0 0
  %1348 = vmatmul.mubr.bf16.gmra.mxu0 %v1225
  %v1349 = vpop.f32.mrf.mxu0
  %v1350 = vadd.f32 0.0, %v1349
  %v1351 = vpop.f32.mrf.mxu0
  %v1352 = vadd.f32 0.0, %v1351
  %v1353 = vpop.f32.mrf.mxu0
  %v1354 = vadd.f32 0.0, %v1353
  %v1355 = vpop.f32.mrf.mxu0
  %v1356 = vadd.f32 0.0, %v1355
  %1357 = vmatprep.mubr.bf16.mxu0 0
  %1358 = vmatmul.mubr.bf16.gmra.mxu0 %v1228
  %v1359 = vpop.f32.mrf.mxu0
  %v1360 = vadd.f32 0.0, %v1359
  %v1361 = vpop.f32.mrf.mxu0
  %v1362 = vadd.f32 0.0, %v1361
  %v1363 = vpop.f32.mrf.mxu0
  %v1364 = vadd.f32 0.0, %v1363
  %v1365 = vpop.f32.mrf.mxu0
  %v1366 = vadd.f32 0.0, %v1365
  %1367 = vmatprep.mubr.bf16.mxu0 0
  %1368 = vmatmul.mubr.bf16.gmra.mxu0 %v1231
  %v1369 = vpop.f32.mrf.mxu0
  %v1370 = vadd.f32 0.0, %v1369
  %v1371 = vpop.f32.mrf.mxu0
  %v1372 = vadd.f32 0.0, %v1371
  %v1373 = vpop.f32.mrf.mxu0
  %v1374 = vadd.f32 0.0, %v1373
  %v1375 = vpop.f32.mrf.mxu0
  %v1376 = vadd.f32 0.0, %v1375
  %1377 = vmatprep.mubr.bf16.mxu0 0
  %1378 = vmatmul.mubr.bf16.gmra.mxu0 %v1234
  %v1379 = vpop.f32.mrf.mxu0
  %v1380 = vadd.f32 0.0, %v1379
  %v1381 = vpop.f32.mrf.mxu0
  %v1382 = vadd.f32 0.0, %v1381
  %v1383 = vpop.f32.mrf.mxu0
  %v1384 = vadd.f32 0.0, %v1383
  %v1385 = vpop.f32.mrf.mxu0
  %v1386 = vadd.f32 0.0, %v1385
  %1387 = vmatprep.mubr.bf16.mxu0 0
  %1388 = vmatmul.mubr.bf16.gmra.mxu0 %v1237
  %v1389 = vpop.f32.mrf.mxu0
  %v1390 = vadd.f32 0.0, %v1389
  %v1391 = vpop.f32.mrf.mxu0
  %v1392 = vadd.f32 0.0, %v1391
  %v1393 = vpop.f32.mrf.mxu0
  %v1394 = vadd.f32 0.0, %v1393
  %v1395 = vpop.f32.mrf.mxu0
  %v1396 = vadd.f32 0.0, %v1395
  %1397 = vdwg.mxu0
  %v1398 = vld [vmem:[#allocation2] sm:$0xff]
  %v1399 = vld [vmem:[#allocation2 + $0x8] sm:$0xff]
  %v1400 = vld [vmem:[#allocation2 + $0x10] sm:$0xff]
  %v1401 = vld [vmem:[#allocation2 + $0x18] sm:$0xff]
  %v1402 = vld [vmem:[#allocation2 + $0x20] sm:$0xff]
  %v1403 = vld [vmem:[#allocation2 + $0x28] sm:$0xff]
  %v1404 = vld [vmem:[#allocation2 + $0x30] sm:$0xff]
  %v1405 = vld [vmem:[#allocation2 + $0x38] sm:$0xff]
  %v1406 = vld [vmem:[#allocation2 + $0x40] sm:$0xff]
  %v1407 = vld [vmem:[#allocation2 + $0x48] sm:$0xff]
  %v1408 = vld [vmem:[#allocation2 + $0x50] sm:$0xff]
  %v1409 = vld [vmem:[#allocation2 + $0x58] sm:$0xff]
  %v1410 = vld [vmem:[#allocation2 + $0x60] sm:$0xff]
  %v1411 = vld [vmem:[#allocation2 + $0x68] sm:$0xff]
  %v1412 = vld [vmem:[#allocation2 + $0x70] sm:$0xff]
  %v1413 = vld [vmem:[#allocation2 + $0x78] sm:$0xff]
  %v1414 = vld [vmem:[#allocation2 + $0x80] sm:$0xff]
  %v1415 = vld [vmem:[#allocation2 + $0x88] sm:$0xff]
  %v1416 = vld [vmem:[#allocation2 + $0x90] sm:$0xff]
  %v1417 = vld [vmem:[#allocation2 + $0x98] sm:$0xff]
  %v1418 = vld [vmem:[#allocation2 + $0xa0] sm:$0xff]
  %v1419 = vld [vmem:[#allocation2 + $0xa8] sm:$0xff]
  %v1420 = vld [vmem:[#allocation2 + $0xb0] sm:$0xff]
  %v1421 = vld [vmem:[#allocation2 + $0xb8] sm:$0xff]
  %v1422 = vld [vmem:[#allocation2 + $0xc0] sm:$0xff]
  %v1423 = vld [vmem:[#allocation2 + $0xc8] sm:$0xff]
  %v1424 = vld [vmem:[#allocation2 + $0xd0] sm:$0xff]
  %v1425 = vld [vmem:[#allocation2 + $0xd8] sm:$0xff]
  %v1426 = vld [vmem:[#allocation2 + $0xe0] sm:$0xff]
  %v1427 = vld [vmem:[#allocation2 + $0xe8] sm:$0xff]
  %v1428 = vld [vmem:[#allocation2 + $0xf0] sm:$0xff]
  %v1429 = vld [vmem:[#allocation2 + $0xf8] sm:$0xff]
  %v1430 = vld [vmem:[#allocation2 + $0x100] sm:$0xff]
  %v1431 = vld [vmem:[#allocation2 + $0x108] sm:$0xff]
  %v1432 = vld [vmem:[#allocation2 + $0x110] sm:$0xff]
  %v1433 = vld [vmem:[#allocation2 + $0x118] sm:$0xff]
  %v1434 = vld [vmem:[#allocation2 + $0x120] sm:$0xff]
  %v1435 = vld [vmem:[#allocation2 + $0x128] sm:$0xff]
  %v1436 = vld [vmem:[#allocation2 + $0x130] sm:$0xff]
  %v1437 = vld [vmem:[#allocation2 + $0x138] sm:$0xff]
  %v1438 = vld [vmem:[#allocation2 + $0x140] sm:$0xff]
  %v1439 = vld [vmem:[#allocation2 + $0x148] sm:$0xff]
  %v1440 = vld [vmem:[#allocation2 + $0x150] sm:$0xff]
  %v1441 = vld [vmem:[#allocation2 + $0x158] sm:$0xff]
  %v1442 = vld [vmem:[#allocation2 + $0x160] sm:$0xff]
  %v1443 = vld [vmem:[#allocation2 + $0x168] sm:$0xff]
  %v1444 = vld [vmem:[#allocation2 + $0x170] sm:$0xff]
  %v1445 = vld [vmem:[#allocation2 + $0x178] sm:$0xff]
  %v1446 = vadd.f32 %v1398, %v1280
  %v1447 = vadd.f32 %v1399, %v1282
  %v1448 = vadd.f32 %v1400, %v1284
  %v1449 = vadd.f32 %v1401, %v1286
  %v1450 = vadd.f32 %v1402, %v1290
  %v1451 = vadd.f32 %v1403, %v1292
  %v1452 = vadd.f32 %v1404, %v1294
  %v1453 = vadd.f32 %v1405, %v1296
  %v1454 = vadd.f32 %v1406, %v1300
  %v1455 = vadd.f32 %v1407, %v1302
  %v1456 = vadd.f32 %v1408, %v1304
  %v1457 = vadd.f32 %v1409, %v1306
  %v1458 = vadd.f32 %v1410, %v1310
  %v1459 = vadd.f32 %v1411, %v1312
  %v1460 = vadd.f32 %v1412, %v1314
  %v1461 = vadd.f32 %v1413, %v1316
  %v1462 = vadd.f32 %v1414, %v1320
  %v1463 = vadd.f32 %v1415, %v1322
  %v1464 = vadd.f32 %v1416, %v1324
  %v1465 = vadd.f32 %v1417, %v1326
  %v1466 = vadd.f32 %v1418, %v1330
  %v1467 = vadd.f32 %v1419, %v1332
  %v1468 = vadd.f32 %v1420, %v1334
  %v1469 = vadd.f32 %v1421, %v1336
  %v1470 = vadd.f32 %v1422, %v1340
  %v1471 = vadd.f32 %v1423, %v1342
  %v1472 = vadd.f32 %v1424, %v1344
  %v1473 = vadd.f32 %v1425, %v1346
  %v1474 = vadd.f32 %v1426, %v1350
  %v1475 = vadd.f32 %v1427, %v1352
  %v1476 = vadd.f32 %v1428, %v1354
  %v1477 = vadd.f32 %v1429, %v1356
  %v1478 = vadd.f32 %v1430, %v1360
  %v1479 = vadd.f32 %v1431, %v1362
  %v1480 = vadd.f32 %v1432, %v1364
  %v1481 = vadd.f32 %v1433, %v1366
  %v1482 = vadd.f32 %v1434, %v1370
  %v1483 = vadd.f32 %v1435, %v1372
  %v1484 = vadd.f32 %v1436, %v1374
  %v1485 = vadd.f32 %v1437, %v1376
  %v1486 = vadd.f32 %v1438, %v1380
  %v1487 = vadd.f32 %v1439, %v1382
  %v1488 = vadd.f32 %v1440, %v1384
  %v1489 = vadd.f32 %v1441, %v1386
  %v1490 = vadd.f32 %v1442, %v1390
  %v1491 = vadd.f32 %v1443, %v1392
  %v1492 = vadd.f32 %v1444, %v1394
  %v1493 = vadd.f32 %v1445, %v1396
  %1494 = vst [vmem:[#allocation2] sm:$0xff] %v1446
  %1495 = vst [vmem:[#allocation2 + $0x8] sm:$0xff] %v1447
  %1496 = vst [vmem:[#allocation2 + $0x10] sm:$0xff] %v1448
  %1497 = vst [vmem:[#allocation2 + $0x18] sm:$0xff] %v1449
  %1498 = vst [vmem:[#allocation2 + $0x20] sm:$0xff] %v1450
  %1499 = vst [vmem:[#allocation2 + $0x28] sm:$0xff] %v1451
  %1500 = vst [vmem:[#allocation2 + $0x30] sm:$0xff] %v1452
  %1501 = vst [vmem:[#allocation2 + $0x38] sm:$0xff] %v1453
  %1502 = vst [vmem:[#allocation2 + $0x40] sm:$0xff] %v1454
  %1503 = vst [vmem:[#allocation2 + $0x48] sm:$0xff] %v1455
  %1504 = vst [vmem:[#allocation2 + $0x50] sm:$0xff] %v1456
  %1505 = vst [vmem:[#allocation2 + $0x58] sm:$0xff] %v1457
  %1506 = vst [vmem:[#allocation2 + $0x60] sm:$0xff] %v1458
  %1507 = vst [vmem:[#allocation2 + $0x68] sm:$0xff] %v1459
  %1508 = vst [vmem:[#allocation2 + $0x70] sm:$0xff] %v1460
  %1509 = vst [vmem:[#allocation2 + $0x78] sm:$0xff] %v1461
  %1510 = vst [vmem:[#allocation2 + $0x80] sm:$0xff] %v1462
  %1511 = vst [vmem:[#allocation2 + $0x88] sm:$0xff] %v1463
  %1512 = vst [vmem:[#allocation2 + $0x90] sm:$0xff] %v1464
  %1513 = vst [vmem:[#allocation2 + $0x98] sm:$0xff] %v1465
  %1514 = vst [vmem:[#allocation2 + $0xa0] sm:$0xff] %v1466
  %1515 = vst [vmem:[#allocation2 + $0xa8] sm:$0xff] %v1467
  %1516 = vst [vmem:[#allocation2 + $0xb0] sm:$0xff] %v1468
  %1517 = vst [vmem:[#allocation2 + $0xb8] sm:$0xff] %v1469
  %1518 = vst [vmem:[#allocation2 + $0xc0] sm:$0xff] %v1470
  %1519 = vst [vmem:[#allocation2 + $0xc8] sm:$0xff] %v1471
  %1520 = vst [vmem:[#allocation2 + $0xd0] sm:$0xff] %v1472
  %1521 = vst [vmem:[#allocation2 + $0xd8] sm:$0xff] %v1473
  %1522 = vst [vmem:[#allocation2 + $0xe0] sm:$0xff] %v1474
  %1523 = vst [vmem:[#allocation2 + $0xe8] sm:$0xff] %v1475
  %1524 = vst [vmem:[#allocation2 + $0xf0] sm:$0xff] %v1476
  %1525 = vst [vmem:[#allocation2 + $0xf8] sm:$0xff] %v1477
  %1526 = vst [vmem:[#allocation2 + $0x100] sm:$0xff] %v1478
  %1527 = vst [vmem:[#allocation2 + $0x108] sm:$0xff] %v1479
  %1528 = vst [vmem:[#allocation2 + $0x110] sm:$0xff] %v1480
  %1529 = vst [vmem:[#allocation2 + $0x118] sm:$0xff] %v1481
  %1530 = vst [vmem:[#allocation2 + $0x120] sm:$0xff] %v1482
  %1531 = vst [vmem:[#allocation2 + $0x128] sm:$0xff] %v1483
  %1532 = vst [vmem:[#allocation2 + $0x130] sm:$0xff] %v1484
  %1533 = vst [vmem:[#allocation2 + $0x138] sm:$0xff] %v1485
  %1534 = vst [vmem:[#allocation2 + $0x140] sm:$0xff] %v1486
  %1535 = vst [vmem:[#allocation2 + $0x148] sm:$0xff] %v1487
  %1536 = vst [vmem:[#allocation2 + $0x150] sm:$0xff] %v1488
  %1537 = vst [vmem:[#allocation2 + $0x158] sm:$0xff] %v1489
  %1538 = vst [vmem:[#allocation2 + $0x160] sm:$0xff] %v1490
  %1539 = vst [vmem:[#allocation2 + $0x168] sm:$0xff] %v1491
  %1540 = vst [vmem:[#allocation2 + $0x170] sm:$0xff] %v1492
  %1541 = vst [vmem:[#allocation2 + $0x178] sm:$0xff] %v1493
  %v1542 = vld [vmem:[%s0 + $0x4] sm:$0xff]
  %v1543 = vld [vmem:[%s0 + $0xc] sm:$0xff]
  %v1544 = vld [vmem:[%s0 + $0x14] sm:$0xff]
  %v1545 = vld [vmem:[%s0 + $0x24] sm:$0xff]
  %v1546 = vld [vmem:[%s0 + $0x2c] sm:$0xff]
  %v1547 = vld [vmem:[%s0 + $0x34] sm:$0xff]
  %v1548 = vld [vmem:[%s0 + $0x44] sm:$0xff]
  %v1549 = vld [vmem:[%s0 + $0x4c] sm:$0xff]
  %v1550 = vld [vmem:[%s0 + $0x54] sm:$0xff]
  %v1551 = vld [vmem:[%s0 + $0x64] sm:$0xff]
  %v1552 = vld [vmem:[%s0 + $0x6c] sm:$0xff]
  %v1553 = vld [vmem:[%s0 + $0x74] sm:$0xff]
  %v1554 = vld [vmem:[%s0 + $0x84] sm:$0xff]
  %v1555 = vld [vmem:[%s0 + $0x8c] sm:$0xff]
  %v1556 = vld [vmem:[%s0 + $0x94] sm:$0xff]
  %v1557 = vld [vmem:[%s0 + $0xa4] sm:$0xff]
  %v1558 = vld [vmem:[%s0 + $0xac] sm:$0xff]
  %v1559 = vld [vmem:[%s0 + $0xb4] sm:$0xff]
  %v1560 = vld [vmem:[%s0 + $0xc4] sm:$0xff]
  %v1561 = vld [vmem:[%s0 + $0xcc] sm:$0xff]
  %v1562 = vld [vmem:[%s0 + $0xd4] sm:$0xff]
  %v1563 = vld [vmem:[%s0 + $0xe4] sm:$0xff]
  %v1564 = vld [vmem:[%s0 + $0xec] sm:$0xff]
  %v1565 = vld [vmem:[%s0 + $0xf4] sm:$0xff]
  %v1566 = vpack.c.bf16 %v1543, %v1542
  %v1567 = vpack.c.bf16 %v1545, %v1544
  %v1568 = vpack.c.bf16 %v1547, %v1546
  %v1569 = vpack.c.bf16 %v1549, %v1548
  %v1570 = vpack.c.bf16 %v1551, %v1550
  %v1571 = vpack.c.bf16 %v1553, %v1552
  %v1572 = vpack.c.bf16 %v1555, %v1554
  %v1573 = vpack.c.bf16 %v1557, %v1556
  %v1574 = vpack.c.bf16 %v1559, %v1558
  %v1575 = vpack.c.bf16 %v1561, %v1560
  %v1576 = vpack.c.bf16 %v1563, %v1562
  %v1577 = vpack.c.bf16 %v1565, %v1564
  %s1578 = scalar_lea.vmem %s1, 128
  %v1579 = vld [vmem:[%s1578] sm:$0xff]
  %v1580 = vld [vmem:[%s1578 + $0x8] sm:$0xff]
  %v1581 = vld [vmem:[%s1578 + $0x10] sm:$0xff]
  %v1582 = vld [vmem:[%s1578 + $0x18] sm:$0x33]
  %v1587 = vunpack.c.l.b16 %v1579
  %v1588 = vunpack.c.h.b16 %v1579
  %v1589 = vunpack.c.l.b16 %v1580
  %v1590 = vunpack.c.h.b16 %v1580
  %v1591 = vunpack.c.l.b16 %v1581
  %v1592 = vunpack.c.h.b16 %v1581
  %v1593 = vunpack.c.l.b16 %v1582
  %v1594 = vunpack.c.h.b16 %v1582
  %v1595 = vpack.c.b16 %v1589, %v1587
  %v1596 = vpack.c.b16 %v1590, %v1588
  %v1597 = vpack.c.b16 %v1593, %v1591
  %v1598 = vpack.c.b16 %v1594, %v1592
  %v1602 = vsel %vm103, %v1566, 0
  %v1605 = vsel %vm103, %v1567, 0
  %v1608 = vsel %vm103, %v1568, 0
  %v1611 = vsel %vm103, %v1569, 0
  %v1614 = vsel %vm103, %v1570, 0
  %v1617 = vsel %vm103, %v1571, 0
  %v1620 = vsel %vm103, %v1572, 0
  %v1623 = vsel %vm103, %v1573, 0
  %v1626 = vsel %vm103, %v1574, 0
  %v1629 = vsel %vm103, %v1575, 0
  %v1632 = vsel %vm103, %v1576, 0
  %v1635 = vsel %vm103, %v1577, 0
  %v1638 = vsel %vm140, %v1597, 0
  %v1641 = vsel %vm140, %v1598, 0
  %1643 = vmatprep.subr.bf16.mxu0 0
  %1644 = vmatpush1.bf16.msra.mxu0 0
  %1645 = vmatprep.subr.bf16.mxu0 0
  %1646 = vmatpush1.bf16.msra.mxu0 0
  %1647 = vmatprep.subr.bf16.mxu0 0
  %1648 = vmatpush1.bf16.msra.mxu0 0
  %1649 = vmatprep.subr.bf16.mxu0 0
  %1650 = vmatpush1.bf16.msra.mxu0 0
  %1651 = vmatprep.subr.bf16.mxu0 0
  %1652 = vmatpush1.bf16.msra.mxu0 0
  %1653 = vmatprep.subr.bf16.mxu0 0
  %1654 = vmatpush1.bf16.msra.mxu0 0
  %1655 = vmatprep.subr.bf16.mxu0 %v1641
  %1656 = vmatpush1.bf16.msra.mxu0 %v1638
  %1657 = vmatprep.subr.bf16.mxu0 %v1596
  %1658 = vmatpush1.bf16.msra.mxu0 %v1595
  %1659 = vmatprep.subr.bf16.mxu0 0
  %1660 = vmatpush2.bf16.msra.mxu0 0
  %1661 = vmatprep.subr.bf16.mxu0 0
  %1662 = vmatpush2.bf16.msra.mxu0 0
  %1663 = vmatprep.subr.bf16.mxu0 0
  %1664 = vmatpush2.bf16.msra.mxu0 0
  %1665 = vmatprep.subr.bf16.mxu0 0
  %1666 = vmatpush2.bf16.msra.mxu0 0
  %1667 = vmatprep.subr.bf16.mxu0 0
  %1668 = vmatpush2.bf16.msra.mxu0 0
  %1669 = vmatprep.subr.bf16.mxu0 0
  %1670 = vmatpush2.bf16.msra.mxu0 0
  %1671 = vmatprep.subr.bf16.mxu0 0
  %1672 = vmatpush2.bf16.msra.mxu0 0
  %1673 = vmatprep.subr.bf16.mxu0 0
  %1674 = vmatpush2.bf16.msra.mxu0 0
  %1675 = vmatprep.mubr.bf16.mxu0 0
  %1676 = vmatmul.mubr.bf16.gmra.mxu0 %v1602
  %v1677 = vpop.f32.mrf.mxu0
  %v1678 = vadd.f32 0.0, %v1677
  %v1679 = vpop.f32.mrf.mxu0
  %v1680 = vadd.f32 0.0, %v1679
  %v1681 = vpop.f32.mrf.mxu0
  %v1682 = vadd.f32 0.0, %v1681
  %v1683 = vpop.f32.mrf.mxu0
  %v1684 = vadd.f32 0.0, %v1683
  %1685 = vmatprep.mubr.bf16.mxu0 0
  %1686 = vmatmul.mubr.bf16.gmra.mxu0 %v1605
  %v1687 = vpop.f32.mrf.mxu0
  %v1688 = vadd.f32 0.0, %v1687
  %v1689 = vpop.f32.mrf.mxu0
  %v1690 = vadd.f32 0.0, %v1689
  %v1691 = vpop.f32.mrf.mxu0
  %v1692 = vadd.f32 0.0, %v1691
  %v1693 = vpop.f32.mrf.mxu0
  %v1694 = vadd.f32 0.0, %v1693
  %1695 = vmatprep.mubr.bf16.mxu0 0
  %1696 = vmatmul.mubr.bf16.gmra.mxu0 %v1608
  %v1697 = vpop.f32.mrf.mxu0
  %v1698 = vadd.f32 0.0, %v1697
  %v1699 = vpop.f32.mrf.mxu0
  %v1700 = vadd.f32 0.0, %v1699
  %v1701 = vpop.f32.mrf.mxu0
  %v1702 = vadd.f32 0.0, %v1701
  %v1703 = vpop.f32.mrf.mxu0
  %v1704 = vadd.f32 0.0, %v1703
  %1705 = vmatprep.mubr.bf16.mxu0 0
  %1706 = vmatmul.mubr.bf16.gmra.mxu0 %v1611
  %v1707 = vpop.f32.mrf.mxu0
  %v1708 = vadd.f32 0.0, %v1707
  %v1709 = vpop.f32.mrf.mxu0
  %v1710 = vadd.f32 0.0, %v1709
  %v1711 = vpop.f32.mrf.mxu0
  %v1712 = vadd.f32 0.0, %v1711
  %v1713 = vpop.f32.mrf.mxu0
  %v1714 = vadd.f32 0.0, %v1713
  %1715 = vmatprep.mubr.bf16.mxu0 0
  %1716 = vmatmul.mubr.bf16.gmra.mxu0 %v1614
  %v1717 = vpop.f32.mrf.mxu0
  %v1718 = vadd.f32 0.0, %v1717
  %v1719 = vpop.f32.mrf.mxu0
  %v1720 = vadd.f32 0.0, %v1719
  %v1721 = vpop.f32.mrf.mxu0
  %v1722 = vadd.f32 0.0, %v1721
  %v1723 = vpop.f32.mrf.mxu0
  %v1724 = vadd.f32 0.0, %v1723
  %1725 = vmatprep.mubr.bf16.mxu0 0
  %1726 = vmatmul.mubr.bf16.gmra.mxu0 %v1617
  %v1727 = vpop.f32.mrf.mxu0
  %v1728 = vadd.f32 0.0, %v1727
  %v1729 = vpop.f32.mrf.mxu0
  %v1730 = vadd.f32 0.0, %v1729
  %v1731 = vpop.f32.mrf.mxu0
  %v1732 = vadd.f32 0.0, %v1731
  %v1733 = vpop.f32.mrf.mxu0
  %v1734 = vadd.f32 0.0, %v1733
  %1735 = vmatprep.mubr.bf16.mxu0 0
  %1736 = vmatmul.mubr.bf16.gmra.mxu0 %v1620
  %v1737 = vpop.f32.mrf.mxu0
  %v1738 = vadd.f32 0.0, %v1737
  %v1739 = vpop.f32.mrf.mxu0
  %v1740 = vadd.f32 0.0, %v1739
  %v1741 = vpop.f32.mrf.mxu0
  %v1742 = vadd.f32 0.0, %v1741
  %v1743 = vpop.f32.mrf.mxu0
  %v1744 = vadd.f32 0.0, %v1743
  %1745 = vmatprep.mubr.bf16.mxu0 0
  %1746 = vmatmul.mubr.bf16.gmra.mxu0 %v1623
  %v1747 = vpop.f32.mrf.mxu0
  %v1748 = vadd.f32 0.0, %v1747
  %v1749 = vpop.f32.mrf.mxu0
  %v1750 = vadd.f32 0.0, %v1749
  %v1751 = vpop.f32.mrf.mxu0
  %v1752 = vadd.f32 0.0, %v1751
  %v1753 = vpop.f32.mrf.mxu0
  %v1754 = vadd.f32 0.0, %v1753
  %1755 = vmatprep.mubr.bf16.mxu0 0
  %1756 = vmatmul.mubr.bf16.gmra.mxu0 %v1626
  %v1757 = vpop.f32.mrf.mxu0
  %v1758 = vadd.f32 0.0, %v1757
  %v1759 = vpop.f32.mrf.mxu0
  %v1760 = vadd.f32 0.0, %v1759
  %v1761 = vpop.f32.mrf.mxu0
  %v1762 = vadd.f32 0.0, %v1761
  %v1763 = vpop.f32.mrf.mxu0
  %v1764 = vadd.f32 0.0, %v1763
  %1765 = vmatprep.mubr.bf16.mxu0 0
  %1766 = vmatmul.mubr.bf16.gmra.mxu0 %v1629
  %v1767 = vpop.f32.mrf.mxu0
  %v1768 = vadd.f32 0.0, %v1767
  %v1769 = vpop.f32.mrf.mxu0
  %v1770 = vadd.f32 0.0, %v1769
  %v1771 = vpop.f32.mrf.mxu0
  %v1772 = vadd.f32 0.0, %v1771
  %v1773 = vpop.f32.mrf.mxu0
  %v1774 = vadd.f32 0.0, %v1773
  %1775 = vmatprep.mubr.bf16.mxu0 0
  %1776 = vmatmul.mubr.bf16.gmra.mxu0 %v1632
  %v1777 = vpop.f32.mrf.mxu0
  %v1778 = vadd.f32 0.0, %v1777
  %v1779 = vpop.f32.mrf.mxu0
  %v1780 = vadd.f32 0.0, %v1779
  %v1781 = vpop.f32.mrf.mxu0
  %v1782 = vadd.f32 0.0, %v1781
  %v1783 = vpop.f32.mrf.mxu0
  %v1784 = vadd.f32 0.0, %v1783
  %1785 = vmatprep.mubr.bf16.mxu0 0
  %1786 = vmatmul.mubr.bf16.gmra.mxu0 %v1635
  %v1787 = vpop.f32.mrf.mxu0
  %v1788 = vadd.f32 0.0, %v1787
  %v1789 = vpop.f32.mrf.mxu0
  %v1790 = vadd.f32 0.0, %v1789
  %v1791 = vpop.f32.mrf.mxu0
  %v1792 = vadd.f32 0.0, %v1791
  %v1793 = vpop.f32.mrf.mxu0
  %v1794 = vadd.f32 0.0, %v1793
  %1795 = vdwg.mxu0
  %v1796 = vld [vmem:[#allocation2] sm:$0xff]
  %v1797 = vld [vmem:[#allocation2 + $0x8] sm:$0xff]
  %v1798 = vld [vmem:[#allocation2 + $0x10] sm:$0xff]
  %v1799 = vld [vmem:[#allocation2 + $0x18] sm:$0xff]
  %v1800 = vld [vmem:[#allocation2 + $0x20] sm:$0xff]
  %v1801 = vld [vmem:[#allocation2 + $0x28] sm:$0xff]
  %v1802 = vld [vmem:[#allocation2 + $0x30] sm:$0xff]
  %v1803 = vld [vmem:[#allocation2 + $0x38] sm:$0xff]
  %v1804 = vld [vmem:[#allocation2 + $0x40] sm:$0xff]
  %v1805 = vld [vmem:[#allocation2 + $0x48] sm:$0xff]
  %v1806 = vld [vmem:[#allocation2 + $0x50] sm:$0xff]
  %v1807 = vld [vmem:[#allocation2 + $0x58] sm:$0xff]
  %v1808 = vld [vmem:[#allocation2 + $0x60] sm:$0xff]
  %v1809 = vld [vmem:[#allocation2 + $0x68] sm:$0xff]
  %v1810 = vld [vmem:[#allocation2 + $0x70] sm:$0xff]
  %v1811 = vld [vmem:[#allocation2 + $0x78] sm:$0xff]
  %v1812 = vld [vmem:[#allocation2 + $0x80] sm:$0xff]
  %v1813 = vld [vmem:[#allocation2 + $0x88] sm:$0xff]
  %v1814 = vld [vmem:[#allocation2 + $0x90] sm:$0xff]
  %v1815 = vld [vmem:[#allocation2 + $0x98] sm:$0xff]
  %v1816 = vld [vmem:[#allocation2 + $0xa0] sm:$0xff]
  %v1817 = vld [vmem:[#allocation2 + $0xa8] sm:$0xff]
  %v1818 = vld [vmem:[#allocation2 + $0xb0] sm:$0xff]
  %v1819 = vld [vmem:[#allocation2 + $0xb8] sm:$0xff]
  %v1820 = vld [vmem:[#allocation2 + $0xc0] sm:$0xff]
  %v1821 = vld [vmem:[#allocation2 + $0xc8] sm:$0xff]
  %v1822 = vld [vmem:[#allocation2 + $0xd0] sm:$0xff]
  %v1823 = vld [vmem:[#allocation2 + $0xd8] sm:$0xff]
  %v1824 = vld [vmem:[#allocation2 + $0xe0] sm:$0xff]
  %v1825 = vld [vmem:[#allocation2 + $0xe8] sm:$0xff]
  %v1826 = vld [vmem:[#allocation2 + $0xf0] sm:$0xff]
  %v1827 = vld [vmem:[#allocation2 + $0xf8] sm:$0xff]
  %v1828 = vld [vmem:[#allocation2 + $0x100] sm:$0xff]
  %v1829 = vld [vmem:[#allocation2 + $0x108] sm:$0xff]
  %v1830 = vld [vmem:[#allocation2 + $0x110] sm:$0xff]
  %v1831 = vld [vmem:[#allocation2 + $0x118] sm:$0xff]
  %v1832 = vld [vmem:[#allocation2 + $0x120] sm:$0xff]
  %v1833 = vld [vmem:[#allocation2 + $0x128] sm:$0xff]
  %v1834 = vld [vmem:[#allocation2 + $0x130] sm:$0xff]
  %v1835 = vld [vmem:[#allocation2 + $0x138] sm:$0xff]
  %v1836 = vld [vmem:[#allocation2 + $0x140] sm:$0xff]
  %v1837 = vld [vmem:[#allocation2 + $0x148] sm:$0xff]
  %v1838 = vld [vmem:[#allocation2 + $0x150] sm:$0xff]
  %v1839 = vld [vmem:[#allocation2 + $0x158] sm:$0xff]
  %v1840 = vld [vmem:[#allocation2 + $0x160] sm:$0xff]
  %v1841 = vld [vmem:[#allocation2 + $0x168] sm:$0xff]
  %v1842 = vld [vmem:[#allocation2 + $0x170] sm:$0xff]
  %v1843 = vld [vmem:[#allocation2 + $0x178] sm:$0xff]
  %v1844 = vadd.f32 %v1796, %v1678
  %v1845 = vadd.f32 %v1797, %v1680
  %v1846 = vadd.f32 %v1798, %v1682
  %v1847 = vadd.f32 %v1799, %v1684
  %v1848 = vadd.f32 %v1800, %v1688
  %v1849 = vadd.f32 %v1801, %v1690
  %v1850 = vadd.f32 %v1802, %v1692
  %v1851 = vadd.f32 %v1803, %v1694
  %v1852 = vadd.f32 %v1804, %v1698
  %v1853 = vadd.f32 %v1805, %v1700
  %v1854 = vadd.f32 %v1806, %v1702
  %v1855 = vadd.f32 %v1807, %v1704
  %v1856 = vadd.f32 %v1808, %v1708
  %v1857 = vadd.f32 %v1809, %v1710
  %v1858 = vadd.f32 %v1810, %v1712
  %v1859 = vadd.f32 %v1811, %v1714
  %v1860 = vadd.f32 %v1812, %v1718
  %v1861 = vadd.f32 %v1813, %v1720
  %v1862 = vadd.f32 %v1814, %v1722
  %v1863 = vadd.f32 %v1815, %v1724
  %v1864 = vadd.f32 %v1816, %v1728
  %v1865 = vadd.f32 %v1817, %v1730
  %v1866 = vadd.f32 %v1818, %v1732
  %v1867 = vadd.f32 %v1819, %v1734
  %v1868 = vadd.f32 %v1820, %v1738
  %v1869 = vadd.f32 %v1821, %v1740
  %v1870 = vadd.f32 %v1822, %v1742
  %v1871 = vadd.f32 %v1823, %v1744
  %v1872 = vadd.f32 %v1824, %v1748
  %v1873 = vadd.f32 %v1825, %v1750
  %v1874 = vadd.f32 %v1826, %v1752
  %v1875 = vadd.f32 %v1827, %v1754
  %v1876 = vadd.f32 %v1828, %v1758
  %v1877 = vadd.f32 %v1829, %v1760
  %v1878 = vadd.f32 %v1830, %v1762
  %v1879 = vadd.f32 %v1831, %v1764
  %v1880 = vadd.f32 %v1832, %v1768
  %v1881 = vadd.f32 %v1833, %v1770
  %v1882 = vadd.f32 %v1834, %v1772
  %v1883 = vadd.f32 %v1835, %v1774
  %v1884 = vadd.f32 %v1836, %v1778
  %v1885 = vadd.f32 %v1837, %v1780
  %v1886 = vadd.f32 %v1838, %v1782
  %v1887 = vadd.f32 %v1839, %v1784
  %v1888 = vadd.f32 %v1840, %v1788
  %v1889 = vadd.f32 %v1841, %v1790
  %v1890 = vadd.f32 %v1842, %v1792
  %v1891 = vadd.f32 %v1843, %v1794
  %1892 = vst [vmem:[#allocation2] sm:$0xff] %v1844
  %1893 = vst [vmem:[#allocation2 + $0x8] sm:$0xff] %v1845
  %1894 = vst [vmem:[#allocation2 + $0x10] sm:$0xff] %v1846
  %1895 = vst [vmem:[#allocation2 + $0x18] sm:$0xff] %v1847
  %1896 = vst [vmem:[#allocation2 + $0x20] sm:$0xff] %v1848
  %1897 = vst [vmem:[#allocation2 + $0x28] sm:$0xff] %v1849
  %1898 = vst [vmem:[#allocation2 + $0x30] sm:$0xff] %v1850
  %1899 = vst [vmem:[#allocation2 + $0x38] sm:$0xff] %v1851
  %1900 = vst [vmem:[#allocation2 + $0x40] sm:$0xff] %v1852
  %1901 = vst [vmem:[#allocation2 + $0x48] sm:$0xff] %v1853
  %1902 = vst [vmem:[#allocation2 + $0x50] sm:$0xff] %v1854
  %1903 = vst [vmem:[#allocation2 + $0x58] sm:$0xff] %v1855
  %1904 = vst [vmem:[#allocation2 + $0x60] sm:$0xff] %v1856
  %1905 = vst [vmem:[#allocation2 + $0x68] sm:$0xff] %v1857
  %1906 = vst [vmem:[#allocation2 + $0x70] sm:$0xff] %v1858
  %1907 = vst [vmem:[#allocation2 + $0x78] sm:$0xff] %v1859
  %1908 = vst [vmem:[#allocation2 + $0x80] sm:$0xff] %v1860
  %1909 = vst [vmem:[#allocation2 + $0x88] sm:$0xff] %v1861
  %1910 = vst [vmem:[#allocation2 + $0x90] sm:$0xff] %v1862
  %1911 = vst [vmem:[#allocation2 + $0x98] sm:$0xff] %v1863
  %1912 = vst [vmem:[#allocation2 + $0xa0] sm:$0xff] %v1864
  %1913 = vst [vmem:[#allocation2 + $0xa8] sm:$0xff] %v1865
  %1914 = vst [vmem:[#allocation2 + $0xb0] sm:$0xff] %v1866
  %1915 = vst [vmem:[#allocation2 + $0xb8] sm:$0xff] %v1867
  %1916 = vst [vmem:[#allocation2 + $0xc0] sm:$0xff] %v1868
  %1917 = vst [vmem:[#allocation2 + $0xc8] sm:$0xff] %v1869
  %1918 = vst [vmem:[#allocation2 + $0xd0] sm:$0xff] %v1870
  %1919 = vst [vmem:[#allocation2 + $0xd8] sm:$0xff] %v1871
  %1920 = vst [vmem:[#allocation2 + $0xe0] sm:$0xff] %v1872
  %1921 = vst [vmem:[#allocation2 + $0xe8] sm:$0xff] %v1873
  %1922 = vst [vmem:[#allocation2 + $0xf0] sm:$0xff] %v1874
  %1923 = vst [vmem:[#allocation2 + $0xf8] sm:$0xff] %v1875
  %1924 = vst [vmem:[#allocation2 + $0x100] sm:$0xff] %v1876
  %1925 = vst [vmem:[#allocation2 + $0x108] sm:$0xff] %v1877
  %1926 = vst [vmem:[#allocation2 + $0x110] sm:$0xff] %v1878
  %1927 = vst [vmem:[#allocation2 + $0x118] sm:$0xff] %v1879
  %1928 = vst [vmem:[#allocation2 + $0x120] sm:$0xff] %v1880
  %1929 = vst [vmem:[#allocation2 + $0x128] sm:$0xff] %v1881
  %1930 = vst [vmem:[#allocation2 + $0x130] sm:$0xff] %v1882
  %1931 = vst [vmem:[#allocation2 + $0x138] sm:$0xff] %v1883
  %1932 = vst [vmem:[#allocation2 + $0x140] sm:$0xff] %v1884
  %1933 = vst [vmem:[#allocation2 + $0x148] sm:$0xff] %v1885
  %1934 = vst [vmem:[#allocation2 + $0x150] sm:$0xff] %v1886
  %1935 = vst [vmem:[#allocation2 + $0x158] sm:$0xff] %v1887
  %1936 = vst [vmem:[#allocation2 + $0x160] sm:$0xff] %v1888
  %1937 = vst [vmem:[#allocation2 + $0x168] sm:$0xff] %v1889
  %1938 = vst [vmem:[#allocation2 + $0x170] sm:$0xff] %v1890
  %1939 = vst [vmem:[#allocation2 + $0x178] sm:$0xff] %v1891
  %v1940 = vld [vmem:[#allocation2] sm:$0xff]
  %v1941 = vld [vmem:[#allocation2 + $0x10] sm:$0xff]
  %v1942 = vld [vmem:[#allocation2 + $0x20] sm:$0xff]
  %v1943 = vld [vmem:[#allocation2 + $0x30] sm:$0xff]
  %v1944 = vld [vmem:[#allocation2 + $0x40] sm:$0xff]
  %v1945 = vld [vmem:[#allocation2 + $0x50] sm:$0xff]
  %v1946 = vld [vmem:[#allocation2 + $0x60] sm:$0xff]
  %v1947 = vld [vmem:[#allocation2 + $0x70] sm:$0xff]
  %v1948 = vld [vmem:[#allocation2 + $0x80] sm:$0xff]
  %v1949 = vld [vmem:[#allocation2 + $0x90] sm:$0xff]
  %v1950 = vld [vmem:[#allocation2 + $0xa0] sm:$0xff]
  %v1951 = vld [vmem:[#allocation2 + $0xb0] sm:$0xff]
  %v1952 = vld [vmem:[#allocation2 + $0xc0] sm:$0xff]
  %v1953 = vld [vmem:[#allocation2 + $0xd0] sm:$0xff]
  %v1954 = vld [vmem:[#allocation2 + $0xe0] sm:$0xff]
  %v1955 = vld [vmem:[#allocation2 + $0xf0] sm:$0xff]
  %v1956 = vld [vmem:[#allocation2 + $0x100] sm:$0xff]
  %v1957 = vld [vmem:[#allocation2 + $0x110] sm:$0xff]
  %v1958 = vld [vmem:[#allocation2 + $0x120] sm:$0xff]
  %v1959 = vld [vmem:[#allocation2 + $0x130] sm:$0xff]
  %v1960 = vld [vmem:[#allocation2 + $0x140] sm:$0xff]
  %v1961 = vld [vmem:[#allocation2 + $0x150] sm:$0xff]
  %v1962 = vld [vmem:[#allocation2 + $0x160] sm:$0xff]
  %v1963 = vld [vmem:[#allocation2 + $0x170] sm:$0xff]
  %v1964 = vld [vmem:[#allocation2 + $0x8] sm:$0xff]
  %v1965 = vld [vmem:[#allocation2 + $0x18] sm:$0xff]
  %v1966 = vld [vmem:[#allocation2 + $0x28] sm:$0xff]
  %v1967 = vld [vmem:[#allocation2 + $0x38] sm:$0xff]
  %v1968 = vld [vmem:[#allocation2 + $0x48] sm:$0xff]
  %v1969 = vld [vmem:[#allocation2 + $0x58] sm:$0xff]
  %v1970 = vld [vmem:[#allocation2 + $0x68] sm:$0xff]
  %v1971 = vld [vmem:[#allocation2 + $0x78] sm:$0xff]
  %v1972 = vld [vmem:[#allocation2 + $0x88] sm:$0xff]
  %v1973 = vld [vmem:[#allocation2 + $0x98] sm:$0xff]
  %v1974 = vld [vmem:[#allocation2 + $0xa8] sm:$0xff]
  %v1975 = vld [vmem:[#allocation2 + $0xb8] sm:$0xff]
  %v1976 = vld [vmem:[#allocation2 + $0xc8] sm:$0xff]
  %v1977 = vld [vmem:[#allocation2 + $0xd8] sm:$0xff]
  %v1978 = vld [vmem:[#allocation2 + $0xe8] sm:$0xff]
  %v1979 = vld [vmem:[#allocation2 + $0xf8] sm:$0xff]
  %v1980 = vld [vmem:[#allocation2 + $0x108] sm:$0xff]
  %v1981 = vld [vmem:[#allocation2 + $0x118] sm:$0xff]
  %v1982 = vld [vmem:[#allocation2 + $0x128] sm:$0xff]
  %v1983 = vld [vmem:[#allocation2 + $0x138] sm:$0xff]
  %v1984 = vld [vmem:[#allocation2 + $0x148] sm:$0xff]
  %v1985 = vld [vmem:[#allocation2 + $0x158] sm:$0xff]
  %v1986 = vld [vmem:[#allocation2 + $0x168] sm:$0xff]
  %v1987 = vld [vmem:[#allocation2 + $0x178] sm:$0xff]
  %v1988 = vmax.f32 %v1940, %v1964
  %v1989 = vmax.f32 %v1941, %v1965
  %v1990 = vmax.f32 %v1942, %v1966
  %v1991 = vmax.f32 %v1943, %v1967
  %v1992 = vmax.f32 %v1944, %v1968
  %v1993 = vmax.f32 %v1945, %v1969
  %v1994 = vmax.f32 %v1946, %v1970
  %v1995 = vmax.f32 %v1947, %v1971
  %v1996 = vmax.f32 %v1948, %v1972
  %v1997 = vmax.f32 %v1949, %v1973
  %v1998 = vmax.f32 %v1950, %v1974
  %v1999 = vmax.f32 %v1951, %v1975
  %v2000 = vmax.f32 %v1952, %v1976
  %v2001 = vmax.f32 %v1953, %v1977
  %v2002 = vmax.f32 %v1954, %v1978
  %v2003 = vmax.f32 %v1955, %v1979
  %v2004 = vmax.f32 %v1956, %v1980
  %v2005 = vmax.f32 %v1957, %v1981
  %v2006 = vmax.f32 %v1958, %v1982
  %v2007 = vmax.f32 %v1959, %v1983
  %v2008 = vmax.f32 %v1960, %v1984
  %v2009 = vmax.f32 %v1961, %v1985
  %v2010 = vmax.f32 %v1962, %v1986
  %v2011 = vmax.f32 %v1963, %v1987
  %2012 = vst [vmem:[#allocation3] sm:$0xff] %v1988
  %2013 = vst [vmem:[#allocation3 + $0x8] sm:$0xff] %v1989
  %2014 = vst [vmem:[#allocation3 + $0x10] sm:$0xff] %v1990
  %2015 = vst [vmem:[#allocation3 + $0x18] sm:$0xff] %v1991
  %2016 = vst [vmem:[#allocation3 + $0x20] sm:$0xff] %v1992
  %2017 = vst [vmem:[#allocation3 + $0x28] sm:$0xff] %v1993
  %2018 = vst [vmem:[#allocation3 + $0x30] sm:$0xff] %v1994
  %2019 = vst [vmem:[#allocation3 + $0x38] sm:$0xff] %v1995
  %2020 = vst [vmem:[#allocation3 + $0x40] sm:$0xff] %v1996
  %2021 = vst [vmem:[#allocation3 + $0x48] sm:$0xff] %v1997
  %2022 = vst [vmem:[#allocation3 + $0x50] sm:$0xff] %v1998
  %2023 = vst [vmem:[#allocation3 + $0x58] sm:$0xff] %v1999
  %2024 = vst [vmem:[#allocation3 + $0x60] sm:$0xff] %v2000
  %2025 = vst [vmem:[#allocation3 + $0x68] sm:$0xff] %v2001
  %2026 = vst [vmem:[#allocation3 + $0x70] sm:$0xff] %v2002
  %2027 = vst [vmem:[#allocation3 + $0x78] sm:$0xff] %v2003
  %2028 = vst [vmem:[#allocation3 + $0x80] sm:$0xff] %v2004
  %2029 = vst [vmem:[#allocation3 + $0x88] sm:$0xff] %v2005
  %2030 = vst [vmem:[#allocation3 + $0x90] sm:$0xff] %v2006
  %2031 = vst [vmem:[#allocation3 + $0x98] sm:$0xff] %v2007
  %2032 = vst [vmem:[#allocation3 + $0xa0] sm:$0xff] %v2008
  %2033 = vst [vmem:[#allocation3 + $0xa8] sm:$0xff] %v2009
  %2034 = vst [vmem:[#allocation3 + $0xb0] sm:$0xff] %v2010
  %2035 = vst [vmem:[#allocation3 + $0xb8] sm:$0xff] %v2011
  %v2036 = vld [vmem:[#allocation3] ss:$2 sm:$0xff]
  %s2037 = scalar_lea.vmem [#allocation3], 16
  %v2038 = vld [vmem:[%s2037] ss:$2 sm:$0xf]
  %s2039 = scalar_lea.vmem [#allocation3], 24
  %v2040 = vld [vmem:[%s2039] ss:$2 sm:$0xff]
  %s2041 = scalar_lea.vmem [#allocation3], 40
  %v2042 = vld [vmem:[%s2041] ss:$2 sm:$0xf]
  %s2043 = scalar_lea.vmem [#allocation3], 48
  %v2044 = vld [vmem:[%s2043] ss:$2 sm:$0xff]
  %s2045 = scalar_lea.vmem [#allocation3], 64
  %v2046 = vld [vmem:[%s2045] ss:$2 sm:$0xf]
  %s2047 = scalar_lea.vmem [#allocation3], 72
  %v2048 = vld [vmem:[%s2047] ss:$2 sm:$0xff]
  %s2049 = scalar_lea.vmem [#allocation3], 88
  %v2050 = vld [vmem:[%s2049] ss:$2 sm:$0xf]
  %s2051 = scalar_lea.vmem [#allocation3], 96
  %v2052 = vld [vmem:[%s2051] ss:$2 sm:$0xff]
  %s2053 = scalar_lea.vmem [#allocation3], 112
  %v2054 = vld [vmem:[%s2053] ss:$2 sm:$0xf]
  %s2055 = scalar_lea.vmem [#allocation3], 120
  %v2056 = vld [vmem:[%s2055] ss:$2 sm:$0xff]
  %s2057 = scalar_lea.vmem [#allocation3], 136
  %v2058 = vld [vmem:[%s2057] ss:$2 sm:$0xf]
  %s2059 = scalar_lea.vmem [#allocation3], 144
  %v2060 = vld [vmem:[%s2059] ss:$2 sm:$0xff]
  %s2061 = scalar_lea.vmem [#allocation3], 160
  %v2062 = vld [vmem:[%s2061] ss:$2 sm:$0xf]
  %s2063 = scalar_lea.vmem [#allocation3], 168
  %v2064 = vld [vmem:[%s2063] ss:$2 sm:$0xff]
  %s2065 = scalar_lea.vmem [#allocation3], 184
  %v2066 = vld [vmem:[%s2065] ss:$2 sm:$0xf]
  %s2067 = scalar_lea.vmem [#allocation3], 1
  %v2068 = vld [vmem:[%s2067] ss:$2 sm:$0xff]
  %s2069 = scalar_lea.vmem [#allocation3], 17
  %v2070 = vld [vmem:[%s2069] ss:$2 sm:$0xf]
  %s2071 = scalar_lea.vmem [#allocation3], 25
  %v2072 = vld [vmem:[%s2071] ss:$2 sm:$0xff]
  %s2073 = scalar_lea.vmem [#allocation3], 41
  %v2074 = vld [vmem:[%s2073] ss:$2 sm:$0xf]
  %s2075 = scalar_lea.vmem [#allocation3], 49
  %v2076 = vld [vmem:[%s2075] ss:$2 sm:$0xff]
  %s2077 = scalar_lea.vmem [#allocation3], 65
  %v2078 = vld [vmem:[%s2077] ss:$2 sm:$0xf]
  %s2079 = scalar_lea.vmem [#allocation3], 73
  %v2080 = vld [vmem:[%s2079] ss:$2 sm:$0xff]
  %s2081 = scalar_lea.vmem [#allocation3], 89
  %v2082 = vld [vmem:[%s2081] ss:$2 sm:$0xf]
  %s2083 = scalar_lea.vmem [#allocation3], 97
  %v2084 = vld [vmem:[%s2083] ss:$2 sm:$0xff]
  %s2085 = scalar_lea.vmem [#allocation3], 113
  %v2086 = vld [vmem:[%s2085] ss:$2 sm:$0xf]
  %s2087 = scalar_lea.vmem [#allocation3], 121
  %v2088 = vld [vmem:[%s2087] ss:$2 sm:$0xff]
  %s2089 = scalar_lea.vmem [#allocation3], 137
  %v2090 = vld [vmem:[%s2089] ss:$2 sm:$0xf]
  %s2091 = scalar_lea.vmem [#allocation3], 145
  %v2092 = vld [vmem:[%s2091] ss:$2 sm:$0xff]
  %s2093 = scalar_lea.vmem [#allocation3], 161
  %v2094 = vld [vmem:[%s2093] ss:$2 sm:$0xf]
  %s2095 = scalar_lea.vmem [#allocation3], 169
  %v2096 = vld [vmem:[%s2095] ss:$2 sm:$0xff]
  %s2097 = scalar_lea.vmem [#allocation3], 185
  %v2098 = vld [vmem:[%s2097] ss:$2 sm:$0xf]
  %v2099 = vmax.f32 %v2036, %v2068
  %v2100 = vmax.f32 %v2038, %v2070
  %v2101 = vmax.f32 %v2040, %v2072
  %v2102 = vmax.f32 %v2042, %v2074
  %v2103 = vmax.f32 %v2044, %v2076
  %v2104 = vmax.f32 %v2046, %v2078
  %v2105 = vmax.f32 %v2048, %v2080
  %v2106 = vmax.f32 %v2050, %v2082
  %v2107 = vmax.f32 %v2052, %v2084
  %v2108 = vmax.f32 %v2054, %v2086
  %v2109 = vmax.f32 %v2056, %v2088
  %v2110 = vmax.f32 %v2058, %v2090
  %v2111 = vmax.f32 %v2060, %v2092
  %v2112 = vmax.f32 %v2062, %v2094
  %v2113 = vmax.f32 %v2064, %v2096
  %v2114 = vmax.f32 %v2066, %v2098
  %v2115 = vmax.f32 %v2099, 0.0
  %v2116 = vmax.f32 %v2100, 0.0
  %v2117 = vmax.f32 %v2101, 0.0
  %v2118 = vmax.f32 %v2102, 0.0
  %v2119 = vmax.f32 %v2103, 0.0
  %v2120 = vmax.f32 %v2104, 0.0
  %v2121 = vmax.f32 %v2105, 0.0
  %v2122 = vmax.f32 %v2106, 0.0
  %v2123 = vmax.f32 %v2107, 0.0
  %v2124 = vmax.f32 %v2108, 0.0
  %v2125 = vmax.f32 %v2109, 0.0
  %v2126 = vmax.f32 %v2110, 0.0
  %v2127 = vmax.f32 %v2111, 0.0
  %v2128 = vmax.f32 %v2112, 0.0
  %v2129 = vmax.f32 %v2113, 0.0
  %v2130 = vmax.f32 %v2114, 0.0
  %2131 = vst [vmem:[#allocation4] sm:$0xff] %v2115
  %2132 = vst [vmem:[#allocation4 + $0x8] sm:$0xf] %v2116
  %2133 = vst [vmem:[#allocation4 + $0x10] sm:$0xff] %v2117
  %2134 = vst [vmem:[#allocation4 + $0x18] sm:$0xf] %v2118
  %2135 = vst [vmem:[#allocation4 + $0x20] sm:$0xff] %v2119
  %2136 = vst [vmem:[#allocation4 + $0x28] sm:$0xf] %v2120
  %2137 = vst [vmem:[#allocation4 + $0x30] sm:$0xff] %v2121
  %2138 = vst [vmem:[#allocation4 + $0x38] sm:$0xf] %v2122
  %2139 = vst [vmem:[#allocation4 + $0x40] sm:$0xff] %v2123
  %2140 = vst [vmem:[#allocation4 + $0x48] sm:$0xf] %v2124
  %2141 = vst [vmem:[#allocation4 + $0x50] sm:$0xff] %v2125
  %2142 = vst [vmem:[#allocation4 + $0x58] sm:$0xf] %v2126
  %2143 = vst [vmem:[#allocation4 + $0x60] sm:$0xff] %v2127
  %2144 = vst [vmem:[#allocation4 + $0x68] sm:$0xf] %v2128
  %2145 = vst [vmem:[#allocation4 + $0x70] sm:$0xff] %v2129
  %2146 = vst [vmem:[#allocation4 + $0x78] sm:$0xf] %v2130
  %v2147 = vld [vmem:[#allocation4] sm:$0xff]
  %v2148 = vld [vmem:[#allocation4 + $0x10] sm:$0xff]
  %v2149 = vld [vmem:[#allocation4 + $0x20] sm:$0xff]
  %v2150 = vld [vmem:[#allocation4 + $0x30] sm:$0xff]
  %v2151 = vld [vmem:[#allocation4 + $0x40] sm:$0xff]
  %v2152 = vld [vmem:[#allocation4 + $0x50] sm:$0xff]
  %v2153 = vld [vmem:[#allocation4 + $0x60] sm:$0xff]
  %v2154 = vld [vmem:[#allocation4 + $0x70] sm:$0xff]
  %v2155 = vpack.c.bf16 %v2148, %v2147
  %v2156 = vpack.c.bf16 %v2150, %v2149
  %v2157 = vpack.c.bf16 %v2152, %v2151
  %v2158 = vpack.c.bf16 %v2154, %v2153
  %v2159 = vld [vmem:[%s3] sm:$0xff]
  %v2160 = vld [vmem:[%s3 + $0x8] sm:$0xff]
  %v2161 = vld [vmem:[%s3 + $0x10] sm:$0xff]
  %v2162 = vld [vmem:[%s3 + $0x18] sm:$0xff]
  %v2163 = vld [vmem:[%s3 + $0x20] sm:$0xff]
  %v2164 = vld [vmem:[%s3 + $0x28] sm:$0xff]
  %v2165 = vld [vmem:[%s3 + $0x30] sm:$0xff]
  %v2166 = vld [vmem:[%s3 + $0x38] sm:$0xff]
  %v2167 = vld [vmem:[%s3 + $0x40] sm:$0xff]
  %v2168 = vld [vmem:[%s3 + $0x48] sm:$0xff]
  %v2169 = vld [vmem:[%s3 + $0x50] sm:$0xff]
  %v2170 = vld [vmem:[%s3 + $0x58] sm:$0xff]
  %v2171 = vld [vmem:[%s3 + $0x60] sm:$0xff]
  %v2172 = vld [vmem:[%s3 + $0x68] sm:$0xff]
  %v2173 = vld [vmem:[%s3 + $0x70] sm:$0xff]
  %v2174 = vld [vmem:[%s3 + $0x78] sm:$0xff]
  %v2175 = vld [vmem:[%s4] sm:$0x3]
  %v2177 = vlaneseq
  %v2178 = vshrl.u32 %v2177, 7
  %v2179 = vsub.s32 0, %v2178
  %v2180 = vrot.slane %v2175, %v2179
  %v2181 = vlaneseq
  %v2182 = vshrl.u32 %v2181, 7
  %v2183 = vsub.s32 1, %v2182
  %v2184 = vrot.slane %v2175, %v2183
  %v2203 = vunpack.c.l.b16 %v2159
  %v2204 = vunpack.c.h.b16 %v2159
  %v2205 = vunpack.c.l.b16 %v2160
  %v2206 = vunpack.c.h.b16 %v2160
  %v2207 = vunpack.c.l.b16 %v2161
  %v2208 = vunpack.c.h.b16 %v2161
  %v2209 = vunpack.c.l.b16 %v2162
  %v2210 = vunpack.c.h.b16 %v2162
  %v2211 = vunpack.c.l.b16 %v2163
  %v2212 = vunpack.c.h.b16 %v2163
  %v2213 = vunpack.c.l.b16 %v2164
  %v2214 = vunpack.c.h.b16 %v2164
  %v2215 = vunpack.c.l.b16 %v2165
  %v2216 = vunpack.c.h.b16 %v2165
  %v2217 = vunpack.c.l.b16 %v2166
  %v2218 = vunpack.c.h.b16 %v2166
  %v2219 = vunpack.c.l.b16 %v2167
  %v2220 = vunpack.c.h.b16 %v2167
  %v2221 = vunpack.c.l.b16 %v2168
  %v2222 = vunpack.c.h.b16 %v2168
  %v2223 = vunpack.c.l.b16 %v2169
  %v2224 = vunpack.c.h.b16 %v2169
  %v2225 = vunpack.c.l.b16 %v2170
  %v2226 = vunpack.c.h.b16 %v2170
  %v2227 = vunpack.c.l.b16 %v2171
  %v2228 = vunpack.c.h.b16 %v2171
  %v2229 = vunpack.c.l.b16 %v2172
  %v2230 = vunpack.c.h.b16 %v2172
  %v2231 = vunpack.c.l.b16 %v2173
  %v2232 = vunpack.c.h.b16 %v2173
  %v2233 = vunpack.c.l.b16 %v2174
  %v2234 = vunpack.c.h.b16 %v2174
  %v2235 = vpack.c.b16 %v2205, %v2203
  %v2236 = vpack.c.b16 %v2206, %v2204
  %v2237 = vpack.c.b16 %v2209, %v2207
  %v2238 = vpack.c.b16 %v2210, %v2208
  %v2239 = vpack.c.b16 %v2213, %v2211
  %v2240 = vpack.c.b16 %v2214, %v2212
  %v2241 = vpack.c.b16 %v2217, %v2215
  %v2242 = vpack.c.b16 %v2218, %v2216
  %v2243 = vpack.c.b16 %v2221, %v2219
  %v2244 = vpack.c.b16 %v2222, %v2220
  %v2245 = vpack.c.b16 %v2225, %v2223
  %v2246 = vpack.c.b16 %v2226, %v2224
  %v2247 = vpack.c.b16 %v2229, %v2227
  %v2248 = vpack.c.b16 %v2230, %v2228
  %v2249 = vpack.c.b16 %v2233, %v2231
  %v2250 = vpack.c.b16 %v2234, %v2232
  %2267 = vmatprep.subr.bf16.mxu0 %v2250
  %2268 = vmatpush1.bf16.msra.mxu0 %v2249
  %2269 = vmatprep.subr.bf16.mxu0 %v2248
  %2270 = vmatpush1.bf16.msra.mxu0 %v2247
  %2271 = vmatprep.subr.bf16.mxu0 %v2246
  %2272 = vmatpush1.bf16.msra.mxu0 %v2245
  %2273 = vmatprep.subr.bf16.mxu0 %v2244
  %2274 = vmatpush1.bf16.msra.mxu0 %v2243
  %2275 = vmatprep.subr.bf16.mxu0 %v2242
  %2276 = vmatpush1.bf16.msra.mxu0 %v2241
  %2277 = vmatprep.subr.bf16.mxu0 %v2240
  %2278 = vmatpush1.bf16.msra.mxu0 %v2239
  %2279 = vmatprep.subr.bf16.mxu0 %v2238
  %2280 = vmatpush1.bf16.msra.mxu0 %v2237
  %2281 = vmatprep.subr.bf16.mxu0 %v2236
  %2282 = vmatpush1.bf16.msra.mxu0 %v2235
  %2283 = vmatprep.subr.bf16.mxu0 0
  %2284 = vmatpush2.bf16.msra.mxu0 0
  %2285 = vmatprep.subr.bf16.mxu0 0
  %2286 = vmatpush2.bf16.msra.mxu0 0
  %2287 = vmatprep.subr.bf16.mxu0 0
  %2288 = vmatpush2.bf16.msra.mxu0 0
  %2289 = vmatprep.subr.bf16.mxu0 0
  %2290 = vmatpush2.bf16.msra.mxu0 0
  %2291 = vmatprep.subr.bf16.mxu0 0
  %2292 = vmatpush2.bf16.msra.mxu0 0
  %2293 = vmatprep.subr.bf16.mxu0 0
  %2294 = vmatpush2.bf16.msra.mxu0 0
  %2295 = vmatprep.subr.bf16.mxu0 0
  %2296 = vmatpush2.bf16.msra.mxu0 0
  %2297 = vmatprep.subr.bf16.mxu0 0
  %2298 = vmatpush2.bf16.msra.mxu0 0
  %2299 = vmatprep.mubr.bf16.mxu0 0
  %2300 = vmatmul.mubr.bf16.gmra.mxu0 %v2155
  %v2301 = vpop.f32.mrf.mxu0
  %v2302 = vadd.f32 %v2180, %v2301
  %v2303 = vpop.f32.mrf.mxu0
  %v2304 = vadd.f32 %v2184, %v2303
  %v2305 = vpop.f32.mrf.mxu0
  %v2306 = vadd.f32 %v2180, %v2305
  %v2307 = vpop.f32.mrf.mxu0
  %v2308 = vadd.f32 %v2184, %v2307
  %2309 = vmatprep.mubr.bf16.mxu0 0
  %2310 = vmatmul.mubr.bf16.gmra.mxu0 %v2156
  %v2311 = vpop.f32.mrf.mxu0
  %v2312 = vadd.f32 %v2180, %v2311
  %v2313 = vpop.f32.mrf.mxu0
  %v2314 = vadd.f32 %v2184, %v2313
  %v2315 = vpop.f32.mrf.mxu0
  %v2316 = vadd.f32 %v2180, %v2315
  %v2317 = vpop.f32.mrf.mxu0
  %v2318 = vadd.f32 %v2184, %v2317
  %2319 = vmatprep.mubr.bf16.mxu0 0
  %2320 = vmatmul.mubr.bf16.gmra.mxu0 %v2157
  %v2321 = vpop.f32.mrf.mxu0
  %v2322 = vadd.f32 %v2180, %v2321
  %v2323 = vpop.f32.mrf.mxu0
  %v2324 = vadd.f32 %v2184, %v2323
  %v2325 = vpop.f32.mrf.mxu0
  %v2326 = vadd.f32 %v2180, %v2325
  %v2327 = vpop.f32.mrf.mxu0
  %v2328 = vadd.f32 %v2184, %v2327
  %2329 = vmatprep.mubr.bf16.mxu0 0
  %2330 = vmatmul.mubr.bf16.gmra.mxu0 %v2158
  %v2331 = vpop.f32.mrf.mxu0
  %v2332 = vadd.f32 %v2180, %v2331
  %v2333 = vpop.f32.mrf.mxu0
  %v2334 = vadd.f32 %v2184, %v2333
  %v2335 = vpop.f32.mrf.mxu0
  %v2336 = vadd.f32 %v2180, %v2335
  %v2337 = vpop.f32.mrf.mxu0
  %v2338 = vadd.f32 %v2184, %v2337
  %2339 = vdwg.mxu0
  %2340 = vst [vmem:[#allocation5] sm:$0xff] %v2302
  %2341 = vst [vmem:[#allocation5 + $0x8] sm:$0xff] %v2304
  %2342 = vst [vmem:[#allocation5 + $0x10] sm:$0xff] %v2306
  %2343 = vst [vmem:[#allocation5 + $0x18] sm:$0xff] %v2308
  %2344 = vst [vmem:[#allocation5 + $0x20] sm:$0xff] %v2312
  %2345 = vst [vmem:[#allocation5 + $0x28] sm:$0xff] %v2314
  %2346 = vst [vmem:[#allocation5 + $0x30] sm:$0xff] %v2316
  %2347 = vst [vmem:[#allocation5 + $0x38] sm:$0xff] %v2318
  %2348 = vst [vmem:[#allocation5 + $0x40] sm:$0xff] %v2322
  %2349 = vst [vmem:[#allocation5 + $0x48] sm:$0xff] %v2324
  %2350 = vst [vmem:[#allocation5 + $0x50] sm:$0xff] %v2326
  %2351 = vst [vmem:[#allocation5 + $0x58] sm:$0xff] %v2328
  %2352 = vst [vmem:[#allocation5 + $0x60] sm:$0xff] %v2332
  %2353 = vst [vmem:[#allocation5 + $0x68] sm:$0xff] %v2334
  %2354 = vst [vmem:[#allocation5 + $0x70] sm:$0xff] %v2336
  %2355 = vst [vmem:[#allocation5 + $0x78] sm:$0xff] %v2338
  %v2356 = vld [vmem:[#allocation4 + $0x1] sm:$0xff]
  %v2357 = vld [vmem:[#allocation4 + $0x11] sm:$0xff]
  %v2358 = vld [vmem:[#allocation4 + $0x21] sm:$0xff]
  %v2359 = vld [vmem:[#allocation4 + $0x31] sm:$0xff]
  %v2360 = vld [vmem:[#allocation4 + $0x41] sm:$0xff]
  %v2361 = vld [vmem:[#allocation4 + $0x51] sm:$0xff]
  %v2362 = vld [vmem:[#allocation4 + $0x61] sm:$0xff]
  %v2363 = vld [vmem:[#allocation4 + $0x71] sm:$0xff]
  %v2364 = vpack.c.bf16 %v2357, %v2356
  %v2365 = vpack.c.bf16 %v2359, %v2358
  %v2366 = vpack.c.bf16 %v2361, %v2360
  %v2367 = vpack.c.bf16 %v2363, %v2362
  %s2368 = scalar_lea.vmem %s3, 128
  %v2369 = vld [vmem:[%s2368] sm:$0xff]
  %v2370 = vld [vmem:[%s2368 + $0x8] sm:$0xff]
  %v2371 = vld [vmem:[%s2368 + $0x10] sm:$0xff]
  %v2372 = vld [vmem:[%s2368 + $0x18] sm:$0xff]
  %v2373 = vld [vmem:[%s2368 + $0x20] sm:$0xff]
  %v2374 = vld [vmem:[%s2368 + $0x28] sm:$0xff]
  %v2375 = vld [vmem:[%s2368 + $0x30] sm:$0xff]
  %v2376 = vld [vmem:[%s2368 + $0x38] sm:$0xff]
  %v2377 = vld [vmem:[%s2368 + $0x40] sm:$0xff]
  %v2378 = vld [vmem:[%s2368 + $0x48] sm:$0xff]
  %v2379 = vld [vmem:[%s2368 + $0x50] sm:$0xff]
  %v2380 = vld [vmem:[%s2368 + $0x58] sm:$0xff]
  %v2381 = vld [vmem:[%s2368 + $0x60] sm:$0xff]
  %v2382 = vld [vmem:[%s2368 + $0x68] sm:$0xff]
  %v2383 = vld [vmem:[%s2368 + $0x70] sm:$0xff]
  %v2384 = vld [vmem:[%s2368 + $0x78] sm:$0xff]
  %v2401 = vunpack.c.l.b16 %v2369
  %v2402 = vunpack.c.h.b16 %v2369
  %v2403 = vunpack.c.l.b16 %v2370
  %v2404 = vunpack.c.h.b16 %v2370
  %v2405 = vunpack.c.l.b16 %v2371
  %v2406 = vunpack.c.h.b16 %v2371
  %v2407 = vunpack.c.l.b16 %v2372
  %v2408 = vunpack.c.h.b16 %v2372
  %v2409 = vunpack.c.l.b16 %v2373
  %v2410 = vunpack.c.h.b16 %v2373
  %v2411 = vunpack.c.l.b16 %v2374
  %v2412 = vunpack.c.h.b16 %v2374
  %v2413 = vunpack.c.l.b16 %v2375
  %v2414 = vunpack.c.h.b16 %v2375
  %v2415 = vunpack.c.l.b16 %v2376
  %v2416 = vunpack.c.h.b16 %v2376
  %v2417 = vunpack.c.l.b16 %v2377
  %v2418 = vunpack.c.h.b16 %v2377
  %v2419 = vunpack.c.l.b16 %v2378
  %v2420 = vunpack.c.h.b16 %v2378
  %v2421 = vunpack.c.l.b16 %v2379
  %v2422 = vunpack.c.h.b16 %v2379
  %v2423 = vunpack.c.l.b16 %v2380
  %v2424 = vunpack.c.h.b16 %v2380
  %v2425 = vunpack.c.l.b16 %v2381
  %v2426 = vunpack.c.h.b16 %v2381
  %v2427 = vunpack.c.l.b16 %v2382
  %v2428 = vunpack.c.h.b16 %v2382
  %v2429 = vunpack.c.l.b16 %v2383
  %v2430 = vunpack.c.h.b16 %v2383
  %v2431 = vunpack.c.l.b16 %v2384
  %v2432 = vunpack.c.h.b16 %v2384
  %v2433 = vpack.c.b16 %v2403, %v2401
  %v2434 = vpack.c.b16 %v2404, %v2402
  %v2435 = vpack.c.b16 %v2407, %v2405
  %v2436 = vpack.c.b16 %v2408, %v2406
  %v2437 = vpack.c.b16 %v2411, %v2409
  %v2438 = vpack.c.b16 %v2412, %v2410
  %v2439 = vpack.c.b16 %v2415, %v2413
  %v2440 = vpack.c.b16 %v2416, %v2414
  %v2441 = vpack.c.b16 %v2419, %v2417
  %v2442 = vpack.c.b16 %v2420, %v2418
  %v2443 = vpack.c.b16 %v2423, %v2421
  %v2444 = vpack.c.b16 %v2424, %v2422
  %v2445 = vpack.c.b16 %v2427, %v2425
  %v2446 = vpack.c.b16 %v2428, %v2426
  %v2447 = vpack.c.b16 %v2431, %v2429
  %v2448 = vpack.c.b16 %v2432, %v2430
  %2465 = vmatprep.subr.bf16.mxu0 %v2448
  %2466 = vmatpush1.bf16.msra.mxu0 %v2447
  %2467 = vmatprep.subr.bf16.mxu0 %v2446
  %2468 = vmatpush1.bf16.msra.mxu0 %v2445
  %2469 = vmatprep.subr.bf16.mxu0 %v2444
  %2470 = vmatpush1.bf16.msra.mxu0 %v2443
  %2471 = vmatprep.subr.bf16.mxu0 %v2442
  %2472 = vmatpush1.bf16.msra.mxu0 %v2441
  %2473 = vmatprep.subr.bf16.mxu0 %v2440
  %2474 = vmatpush1.bf16.msra.mxu0 %v2439
  %2475 = vmatprep.subr.bf16.mxu0 %v2438
  %2476 = vmatpush1.bf16.msra.mxu0 %v2437
  %2477 = vmatprep.subr.bf16.mxu0 %v2436
  %2478 = vmatpush1.bf16.msra.mxu0 %v2435
  %2479 = vmatprep.subr.bf16.mxu0 %v2434
  %2480 = vmatpush1.bf16.msra.mxu0 %v2433
  %2481 = vmatprep.subr.bf16.mxu0 0
  %2482 = vmatpush2.bf16.msra.mxu0 0
  %2483 = vmatprep.subr.bf16.mxu0 0
  %2484 = vmatpush2.bf16.msra.mxu0 0
  %2485 = vmatprep.subr.bf16.mxu0 0
  %2486 = vmatpush2.bf16.msra.mxu0 0
  %2487 = vmatprep.subr.bf16.mxu0 0
  %2488 = vmatpush2.bf16.msra.mxu0 0
  %2489 = vmatprep.subr.bf16.mxu0 0
  %2490 = vmatpush2.bf16.msra.mxu0 0
  %2491 = vmatprep.subr.bf16.mxu0 0
  %2492 = vmatpush2.bf16.msra.mxu0 0
  %2493 = vmatprep.subr.bf16.mxu0 0
  %2494 = vmatpush2.bf16.msra.mxu0 0
  %2495 = vmatprep.subr.bf16.mxu0 0
  %2496 = vmatpush2.bf16.msra.mxu0 0
  %2497 = vmatprep.mubr.bf16.mxu0 0
  %2498 = vmatmul.mubr.bf16.gmra.mxu0 %v2364
  %v2499 = vpop.f32.mrf.mxu0
  %v2500 = vadd.f32 0.0, %v2499
  %v2501 = vpop.f32.mrf.mxu0
  %v2502 = vadd.f32 0.0, %v2501
  %v2503 = vpop.f32.mrf.mxu0
  %v2504 = vadd.f32 0.0, %v2503
  %v2505 = vpop.f32.mrf.mxu0
  %v2506 = vadd.f32 0.0, %v2505
  %2507 = vmatprep.mubr.bf16.mxu0 0
  %2508 = vmatmul.mubr.bf16.gmra.mxu0 %v2365
  %v2509 = vpop.f32.mrf.mxu0
  %v2510 = vadd.f32 0.0, %v2509
  %v2511 = vpop.f32.mrf.mxu0
  %v2512 = vadd.f32 0.0, %v2511
  %v2513 = vpop.f32.mrf.mxu0
  %v2514 = vadd.f32 0.0, %v2513
  %v2515 = vpop.f32.mrf.mxu0
  %v2516 = vadd.f32 0.0, %v2515
  %2517 = vmatprep.mubr.bf16.mxu0 0
  %2518 = vmatmul.mubr.bf16.gmra.mxu0 %v2366
  %v2519 = vpop.f32.mrf.mxu0
  %v2520 = vadd.f32 0.0, %v2519
  %v2521 = vpop.f32.mrf.mxu0
  %v2522 = vadd.f32 0.0, %v2521
  %v2523 = vpop.f32.mrf.mxu0
  %v2524 = vadd.f32 0.0, %v2523
  %v2525 = vpop.f32.mrf.mxu0
  %v2526 = vadd.f32 0.0, %v2525
  %2527 = vmatprep.mubr.bf16.mxu0 0
  %2528 = vmatmul.mubr.bf16.gmra.mxu0 %v2367
  %v2529 = vpop.f32.mrf.mxu0
  %v2530 = vadd.f32 0.0, %v2529
  %v2531 = vpop.f32.mrf.mxu0
  %v2532 = vadd.f32 0.0, %v2531
  %v2533 = vpop.f32.mrf.mxu0
  %v2534 = vadd.f32 0.0, %v2533
  %v2535 = vpop.f32.mrf.mxu0
  %v2536 = vadd.f32 0.0, %v2535
  %2537 = vdwg.mxu0
  %v2538 = vld [vmem:[#allocation5] sm:$0xff]
  %v2539 = vld [vmem:[#allocation5 + $0x8] sm:$0xff]
  %v2540 = vld [vmem:[#allocation5 + $0x10] sm:$0xff]
  %v2541 = vld [vmem:[#allocation5 + $0x18] sm:$0xff]
  %v2542 = vld [vmem:[#allocation5 + $0x20] sm:$0xff]
  %v2543 = vld [vmem:[#allocation5 + $0x28] sm:$0xff]
  %v2544 = vld [vmem:[#allocation5 + $0x30] sm:$0xff]
  %v2545 = vld [vmem:[#allocation5 + $0x38] sm:$0xff]
  %v2546 = vld [vmem:[#allocation5 + $0x40] sm:$0xff]
  %v2547 = vld [vmem:[#allocation5 + $0x48] sm:$0xff]
  %v2548 = vld [vmem:[#allocation5 + $0x50] sm:$0xff]
  %v2549 = vld [vmem:[#allocation5 + $0x58] sm:$0xff]
  %v2550 = vld [vmem:[#allocation5 + $0x60] sm:$0xff]
  %v2551 = vld [vmem:[#allocation5 + $0x68] sm:$0xff]
  %v2552 = vld [vmem:[#allocation5 + $0x70] sm:$0xff]
  %v2553 = vld [vmem:[#allocation5 + $0x78] sm:$0xff]
  %v2554 = vadd.f32 %v2538, %v2500
  %v2555 = vadd.f32 %v2539, %v2502
  %v2556 = vadd.f32 %v2540, %v2504
  %v2557 = vadd.f32 %v2541, %v2506
  %v2558 = vadd.f32 %v2542, %v2510
  %v2559 = vadd.f32 %v2543, %v2512
  %v2560 = vadd.f32 %v2544, %v2514
  %v2561 = vadd.f32 %v2545, %v2516
  %v2562 = vadd.f32 %v2546, %v2520
  %v2563 = vadd.f32 %v2547, %v2522
  %v2564 = vadd.f32 %v2548, %v2524
  %v2565 = vadd.f32 %v2549, %v2526
  %v2566 = vadd.f32 %v2550, %v2530
  %v2567 = vadd.f32 %v2551, %v2532
  %v2568 = vadd.f32 %v2552, %v2534
  %v2569 = vadd.f32 %v2553, %v2536
  %2570 = vst [vmem:[#allocation5] sm:$0xff] %v2554
  %2571 = vst [vmem:[#allocation5 + $0x8] sm:$0xff] %v2555
  %2572 = vst [vmem:[#allocation5 + $0x10] sm:$0xff] %v2556
  %2573 = vst [vmem:[#allocation5 + $0x18] sm:$0xff] %v2557
  %2574 = vst [vmem:[#allocation5 + $0x20] sm:$0xff] %v2558
  %2575 = vst [vmem:[#allocation5 + $0x28] sm:$0xff] %v2559
  %2576 = vst [vmem:[#allocation5 + $0x30] sm:$0xff] %v2560
  %2577 = vst [vmem:[#allocation5 + $0x38] sm:$0xff] %v2561
  %2578 = vst [vmem:[#allocation5 + $0x40] sm:$0xff] %v2562
  %2579 = vst [vmem:[#allocation5 + $0x48] sm:$0xff] %v2563
  %2580 = vst [vmem:[#allocation5 + $0x50] sm:$0xff] %v2564
  %2581 = vst [vmem:[#allocation5 + $0x58] sm:$0xff] %v2565
  %2582 = vst [vmem:[#allocation5 + $0x60] sm:$0xff] %v2566
  %2583 = vst [vmem:[#allocation5 + $0x68] sm:$0xff] %v2567
  %2584 = vst [vmem:[#allocation5 + $0x70] sm:$0xff] %v2568
  %2585 = vst [vmem:[#allocation5 + $0x78] sm:$0xff] %v2569
  %v2586 = vld [vmem:[#allocation4 + $0x2] sm:$0xff]
  %v2587 = vld [vmem:[#allocation4 + $0x12] sm:$0xff]
  %v2588 = vld [vmem:[#allocation4 + $0x22] sm:$0xff]
  %v2589 = vld [vmem:[#allocation4 + $0x32] sm:$0xff]
  %v2590 = vld [vmem:[#allocation4 + $0x42] sm:$0xff]
  %v2591 = vld [vmem:[#allocation4 + $0x52] sm:$0xff]
  %v2592 = vld [vmem:[#allocation4 + $0x62] sm:$0xff]
  %v2593 = vld [vmem:[#allocation4 + $0x72] sm:$0xff]
  %v2594 = vpack.c.bf16 %v2587, %v2586
  %v2595 = vpack.c.bf16 %v2589, %v2588
  %v2596 = vpack.c.bf16 %v2591, %v2590
  %v2597 = vpack.c.bf16 %v2593, %v2592
  %s2598 = scalar_lea.vmem %s3, 256
  %v2599 = vld [vmem:[%s2598] sm:$0xff]
  %v2600 = vld [vmem:[%s2598 + $0x8] sm:$0xff]
  %v2601 = vld [vmem:[%s2598 + $0x10] sm:$0xff]
  %v2602 = vld [vmem:[%s2598 + $0x18] sm:$0xff]
  %v2603 = vld [vmem:[%s2598 + $0x20] sm:$0xff]
  %v2604 = vld [vmem:[%s2598 + $0x28] sm:$0xff]
  %v2605 = vld [vmem:[%s2598 + $0x30] sm:$0xff]
  %v2606 = vld [vmem:[%s2598 + $0x38] sm:$0xff]
  %v2607 = vld [vmem:[%s2598 + $0x40] sm:$0xff]
  %v2608 = vld [vmem:[%s2598 + $0x48] sm:$0xff]
  %v2609 = vld [vmem:[%s2598 + $0x50] sm:$0xff]
  %v2610 = vld [vmem:[%s2598 + $0x58] sm:$0xff]
  %v2611 = vld [vmem:[%s2598 + $0x60] sm:$0xff]
  %v2612 = vld [vmem:[%s2598 + $0x68] sm:$0xff]
  %v2613 = vld [vmem:[%s2598 + $0x70] sm:$0xff]
  %v2614 = vld [vmem:[%s2598 + $0x78] sm:$0xff]
  %v2631 = vunpack.c.l.b16 %v2599
  %v2632 = vunpack.c.h.b16 %v2599
  %v2633 = vunpack.c.l.b16 %v2600
  %v2634 = vunpack.c.h.b16 %v2600
  %v2635 = vunpack.c.l.b16 %v2601
  %v2636 = vunpack.c.h.b16 %v2601
  %v2637 = vunpack.c.l.b16 %v2602
  %v2638 = vunpack.c.h.b16 %v2602
  %v2639 = vunpack.c.l.b16 %v2603
  %v2640 = vunpack.c.h.b16 %v2603
  %v2641 = vunpack.c.l.b16 %v2604
  %v2642 = vunpack.c.h.b16 %v2604
  %v2643 = vunpack.c.l.b16 %v2605
  %v2644 = vunpack.c.h.b16 %v2605
  %v2645 = vunpack.c.l.b16 %v2606
  %v2646 = vunpack.c.h.b16 %v2606
  %v2647 = vunpack.c.l.b16 %v2607
  %v2648 = vunpack.c.h.b16 %v2607
  %v2649 = vunpack.c.l.b16 %v2608
  %v2650 = vunpack.c.h.b16 %v2608
  %v2651 = vunpack.c.l.b16 %v2609
  %v2652 = vunpack.c.h.b16 %v2609
  %v2653 = vunpack.c.l.b16 %v2610
  %v2654 = vunpack.c.h.b16 %v2610
  %v2655 = vunpack.c.l.b16 %v2611
  %v2656 = vunpack.c.h.b16 %v2611
  %v2657 = vunpack.c.l.b16 %v2612
  %v2658 = vunpack.c.h.b16 %v2612
  %v2659 = vunpack.c.l.b16 %v2613
  %v2660 = vunpack.c.h.b16 %v2613
  %v2661 = vunpack.c.l.b16 %v2614
  %v2662 = vunpack.c.h.b16 %v2614
  %v2663 = vpack.c.b16 %v2633, %v2631
  %v2664 = vpack.c.b16 %v2634, %v2632
  %v2665 = vpack.c.b16 %v2637, %v2635
  %v2666 = vpack.c.b16 %v2638, %v2636
  %v2667 = vpack.c.b16 %v2641, %v2639
  %v2668 = vpack.c.b16 %v2642, %v2640
  %v2669 = vpack.c.b16 %v2645, %v2643
  %v2670 = vpack.c.b16 %v2646, %v2644
  %v2671 = vpack.c.b16 %v2649, %v2647
  %v2672 = vpack.c.b16 %v2650, %v2648
  %v2673 = vpack.c.b16 %v2653, %v2651
  %v2674 = vpack.c.b16 %v2654, %v2652
  %v2675 = vpack.c.b16 %v2657, %v2655
  %v2676 = vpack.c.b16 %v2658, %v2656
  %v2677 = vpack.c.b16 %v2661, %v2659
  %v2678 = vpack.c.b16 %v2662, %v2660
  %2695 = vmatprep.subr.bf16.mxu0 %v2678
  %2696 = vmatpush1.bf16.msra.mxu0 %v2677
  %2697 = vmatprep.subr.bf16.mxu0 %v2676
  %2698 = vmatpush1.bf16.msra.mxu0 %v2675
  %2699 = vmatprep.subr.bf16.mxu0 %v2674
  %2700 = vmatpush1.bf16.msra.mxu0 %v2673
  %2701 = vmatprep.subr.bf16.mxu0 %v2672
  %2702 = vmatpush1.bf16.msra.mxu0 %v2671
  %2703 = vmatprep.subr.bf16.mxu0 %v2670
  %2704 = vmatpush1.bf16.msra.mxu0 %v2669
  %2705 = vmatprep.subr.bf16.mxu0 %v2668
  %2706 = vmatpush1.bf16.msra.mxu0 %v2667
  %2707 = vmatprep.subr.bf16.mxu0 %v2666
  %2708 = vmatpush1.bf16.msra.mxu0 %v2665
  %2709 = vmatprep.subr.bf16.mxu0 %v2664
  %2710 = vmatpush1.bf16.msra.mxu0 %v2663
  %2711 = vmatprep.subr.bf16.mxu0 0
  %2712 = vmatpush2.bf16.msra.mxu0 0
  %2713 = vmatprep.subr.bf16.mxu0 0
  %2714 = vmatpush2.bf16.msra.mxu0 0
  %2715 = vmatprep.subr.bf16.mxu0 0
  %2716 = vmatpush2.bf16.msra.mxu0 0
  %2717 = vmatprep.subr.bf16.mxu0 0
  %2718 = vmatpush2.bf16.msra.mxu0 0
  %2719 = vmatprep.subr.bf16.mxu0 0
  %2720 = vmatpush2.bf16.msra.mxu0 0
  %2721 = vmatprep.subr.bf16.mxu0 0
  %2722 = vmatpush2.bf16.msra.mxu0 0
  %2723 = vmatprep.subr.bf16.mxu0 0
  %2724 = vmatpush2.bf16.msra.mxu0 0
  %2725 = vmatprep.subr.bf16.mxu0 0
  %2726 = vmatpush2.bf16.msra.mxu0 0
  %2727 = vmatprep.mubr.bf16.mxu0 0
  %2728 = vmatmul.mubr.bf16.gmra.mxu0 %v2594
  %v2729 = vpop.f32.mrf.mxu0
  %v2730 = vadd.f32 0.0, %v2729
  %v2731 = vpop.f32.mrf.mxu0
  %v2732 = vadd.f32 0.0, %v2731
  %v2733 = vpop.f32.mrf.mxu0
  %v2734 = vadd.f32 0.0, %v2733
  %v2735 = vpop.f32.mrf.mxu0
  %v2736 = vadd.f32 0.0, %v2735
  %2737 = vmatprep.mubr.bf16.mxu0 0
  %2738 = vmatmul.mubr.bf16.gmra.mxu0 %v2595
  %v2739 = vpop.f32.mrf.mxu0
  %v2740 = vadd.f32 0.0, %v2739
  %v2741 = vpop.f32.mrf.mxu0
  %v2742 = vadd.f32 0.0, %v2741
  %v2743 = vpop.f32.mrf.mxu0
  %v2744 = vadd.f32 0.0, %v2743
  %v2745 = vpop.f32.mrf.mxu0
  %v2746 = vadd.f32 0.0, %v2745
  %2747 = vmatprep.mubr.bf16.mxu0 0
  %2748 = vmatmul.mubr.bf16.gmra.mxu0 %v2596
  %v2749 = vpop.f32.mrf.mxu0
  %v2750 = vadd.f32 0.0, %v2749
  %v2751 = vpop.f32.mrf.mxu0
  %v2752 = vadd.f32 0.0, %v2751
  %v2753 = vpop.f32.mrf.mxu0
  %v2754 = vadd.f32 0.0, %v2753
  %v2755 = vpop.f32.mrf.mxu0
  %v2756 = vadd.f32 0.0, %v2755
  %2757 = vmatprep.mubr.bf16.mxu0 0
  %2758 = vmatmul.mubr.bf16.gmra.mxu0 %v2597
  %v2759 = vpop.f32.mrf.mxu0
  %v2760 = vadd.f32 0.0, %v2759
  %v2761 = vpop.f32.mrf.mxu0
  %v2762 = vadd.f32 0.0, %v2761
  %v2763 = vpop.f32.mrf.mxu0
  %v2764 = vadd.f32 0.0, %v2763
  %v2765 = vpop.f32.mrf.mxu0
  %v2766 = vadd.f32 0.0, %v2765
  %2767 = vdwg.mxu0
  %v2768 = vld [vmem:[#allocation5] sm:$0xff]
  %v2769 = vld [vmem:[#allocation5 + $0x8] sm:$0xff]
  %v2770 = vld [vmem:[#allocation5 + $0x10] sm:$0xff]
  %v2771 = vld [vmem:[#allocation5 + $0x18] sm:$0xff]
  %v2772 = vld [vmem:[#allocation5 + $0x20] sm:$0xff]
  %v2773 = vld [vmem:[#allocation5 + $0x28] sm:$0xff]
  %v2774 = vld [vmem:[#allocation5 + $0x30] sm:$0xff]
  %v2775 = vld [vmem:[#allocation5 + $0x38] sm:$0xff]
  %v2776 = vld [vmem:[#allocation5 + $0x40] sm:$0xff]
  %v2777 = vld [vmem:[#allocation5 + $0x48] sm:$0xff]
  %v2778 = vld [vmem:[#allocation5 + $0x50] sm:$0xff]
  %v2779 = vld [vmem:[#allocation5 + $0x58] sm:$0xff]
  %v2780 = vld [vmem:[#allocation5 + $0x60] sm:$0xff]
  %v2781 = vld [vmem:[#allocation5 + $0x68] sm:$0xff]
  %v2782 = vld [vmem:[#allocation5 + $0x70] sm:$0xff]
  %v2783 = vld [vmem:[#allocation5 + $0x78] sm:$0xff]
  %v2784 = vadd.f32 %v2768, %v2730
  %v2785 = vadd.f32 %v2769, %v2732
  %v2786 = vadd.f32 %v2770, %v2734
  %v2787 = vadd.f32 %v2771, %v2736
  %v2788 = vadd.f32 %v2772, %v2740
  %v2789 = vadd.f32 %v2773, %v2742
  %v2790 = vadd.f32 %v2774, %v2744
  %v2791 = vadd.f32 %v2775, %v2746
  %v2792 = vadd.f32 %v2776, %v2750
  %v2793 = vadd.f32 %v2777, %v2752
  %v2794 = vadd.f32 %v2778, %v2754
  %v2795 = vadd.f32 %v2779, %v2756
  %v2796 = vadd.f32 %v2780, %v2760
  %v2797 = vadd.f32 %v2781, %v2762
  %v2798 = vadd.f32 %v2782, %v2764
  %v2799 = vadd.f32 %v2783, %v2766
  %2800 = vst [vmem:[#allocation5] sm:$0xff] %v2784
  %2801 = vst [vmem:[#allocation5 + $0x8] sm:$0xff] %v2785
  %2802 = vst [vmem:[#allocation5 + $0x10] sm:$0xff] %v2786
  %2803 = vst [vmem:[#allocation5 + $0x18] sm:$0xff] %v2787
  %2804 = vst [vmem:[#allocation5 + $0x20] sm:$0xff] %v2788
  %2805 = vst [vmem:[#allocation5 + $0x28] sm:$0xff] %v2789
  %2806 = vst [vmem:[#allocation5 + $0x30] sm:$0xff] %v2790
  %2807 = vst [vmem:[#allocation5 + $0x38] sm:$0xff] %v2791
  %2808 = vst [vmem:[#allocation5 + $0x40] sm:$0xff] %v2792
  %2809 = vst [vmem:[#allocation5 + $0x48] sm:$0xff] %v2793
  %2810 = vst [vmem:[#allocation5 + $0x50] sm:$0xff] %v2794
  %2811 = vst [vmem:[#allocation5 + $0x58] sm:$0xff] %v2795
  %2812 = vst [vmem:[#allocation5 + $0x60] sm:$0xff] %v2796
  %2813 = vst [vmem:[#allocation5 + $0x68] sm:$0xff] %v2797
  %2814 = vst [vmem:[#allocation5 + $0x70] sm:$0xff] %v2798
  %2815 = vst [vmem:[#allocation5 + $0x78] sm:$0xff] %v2799
  %v2816 = vld [vmem:[#allocation4 + $0x3] sm:$0xff]
  %v2817 = vld [vmem:[#allocation4 + $0x13] sm:$0xff]
  %v2818 = vld [vmem:[#allocation4 + $0x23] sm:$0xff]
  %v2819 = vld [vmem:[#allocation4 + $0x33] sm:$0xff]
  %v2820 = vld [vmem:[#allocation4 + $0x43] sm:$0xff]
  %v2821 = vld [vmem:[#allocation4 + $0x53] sm:$0xff]
  %v2822 = vld [vmem:[#allocation4 + $0x63] sm:$0xff]
  %v2823 = vld [vmem:[#allocation4 + $0x73] sm:$0xff]
  %v2824 = vpack.c.bf16 %v2817, %v2816
  %v2825 = vpack.c.bf16 %v2819, %v2818
  %v2826 = vpack.c.bf16 %v2821, %v2820
  %v2827 = vpack.c.bf16 %v2823, %v2822
  %s2828 = scalar_lea.vmem %s3, 384
  %v2829 = vld [vmem:[%s2828] sm:$0xff]
  %v2830 = vld [vmem:[%s2828 + $0x8] sm:$0xff]
  %v2831 = vld [vmem:[%s2828 + $0x10] sm:$0xff]
  %v2832 = vld [vmem:[%s2828 + $0x18] sm:$0xff]
  %v2833 = vld [vmem:[%s2828 + $0x20] sm:$0xff]
  %v2834 = vld [vmem:[%s2828 + $0x28] sm:$0xff]
  %v2835 = vld [vmem:[%s2828 + $0x30] sm:$0xff]
  %v2836 = vld [vmem:[%s2828 + $0x38] sm:$0xff]
  %v2837 = vld [vmem:[%s2828 + $0x40] sm:$0xff]
  %v2838 = vld [vmem:[%s2828 + $0x48] sm:$0xff]
  %v2839 = vld [vmem:[%s2828 + $0x50] sm:$0xff]
  %v2840 = vld [vmem:[%s2828 + $0x58] sm:$0xff]
  %v2841 = vld [vmem:[%s2828 + $0x60] sm:$0xff]
  %v2842 = vld [vmem:[%s2828 + $0x68] sm:$0xff]
  %v2843 = vld [vmem:[%s2828 + $0x70] sm:$0xff]
  %v2844 = vld [vmem:[%s2828 + $0x78] sm:$0xff]
  %v2861 = vunpack.c.l.b16 %v2829
  %v2862 = vunpack.c.h.b16 %v2829
  %v2863 = vunpack.c.l.b16 %v2830
  %v2864 = vunpack.c.h.b16 %v2830
  %v2865 = vunpack.c.l.b16 %v2831
  %v2866 = vunpack.c.h.b16 %v2831
  %v2867 = vunpack.c.l.b16 %v2832
  %v2868 = vunpack.c.h.b16 %v2832
  %v2869 = vunpack.c.l.b16 %v2833
  %v2870 = vunpack.c.h.b16 %v2833
  %v2871 = vunpack.c.l.b16 %v2834
  %v2872 = vunpack.c.h.b16 %v2834
  %v2873 = vunpack.c.l.b16 %v2835
  %v2874 = vunpack.c.h.b16 %v2835
  %v2875 = vunpack.c.l.b16 %v2836
  %v2876 = vunpack.c.h.b16 %v2836
  %v2877 = vunpack.c.l.b16 %v2837
  %v2878 = vunpack.c.h.b16 %v2837
  %v2879 = vunpack.c.l.b16 %v2838
  %v2880 = vunpack.c.h.b16 %v2838
  %v2881 = vunpack.c.l.b16 %v2839
  %v2882 = vunpack.c.h.b16 %v2839
  %v2883 = vunpack.c.l.b16 %v2840
  %v2884 = vunpack.c.h.b16 %v2840
  %v2885 = vunpack.c.l.b16 %v2841
  %v2886 = vunpack.c.h.b16 %v2841
  %v2887 = vunpack.c.l.b16 %v2842
  %v2888 = vunpack.c.h.b16 %v2842
  %v2889 = vunpack.c.l.b16 %v2843
  %v2890 = vunpack.c.h.b16 %v2843
  %v2891 = vunpack.c.l.b16 %v2844
  %v2892 = vunpack.c.h.b16 %v2844
  %v2893 = vpack.c.b16 %v2863, %v2861
  %v2894 = vpack.c.b16 %v2864, %v2862
  %v2895 = vpack.c.b16 %v2867, %v2865
  %v2896 = vpack.c.b16 %v2868, %v2866
  %v2897 = vpack.c.b16 %v2871, %v2869
  %v2898 = vpack.c.b16 %v2872, %v2870
  %v2899 = vpack.c.b16 %v2875, %v2873
  %v2900 = vpack.c.b16 %v2876, %v2874
  %v2901 = vpack.c.b16 %v2879, %v2877
  %v2902 = vpack.c.b16 %v2880, %v2878
  %v2903 = vpack.c.b16 %v2883, %v2881
  %v2904 = vpack.c.b16 %v2884, %v2882
  %v2905 = vpack.c.b16 %v2887, %v2885
  %v2906 = vpack.c.b16 %v2888, %v2886
  %v2907 = vpack.c.b16 %v2891, %v2889
  %v2908 = vpack.c.b16 %v2892, %v2890
  %2925 = vmatprep.subr.bf16.mxu0 %v2908
  %2926 = vmatpush1.bf16.msra.mxu0 %v2907
  %2927 = vmatprep.subr.bf16.mxu0 %v2906
  %2928 = vmatpush1.bf16.msra.mxu0 %v2905
  %2929 = vmatprep.subr.bf16.mxu0 %v2904
  %2930 = vmatpush1.bf16.msra.mxu0 %v2903
  %2931 = vmatprep.subr.bf16.mxu0 %v2902
  %2932 = vmatpush1.bf16.msra.mxu0 %v2901
  %2933 = vmatprep.subr.bf16.mxu0 %v2900
  %2934 = vmatpush1.bf16.msra.mxu0 %v2899
  %2935 = vmatprep.subr.bf16.mxu0 %v2898
  %2936 = vmatpush1.bf16.msra.mxu0 %v2897
  %2937 = vmatprep.subr.bf16.mxu0 %v2896
  %2938 = vmatpush1.bf16.msra.mxu0 %v2895
  %2939 = vmatprep.subr.bf16.mxu0 %v2894
  %2940 = vmatpush1.bf16.msra.mxu0 %v2893
  %2941 = vmatprep.subr.bf16.mxu0 0
  %2942 = vmatpush2.bf16.msra.mxu0 0
  %2943 = vmatprep.subr.bf16.mxu0 0
  %2944 = vmatpush2.bf16.msra.mxu0 0
  %2945 = vmatprep.subr.bf16.mxu0 0
  %2946 = vmatpush2.bf16.msra.mxu0 0
  %2947 = vmatprep.subr.bf16.mxu0 0
  %2948 = vmatpush2.bf16.msra.mxu0 0
  %2949 = vmatprep.subr.bf16.mxu0 0
  %2950 = vmatpush2.bf16.msra.mxu0 0
  %2951 = vmatprep.subr.bf16.mxu0 0
  %2952 = vmatpush2.bf16.msra.mxu0 0
  %2953 = vmatprep.subr.bf16.mxu0 0
  %2954 = vmatpush2.bf16.msra.mxu0 0
  %2955 = vmatprep.subr.bf16.mxu0 0
  %2956 = vmatpush2.bf16.msra.mxu0 0
  %2957 = vmatprep.mubr.bf16.mxu0 0
  %2958 = vmatmul.mubr.bf16.gmra.mxu0 %v2824
  %v2959 = vpop.f32.mrf.mxu0
  %v2960 = vadd.f32 0.0, %v2959
  %v2961 = vpop.f32.mrf.mxu0
  %v2962 = vadd.f32 0.0, %v2961
  %v2963 = vpop.f32.mrf.mxu0
  %v2964 = vadd.f32 0.0, %v2963
  %v2965 = vpop.f32.mrf.mxu0
  %v2966 = vadd.f32 0.0, %v2965
  %2967 = vmatprep.mubr.bf16.mxu0 0
  %2968 = vmatmul.mubr.bf16.gmra.mxu0 %v2825
  %v2969 = vpop.f32.mrf.mxu0
  %v2970 = vadd.f32 0.0, %v2969
  %v2971 = vpop.f32.mrf.mxu0
  %v2972 = vadd.f32 0.0, %v2971
  %v2973 = vpop.f32.mrf.mxu0
  %v2974 = vadd.f32 0.0, %v2973
  %v2975 = vpop.f32.mrf.mxu0
  %v2976 = vadd.f32 0.0, %v2975
  %2977 = vmatprep.mubr.bf16.mxu0 0
  %2978 = vmatmul.mubr.bf16.gmra.mxu0 %v2826
  %v2979 = vpop.f32.mrf.mxu0
  %v2980 = vadd.f32 0.0, %v2979
  %v2981 = vpop.f32.mrf.mxu0
  %v2982 = vadd.f32 0.0, %v2981
  %v2983 = vpop.f32.mrf.mxu0
  %v2984 = vadd.f32 0.0, %v2983
  %v2985 = vpop.f32.mrf.mxu0
  %v2986 = vadd.f32 0.0, %v2985
  %2987 = vmatprep.mubr.bf16.mxu0 0
  %2988 = vmatmul.mubr.bf16.gmra.mxu0 %v2827
  %v2989 = vpop.f32.mrf.mxu0
  %v2990 = vadd.f32 0.0, %v2989
  %v2991 = vpop.f32.mrf.mxu0
  %v2992 = vadd.f32 0.0, %v2991
  %v2993 = vpop.f32.mrf.mxu0
  %v2994 = vadd.f32 0.0, %v2993
  %v2995 = vpop.f32.mrf.mxu0
  %v2996 = vadd.f32 0.0, %v2995
  %2997 = vdwg.mxu0
  %v2998 = vld [vmem:[#allocation5] sm:$0xff]
  %v2999 = vld [vmem:[#allocation5 + $0x8] sm:$0xff]
  %v3000 = vld [vmem:[#allocation5 + $0x10] sm:$0xff]
  %v3001 = vld [vmem:[#allocation5 + $0x18] sm:$0xff]
  %v3002 = vld [vmem:[#allocation5 + $0x20] sm:$0xff]
  %v3003 = vld [vmem:[#allocation5 + $0x28] sm:$0xff]
  %v3004 = vld [vmem:[#allocation5 + $0x30] sm:$0xff]
  %v3005 = vld [vmem:[#allocation5 + $0x38] sm:$0xff]
  %v3006 = vld [vmem:[#allocation5 + $0x40] sm:$0xff]
  %v3007 = vld [vmem:[#allocation5 + $0x48] sm:$0xff]
  %v3008 = vld [vmem:[#allocation5 + $0x50] sm:$0xff]
  %v3009 = vld [vmem:[#allocation5 + $0x58] sm:$0xff]
  %v3010 = vld [vmem:[#allocation5 + $0x60] sm:$0xff]
  %v3011 = vld [vmem:[#allocation5 + $0x68] sm:$0xff]
  %v3012 = vld [vmem:[#allocation5 + $0x70] sm:$0xff]
  %v3013 = vld [vmem:[#allocation5 + $0x78] sm:$0xff]
  %v3014 = vadd.f32 %v2998, %v2960
  %v3015 = vadd.f32 %v2999, %v2962
  %v3016 = vadd.f32 %v3000, %v2964
  %v3017 = vadd.f32 %v3001, %v2966
  %v3018 = vadd.f32 %v3002, %v2970
  %v3019 = vadd.f32 %v3003, %v2972
  %v3020 = vadd.f32 %v3004, %v2974
  %v3021 = vadd.f32 %v3005, %v2976
  %v3022 = vadd.f32 %v3006, %v2980
  %v3023 = vadd.f32 %v3007, %v2982
  %v3024 = vadd.f32 %v3008, %v2984
  %v3025 = vadd.f32 %v3009, %v2986
  %v3026 = vadd.f32 %v3010, %v2990
  %v3027 = vadd.f32 %v3011, %v2992
  %v3028 = vadd.f32 %v3012, %v2994
  %v3029 = vadd.f32 %v3013, %v2996
  %3030 = vst [vmem:[#allocation5] sm:$0xff] %v3014
  %3031 = vst [vmem:[#allocation5 + $0x8] sm:$0xff] %v3015
  %3032 = vst [vmem:[#allocation5 + $0x10] sm:$0xff] %v3016
  %3033 = vst [vmem:[#allocation5 + $0x18] sm:$0xff] %v3017
  %3034 = vst [vmem:[#allocation5 + $0x20] sm:$0xff] %v3018
  %3035 = vst [vmem:[#allocation5 + $0x28] sm:$0xff] %v3019
  %3036 = vst [vmem:[#allocation5 + $0x30] sm:$0xff] %v3020
  %3037 = vst [vmem:[#allocation5 + $0x38] sm:$0xff] %v3021
  %3038 = vst [vmem:[#allocation5 + $0x40] sm:$0xff] %v3022
  %3039 = vst [vmem:[#allocation5 + $0x48] sm:$0xff] %v3023
  %3040 = vst [vmem:[#allocation5 + $0x50] sm:$0xff] %v3024
  %3041 = vst [vmem:[#allocation5 + $0x58] sm:$0xff] %v3025
  %3042 = vst [vmem:[#allocation5 + $0x60] sm:$0xff] %v3026
  %3043 = vst [vmem:[#allocation5 + $0x68] sm:$0xff] %v3027
  %3044 = vst [vmem:[#allocation5 + $0x70] sm:$0xff] %v3028
  %3045 = vst [vmem:[#allocation5 + $0x78] sm:$0xff] %v3029
  %v3046 = vld [vmem:[#allocation4 + $0x4] sm:$0xff]
  %v3047 = vld [vmem:[#allocation4 + $0x14] sm:$0xff]
  %v3048 = vld [vmem:[#allocation4 + $0x24] sm:$0xff]
  %v3049 = vld [vmem:[#allocation4 + $0x34] sm:$0xff]
  %v3050 = vld [vmem:[#allocation4 + $0x44] sm:$0xff]
  %v3051 = vld [vmem:[#allocation4 + $0x54] sm:$0xff]
  %v3052 = vld [vmem:[#allocation4 + $0x64] sm:$0xff]
  %v3053 = vld [vmem:[#allocation4 + $0x74] sm:$0xff]
  %v3054 = vpack.c.bf16 %v3047, %v3046
  %v3055 = vpack.c.bf16 %v3049, %v3048
  %v3056 = vpack.c.bf16 %v3051, %v3050
  %v3057 = vpack.c.bf16 %v3053, %v3052
  %s3058 = scalar_lea.vmem %s3, 512
  %v3059 = vld [vmem:[%s3058] sm:$0xff]
  %v3060 = vld [vmem:[%s3058 + $0x8] sm:$0xff]
  %v3061 = vld [vmem:[%s3058 + $0x10] sm:$0xff]
  %v3062 = vld [vmem:[%s3058 + $0x18] sm:$0xff]
  %v3063 = vld [vmem:[%s3058 + $0x20] sm:$0xff]
  %v3064 = vld [vmem:[%s3058 + $0x28] sm:$0xff]
  %v3065 = vld [vmem:[%s3058 + $0x30] sm:$0xff]
  %v3066 = vld [vmem:[%s3058 + $0x38] sm:$0xff]
  %v3067 = vld [vmem:[%s3058 + $0x40] sm:$0xff]
  %v3068 = vld [vmem:[%s3058 + $0x48] sm:$0xff]
  %v3069 = vld [vmem:[%s3058 + $0x50] sm:$0xff]
  %v3070 = vld [vmem:[%s3058 + $0x58] sm:$0xff]
  %v3071 = vld [vmem:[%s3058 + $0x60] sm:$0xff]
  %v3072 = vld [vmem:[%s3058 + $0x68] sm:$0xff]
  %v3073 = vld [vmem:[%s3058 + $0x70] sm:$0xff]
  %v3074 = vld [vmem:[%s3058 + $0x78] sm:$0xff]
  %v3091 = vunpack.c.l.b16 %v3059
  %v3092 = vunpack.c.h.b16 %v3059
  %v3093 = vunpack.c.l.b16 %v3060
  %v3094 = vunpack.c.h.b16 %v3060
  %v3095 = vunpack.c.l.b16 %v3061
  %v3096 = vunpack.c.h.b16 %v3061
  %v3097 = vunpack.c.l.b16 %v3062
  %v3098 = vunpack.c.h.b16 %v3062
  %v3099 = vunpack.c.l.b16 %v3063
  %v3100 = vunpack.c.h.b16 %v3063
  %v3101 = vunpack.c.l.b16 %v3064
  %v3102 = vunpack.c.h.b16 %v3064
  %v3103 = vunpack.c.l.b16 %v3065
  %v3104 = vunpack.c.h.b16 %v3065
  %v3105 = vunpack.c.l.b16 %v3066
  %v3106 = vunpack.c.h.b16 %v3066
  %v3107 = vunpack.c.l.b16 %v3067
  %v3108 = vunpack.c.h.b16 %v3067
  %v3109 = vunpack.c.l.b16 %v3068
  %v3110 = vunpack.c.h.b16 %v3068
  %v3111 = vunpack.c.l.b16 %v3069
  %v3112 = vunpack.c.h.b16 %v3069
  %v3113 = vunpack.c.l.b16 %v3070
  %v3114 = vunpack.c.h.b16 %v3070
  %v3115 = vunpack.c.l.b16 %v3071
  %v3116 = vunpack.c.h.b16 %v3071
  %v3117 = vunpack.c.l.b16 %v3072
  %v3118 = vunpack.c.h.b16 %v3072
  %v3119 = vunpack.c.l.b16 %v3073
  %v3120 = vunpack.c.h.b16 %v3073
  %v3121 = vunpack.c.l.b16 %v3074
  %v3122 = vunpack.c.h.b16 %v3074
  %v3123 = vpack.c.b16 %v3093, %v3091
  %v3124 = vpack.c.b16 %v3094, %v3092
  %v3125 = vpack.c.b16 %v3097, %v3095
  %v3126 = vpack.c.b16 %v3098, %v3096
  %v3127 = vpack.c.b16 %v3101, %v3099
  %v3128 = vpack.c.b16 %v3102, %v3100
  %v3129 = vpack.c.b16 %v3105, %v3103
  %v3130 = vpack.c.b16 %v3106, %v3104
  %v3131 = vpack.c.b16 %v3109, %v3107
  %v3132 = vpack.c.b16 %v3110, %v3108
  %v3133 = vpack.c.b16 %v3113, %v3111
  %v3134 = vpack.c.b16 %v3114, %v3112
  %v3135 = vpack.c.b16 %v3117, %v3115
  %v3136 = vpack.c.b16 %v3118, %v3116
  %v3137 = vpack.c.b16 %v3121, %v3119
  %v3138 = vpack.c.b16 %v3122, %v3120
  %3155 = vmatprep.subr.bf16.mxu0 %v3138
  %3156 = vmatpush1.bf16.msra.mxu0 %v3137
  %3157 = vmatprep.subr.bf16.mxu0 %v3136
  %3158 = vmatpush1.bf16.msra.mxu0 %v3135
  %3159 = vmatprep.subr.bf16.mxu0 %v3134
  %3160 = vmatpush1.bf16.msra.mxu0 %v3133
  %3161 = vmatprep.subr.bf16.mxu0 %v3132
  %3162 = vmatpush1.bf16.msra.mxu0 %v3131
  %3163 = vmatprep.subr.bf16.mxu0 %v3130
  %3164 = vmatpush1.bf16.msra.mxu0 %v3129
  %3165 = vmatprep.subr.bf16.mxu0 %v3128
  %3166 = vmatpush1.bf16.msra.mxu0 %v3127
  %3167 = vmatprep.subr.bf16.mxu0 %v3126
  %3168 = vmatpush1.bf16.msra.mxu0 %v3125
  %3169 = vmatprep.subr.bf16.mxu0 %v3124
  %3170 = vmatpush1.bf16.msra.mxu0 %v3123
  %3171 = vmatprep.subr.bf16.mxu0 0
  %3172 = vmatpush2.bf16.msra.mxu0 0
  %3173 = vmatprep.subr.bf16.mxu0 0
  %3174 = vmatpush2.bf16.msra.mxu0 0
  %3175 = vmatprep.subr.bf16.mxu0 0
  %3176 = vmatpush2.bf16.msra.mxu0 0
  %3177 = vmatprep.subr.bf16.mxu0 0
  %3178 = vmatpush2.bf16.msra.mxu0 0
  %3179 = vmatprep.subr.bf16.mxu0 0
  %3180 = vmatpush2.bf16.msra.mxu0 0
  %3181 = vmatprep.subr.bf16.mxu0 0
  %3182 = vmatpush2.bf16.msra.mxu0 0
  %3183 = vmatprep.subr.bf16.mxu0 0
  %3184 = vmatpush2.bf16.msra.mxu0 0
  %3185 = vmatprep.subr.bf16.mxu0 0
  %3186 = vmatpush2.bf16.msra.mxu0 0
  %3187 = vmatprep.mubr.bf16.mxu0 0
  %3188 = vmatmul.mubr.bf16.gmra.mxu0 %v3054
  %v3189 = vpop.f32.mrf.mxu0
  %v3190 = vadd.f32 0.0, %v3189
  %v3191 = vpop.f32.mrf.mxu0
  %v3192 = vadd.f32 0.0, %v3191
  %v3193 = vpop.f32.mrf.mxu0
  %v3194 = vadd.f32 0.0, %v3193
  %v3195 = vpop.f32.mrf.mxu0
  %v3196 = vadd.f32 0.0, %v3195
  %3197 = vmatprep.mubr.bf16.mxu0 0
  %3198 = vmatmul.mubr.bf16.gmra.mxu0 %v3055
  %v3199 = vpop.f32.mrf.mxu0
  %v3200 = vadd.f32 0.0, %v3199
  %v3201 = vpop.f32.mrf.mxu0
  %v3202 = vadd.f32 0.0, %v3201
  %v3203 = vpop.f32.mrf.mxu0
  %v3204 = vadd.f32 0.0, %v3203
  %v3205 = vpop.f32.mrf.mxu0
  %v3206 = vadd.f32 0.0, %v3205
  %3207 = vmatprep.mubr.bf16.mxu0 0
  %3208 = vmatmul.mubr.bf16.gmra.mxu0 %v3056
  %v3209 = vpop.f32.mrf.mxu0
  %v3210 = vadd.f32 0.0, %v3209
  %v3211 = vpop.f32.mrf.mxu0
  %v3212 = vadd.f32 0.0, %v3211
  %v3213 = vpop.f32.mrf.mxu0
  %v3214 = vadd.f32 0.0, %v3213
  %v3215 = vpop.f32.mrf.mxu0
  %v3216 = vadd.f32 0.0, %v3215
  %3217 = vmatprep.mubr.bf16.mxu0 0
  %3218 = vmatmul.mubr.bf16.gmra.mxu0 %v3057
  %v3219 = vpop.f32.mrf.mxu0
  %v3220 = vadd.f32 0.0, %v3219
  %v3221 = vpop.f32.mrf.mxu0
  %v3222 = vadd.f32 0.0, %v3221
  %v3223 = vpop.f32.mrf.mxu0
  %v3224 = vadd.f32 0.0, %v3223
  %v3225 = vpop.f32.mrf.mxu0
  %v3226 = vadd.f32 0.0, %v3225
  %3227 = vdwg.mxu0
  %v3228 = vld [vmem:[#allocation5] sm:$0xff]
  %v3229 = vld [vmem:[#allocation5 + $0x8] sm:$0xff]
  %v3230 = vld [vmem:[#allocation5 + $0x10] sm:$0xff]
  %v3231 = vld [vmem:[#allocation5 + $0x18] sm:$0xff]
  %v3232 = vld [vmem:[#allocation5 + $0x20] sm:$0xff]
  %v3233 = vld [vmem:[#allocation5 + $0x28] sm:$0xff]
  %v3234 = vld [vmem:[#allocation5 + $0x30] sm:$0xff]
  %v3235 = vld [vmem:[#allocation5 + $0x38] sm:$0xff]
  %v3236 = vld [vmem:[#allocation5 + $0x40] sm:$0xff]
  %v3237 = vld [vmem:[#allocation5 + $0x48] sm:$0xff]
  %v3238 = vld [vmem:[#allocation5 + $0x50] sm:$0xff]
  %v3239 = vld [vmem:[#allocation5 + $0x58] sm:$0xff]
  %v3240 = vld [vmem:[#allocation5 + $0x60] sm:$0xff]
  %v3241 = vld [vmem:[#allocation5 + $0x68] sm:$0xff]
  %v3242 = vld [vmem:[#allocation5 + $0x70] sm:$0xff]
  %v3243 = vld [vmem:[#allocation5 + $0x78] sm:$0xff]
  %v3244 = vadd.f32 %v3228, %v3190
  %v3245 = vadd.f32 %v3229, %v3192
  %v3246 = vadd.f32 %v3230, %v3194
  %v3247 = vadd.f32 %v3231, %v3196
  %v3248 = vadd.f32 %v3232, %v3200
  %v3249 = vadd.f32 %v3233, %v3202
  %v3250 = vadd.f32 %v3234, %v3204
  %v3251 = vadd.f32 %v3235, %v3206
  %v3252 = vadd.f32 %v3236, %v3210
  %v3253 = vadd.f32 %v3237, %v3212
  %v3254 = vadd.f32 %v3238, %v3214
  %v3255 = vadd.f32 %v3239, %v3216
  %v3256 = vadd.f32 %v3240, %v3220
  %v3257 = vadd.f32 %v3241, %v3222
  %v3258 = vadd.f32 %v3242, %v3224
  %v3259 = vadd.f32 %v3243, %v3226
  %3260 = vst [vmem:[#allocation5] sm:$0xff] %v3244
  %3261 = vst [vmem:[#allocation5 + $0x8] sm:$0xff] %v3245
  %3262 = vst [vmem:[#allocation5 + $0x10] sm:$0xff] %v3246
  %3263 = vst [vmem:[#allocation5 + $0x18] sm:$0xff] %v3247
  %3264 = vst [vmem:[#allocation5 + $0x20] sm:$0xff] %v3248
  %3265 = vst [vmem:[#allocation5 + $0x28] sm:$0xff] %v3249
  %3266 = vst [vmem:[#allocation5 + $0x30] sm:$0xff] %v3250
  %3267 = vst [vmem:[#allocation5 + $0x38] sm:$0xff] %v3251
  %3268 = vst [vmem:[#allocation5 + $0x40] sm:$0xff] %v3252
  %3269 = vst [vmem:[#allocation5 + $0x48] sm:$0xff] %v3253
  %3270 = vst [vmem:[#allocation5 + $0x50] sm:$0xff] %v3254
  %3271 = vst [vmem:[#allocation5 + $0x58] sm:$0xff] %v3255
  %3272 = vst [vmem:[#allocation5 + $0x60] sm:$0xff] %v3256
  %3273 = vst [vmem:[#allocation5 + $0x68] sm:$0xff] %v3257
  %3274 = vst [vmem:[#allocation5 + $0x70] sm:$0xff] %v3258
  %3275 = vst [vmem:[#allocation5 + $0x78] sm:$0xff] %v3259
  %v3276 = vld [vmem:[#allocation5] sm:$0xff]
  %v3277 = vld [vmem:[#allocation5 + $0x10] sm:$0xff]
  %v3278 = vld [vmem:[#allocation5 + $0x20] sm:$0xff]
  %v3279 = vld [vmem:[#allocation5 + $0x30] sm:$0xff]
  %v3280 = vld [vmem:[#allocation5 + $0x40] sm:$0xff]
  %v3281 = vld [vmem:[#allocation5 + $0x50] sm:$0xff]
  %v3282 = vld [vmem:[#allocation5 + $0x60] sm:$0xff]
  %v3283 = vld [vmem:[#allocation5 + $0x70] sm:$0xff]
  %v3284 = vld [vmem:[#allocation5 + $0x8] sm:$0xff]
  %v3285 = vld [vmem:[#allocation5 + $0x18] sm:$0xff]
  %v3286 = vld [vmem:[#allocation5 + $0x28] sm:$0xff]
  %v3287 = vld [vmem:[#allocation5 + $0x38] sm:$0xff]
  %v3288 = vld [vmem:[#allocation5 + $0x48] sm:$0xff]
  %v3289 = vld [vmem:[#allocation5 + $0x58] sm:$0xff]
  %v3290 = vld [vmem:[#allocation5 + $0x68] sm:$0xff]
  %v3291 = vld [vmem:[#allocation5 + $0x78] sm:$0xff]
  %v3292 = vmax.f32 %v3276, %v3284
  %v3293 = vmax.f32 %v3277, %v3285
  %v3294 = vmax.f32 %v3278, %v3286
  %v3295 = vmax.f32 %v3279, %v3287
  %v3296 = vmax.f32 %v3280, %v3288
  %v3297 = vmax.f32 %v3281, %v3289
  %v3298 = vmax.f32 %v3282, %v3290
  %v3299 = vmax.f32 %v3283, %v3291
  %3300 = vst [vmem:[#allocation6] sm:$0xff] %v3292
  %3301 = vst [vmem:[#allocation6 + $0x8] sm:$0xff] %v3293
  %3302 = vst [vmem:[#allocation6 + $0x10] sm:$0xff] %v3294
  %3303 = vst [vmem:[#allocation6 + $0x18] sm:$0xff] %v3295
  %3304 = vst [vmem:[#allocation6 + $0x20] sm:$0xff] %v3296
  %3305 = vst [vmem:[#allocation6 + $0x28] sm:$0xff] %v3297
  %3306 = vst [vmem:[#allocation6 + $0x30] sm:$0xff] %v3298
  %3307 = vst [vmem:[#allocation6 + $0x38] sm:$0xff] %v3299
  %v3308 = vld [vmem:[#allocation6] ss:$2 sm:$0xf]
  %s3309 = scalar_lea.vmem [#allocation6], 8
  %v3310 = vld [vmem:[%s3309] ss:$2 sm:$0xf]
  %s3311 = scalar_lea.vmem [#allocation6], 16
  %v3312 = vld [vmem:[%s3311] ss:$2 sm:$0xf]
  %s3313 = scalar_lea.vmem [#allocation6], 24
  %v3314 = vld [vmem:[%s3313] ss:$2 sm:$0xf]
  %s3315 = scalar_lea.vmem [#allocation6], 32
  %v3316 = vld [vmem:[%s3315] ss:$2 sm:$0xf]
  %s3317 = scalar_lea.vmem [#allocation6], 40
  %v3318 = vld [vmem:[%s3317] ss:$2 sm:$0xf]
  %s3319 = scalar_lea.vmem [#allocation6], 48
  %v3320 = vld [vmem:[%s3319] ss:$2 sm:$0xf]
  %s3321 = scalar_lea.vmem [#allocation6], 56
  %v3322 = vld [vmem:[%s3321] ss:$2 sm:$0xf]
  %s3323 = scalar_lea.vmem [#allocation6], 1
  %v3324 = vld [vmem:[%s3323] ss:$2 sm:$0xf]
  %s3325 = scalar_lea.vmem [#allocation6], 9
  %v3326 = vld [vmem:[%s3325] ss:$2 sm:$0xf]
  %s3327 = scalar_lea.vmem [#allocation6], 17
  %v3328 = vld [vmem:[%s3327] ss:$2 sm:$0xf]
  %s3329 = scalar_lea.vmem [#allocation6], 25
  %v3330 = vld [vmem:[%s3329] ss:$2 sm:$0xf]
  %s3331 = scalar_lea.vmem [#allocation6], 33
  %v3332 = vld [vmem:[%s3331] ss:$2 sm:$0xf]
  %s3333 = scalar_lea.vmem [#allocation6], 41
  %v3334 = vld [vmem:[%s3333] ss:$2 sm:$0xf]
  %s3335 = scalar_lea.vmem [#allocation6], 49
  %v3336 = vld [vmem:[%s3335] ss:$2 sm:$0xf]
  %s3337 = scalar_lea.vmem [#allocation6], 57
  %v3338 = vld [vmem:[%s3337] ss:$2 sm:$0xf]
  %v3339 = vmax.f32 %v3308, %v3324
  %v3340 = vmax.f32 %v3310, %v3326
  %v3341 = vmax.f32 %v3312, %v3328
  %v3342 = vmax.f32 %v3314, %v3330
  %v3343 = vmax.f32 %v3316, %v3332
  %v3344 = vmax.f32 %v3318, %v3334
  %v3345 = vmax.f32 %v3320, %v3336
  %v3346 = vmax.f32 %v3322, %v3338
  %v3347 = vmax.f32 %v3339, 0.0
  %v3348 = vmax.f32 %v3340, 0.0
  %v3349 = vmax.f32 %v3341, 0.0
  %v3350 = vmax.f32 %v3342, 0.0
  %v3351 = vmax.f32 %v3343, 0.0
  %v3352 = vmax.f32 %v3344, 0.0
  %v3353 = vmax.f32 %v3345, 0.0
  %v3354 = vmax.f32 %v3346, 0.0
  %3355 = vst [vmem:[#allocation7] sm:$0xf] %v3347
  %3356 = vst [vmem:[#allocation7 + $0x4] sm:$0xf] %v3348
  %3357 = vst [vmem:[#allocation7 + $0x8] sm:$0xf] %v3349
  %3358 = vst [vmem:[#allocation7 + $0xc] sm:$0xf] %v3350
  %3359 = vst [vmem:[#allocation7 + $0x10] sm:$0xf] %v3351
  %3360 = vst [vmem:[#allocation7 + $0x14] sm:$0xf] %v3352
  %3361 = vst [vmem:[#allocation7 + $0x18] sm:$0xf] %v3353
  %3362 = vst [vmem:[#allocation7 + $0x1c] sm:$0xf] %v3354
  %v3363 = vld [vmem:[%s6] sm:$0x1]
  %v3364 = vld [vmem:[#allocation7] sm:$0x1]
  %v3365 = vld [vmem:[#allocation7 + $0x4] sm:$0x1]
  %v3366 = vld [vmem:[#allocation7 + $0x8] sm:$0x1]
  %v3367 = vld [vmem:[#allocation7 + $0xc] sm:$0x1]
  %v3368 = vld [vmem:[#allocation7 + $0x10] sm:$0x1]
  %v3369 = vld [vmem:[#allocation7 + $0x14] sm:$0x1]
  %v3370 = vld [vmem:[#allocation7 + $0x18] sm:$0x1]
  %v3371 = vld [vmem:[#allocation7 + $0x1c] sm:$0x1]
  %v3372 = vld [vmem:[%s5] sm:$0xff]
  %v3373 = vld [vmem:[%s5 + $0x8] sm:$0xff]
  %v3374 = vld [vmem:[%s5 + $0x10] sm:$0xff]
  %v3375 = vld [vmem:[%s5 + $0x18] sm:$0xff]
  %v3376 = vld [vmem:[%s5 + $0x20] sm:$0xff]
  %v3377 = vld [vmem:[%s5 + $0x28] sm:$0xff]
  %v3378 = vld [vmem:[%s5 + $0x30] sm:$0xff]
  %v3379 = vld [vmem:[%s5 + $0x38] sm:$0xff]
  %v3380 = vld [vmem:[%s5 + $0x40] sm:$0xff]
  %v3381 = vld [vmem:[%s5 + $0x48] sm:$0xff]
  %v3382 = vld [vmem:[%s5 + $0x50] sm:$0xff]
  %v3383 = vld [vmem:[%s5 + $0x58] sm:$0xff]
  %v3384 = vld [vmem:[%s5 + $0x60] sm:$0xff]
  %v3385 = vld [vmem:[%s5 + $0x68] sm:$0xff]
  %v3386 = vld [vmem:[%s5 + $0x70] sm:$0xff]
  %v3387 = vld [vmem:[%s5 + $0x78] sm:$0xff]
  %v3396 = vrot.slane %v3365, 7
  %vm3397 = vcmask 1041409
  %v3398 = vsel %vm3397, %v3396, %v3364
  %v3399 = vrot.slane %v3366, 6
  %vm3400 = vcmask 1042434
  %v3401 = vsel %vm3400, %v3399, %v3398
  %v3402 = vrot.slane %v3367, 5
  %vm3403 = vcmask 1043459
  %v3404 = vsel %vm3403, %v3402, %v3401
  %v3405 = vrot.slane %v3368, 4
  %vm3406 = vcmask 1044484
  %v3407 = vsel %vm3406, %v3405, %v3404
  %v3408 = vrot.slane %v3369, 3
  %vm3409 = vcmask 1045509
  %v3410 = vsel %vm3409, %v3408, %v3407
  %v3411 = vrot.slane %v3370, 2
  %vm3412 = vcmask 1046534
  %v3413 = vsel %vm3412, %v3411, %v3410
  %v3414 = vrot.slane %v3371, 1
  %vm3415 = vcmask 1047559
  %v3416 = vsel %vm3415, %v3414, %v3413
  %3418 = vmatprep.subr.mxu0 0.0
  %3419 = vmatpush1.msra.mxu0 %v3387
  %3420 = vmatprep.subr.mxu0 0.0
  %3421 = vmatpush1.msra.mxu0 %v3386
  %3422 = vmatprep.subr.mxu0 0.0
  %3423 = vmatpush1.msra.mxu0 %v3385
  %3424 = vmatprep.subr.mxu0 0.0
  %3425 = vmatpush1.msra.mxu0 %v3384
  %3426 = vmatprep.subr.mxu0 0.0
  %3427 = vmatpush1.msra.mxu0 %v3383
  %3428 = vmatprep.subr.mxu0 0.0
  %3429 = vmatpush1.msra.mxu0 %v3382
  %3430 = vmatprep.subr.mxu0 0.0
  %3431 = vmatpush1.msra.mxu0 %v3381
  %3432 = vmatprep.subr.mxu0 0.0
  %3433 = vmatpush1.msra.mxu0 %v3380
  %3434 = vmatprep.subr.mxu0 0.0
  %3435 = vmatpush1.msra.mxu0 %v3379
  %3436 = vmatprep.subr.mxu0 0.0
  %3437 = vmatpush1.msra.mxu0 %v3378
  %3438 = vmatprep.subr.mxu0 0.0
  %3439 = vmatpush1.msra.mxu0 %v3377
  %3440 = vmatprep.subr.mxu0 0.0
  %3441 = vmatpush1.msra.mxu0 %v3376
  %3442 = vmatprep.subr.mxu0 0.0
  %3443 = vmatpush1.msra.mxu0 %v3375
  %3444 = vmatprep.subr.mxu0 0.0
  %3445 = vmatpush1.msra.mxu0 %v3374
  %3446 = vmatprep.subr.mxu0 0.0
  %3447 = vmatpush1.msra.mxu0 %v3373
  %3448 = vmatprep.subr.mxu0 0.0
  %3449 = vmatpush1.msra.mxu0 %v3372
  %3450 = vmatprep.subr.mxu0 0.0
  %3451 = vmatpush2.msra.mxu0 0.0
  %3452 = vmatprep.subr.mxu0 0.0
  %3453 = vmatpush2.msra.mxu0 0.0
  %3454 = vmatprep.subr.mxu0 0.0
  %3455 = vmatpush2.msra.mxu0 0.0
  %3456 = vmatprep.subr.mxu0 0.0
  %3457 = vmatpush2.msra.mxu0 0.0
  %3458 = vmatprep.subr.mxu0 0.0
  %3459 = vmatpush2.msra.mxu0 0.0
  %3460 = vmatprep.subr.mxu0 0.0
  %3461 = vmatpush2.msra.mxu0 0.0
  %3462 = vmatprep.subr.mxu0 0.0
  %3463 = vmatpush2.msra.mxu0 0.0
  %3464 = vmatprep.subr.mxu0 0.0
  %3465 = vmatpush2.msra.mxu0 0.0
  %3466 = vmatprep.subr.mxu0 0.0
  %3467 = vmatpush2.msra.mxu0 0.0
  %3468 = vmatprep.subr.mxu0 0.0
  %3469 = vmatpush2.msra.mxu0 0.0
  %3470 = vmatprep.subr.mxu0 0.0
  %3471 = vmatpush2.msra.mxu0 0.0
  %3472 = vmatprep.subr.mxu0 0.0
  %3473 = vmatpush2.msra.mxu0 0.0
  %3474 = vmatprep.subr.mxu0 0.0
  %3475 = vmatpush2.msra.mxu0 0.0
  %3476 = vmatprep.subr.mxu0 0.0
  %3477 = vmatpush2.msra.mxu0 0.0
  %3478 = vmatprep.subr.mxu0 0.0
  %3479 = vmatpush2.msra.mxu0 0.0
  %3480 = vmatprep.subr.mxu0 0.0
  %3481 = vmatpush2.msra.mxu0 0.0
  %3482 = vmatprep.mubr.f32.mxu0 0.0
  %3483 = vmatmul.mubr.f32.gmra.mxu0 %v3416
  %v3484 = vpop.f32.mrf.mxu0
  %v3485 = vadd.f32 0.0, %v3484
  %v3486 = vpop.f32.mrf.mxu0
  %3487 = vdwg.mxu0
  %v3489 = vlaneseq
  %v3490 = vshrl.u32 %v3489, 7
  %v3491 = vsub.s32 0, %v3490
  %v3492 = vrot.slane %v3363, %v3491
  %v3494 = vadd.f32 %v3492, %v3485
  %v3495 = vld [vmem:[#allocation7 + $0x1] sm:$0x1]
  %v3496 = vld [vmem:[#allocation7 + $0x5] sm:$0x1]
  %v3497 = vld [vmem:[#allocation7 + $0x9] sm:$0x1]
  %v3498 = vld [vmem:[#allocation7 + $0xd] sm:$0x1]
  %v3499 = vld [vmem:[#allocation7 + $0x11] sm:$0x1]
  %v3500 = vld [vmem:[#allocation7 + $0x15] sm:$0x1]
  %v3501 = vld [vmem:[#allocation7 + $0x19] sm:$0x1]
  %v3502 = vld [vmem:[#allocation7 + $0x1d] sm:$0x1]
  %s3503 = scalar_lea.vmem %s5, 128
  %v3504 = vld [vmem:[%s3503] sm:$0xff]
  %v3505 = vld [vmem:[%s3503 + $0x8] sm:$0xff]
  %v3506 = vld [vmem:[%s3503 + $0x10] sm:$0xff]
  %v3507 = vld [vmem:[%s3503 + $0x18] sm:$0xff]
  %v3508 = vld [vmem:[%s3503 + $0x20] sm:$0xff]
  %v3509 = vld [vmem:[%s3503 + $0x28] sm:$0xff]
  %v3510 = vld [vmem:[%s3503 + $0x30] sm:$0xff]
  %v3511 = vld [vmem:[%s3503 + $0x38] sm:$0xff]
  %v3512 = vld [vmem:[%s3503 + $0x40] sm:$0xff]
  %v3513 = vld [vmem:[%s3503 + $0x48] sm:$0xff]
  %v3514 = vld [vmem:[%s3503 + $0x50] sm:$0xff]
  %v3515 = vld [vmem:[%s3503 + $0x58] sm:$0xff]
  %v3516 = vld [vmem:[%s3503 + $0x60] sm:$0xff]
  %v3517 = vld [vmem:[%s3503 + $0x68] sm:$0xff]
  %v3518 = vld [vmem:[%s3503 + $0x70] sm:$0xff]
  %v3519 = vld [vmem:[%s3503 + $0x78] sm:$0xff]
  %v3528 = vrot.slane %v3496, 7
  %v3529 = vsel %vm3397, %v3528, %v3495
  %v3530 = vrot.slane %v3497, 6
  %v3531 = vsel %vm3400, %v3530, %v3529
  %v3532 = vrot.slane %v3498, 5
  %v3533 = vsel %vm3403, %v3532, %v3531
  %v3534 = vrot.slane %v3499, 4
  %v3535 = vsel %vm3406, %v3534, %v3533
  %v3536 = vrot.slane %v3500, 3
  %v3537 = vsel %vm3409, %v3536, %v3535
  %v3538 = vrot.slane %v3501, 2
  %v3539 = vsel %vm3412, %v3538, %v3537
  %v3540 = vrot.slane %v3502, 1
  %v3541 = vsel %vm3415, %v3540, %v3539
  %3543 = vmatprep.subr.mxu0 0.0
  %3544 = vmatpush1.msra.mxu0 %v3519
  %3545 = vmatprep.subr.mxu0 0.0
  %3546 = vmatpush1.msra.mxu0 %v3518
  %3547 = vmatprep.subr.mxu0 0.0
  %3548 = vmatpush1.msra.mxu0 %v3517
  %3549 = vmatprep.subr.mxu0 0.0
  %3550 = vmatpush1.msra.mxu0 %v3516
  %3551 = vmatprep.subr.mxu0 0.0
  %3552 = vmatpush1.msra.mxu0 %v3515
  %3553 = vmatprep.subr.mxu0 0.0
  %3554 = vmatpush1.msra.mxu0 %v3514
  %3555 = vmatprep.subr.mxu0 0.0
  %3556 = vmatpush1.msra.mxu0 %v3513
  %3557 = vmatprep.subr.mxu0 0.0
  %3558 = vmatpush1.msra.mxu0 %v3512
  %3559 = vmatprep.subr.mxu0 0.0
  %3560 = vmatpush1.msra.mxu0 %v3511
  %3561 = vmatprep.subr.mxu0 0.0
  %3562 = vmatpush1.msra.mxu0 %v3510
  %3563 = vmatprep.subr.mxu0 0.0
  %3564 = vmatpush1.msra.mxu0 %v3509
  %3565 = vmatprep.subr.mxu0 0.0
  %3566 = vmatpush1.msra.mxu0 %v3508
  %3567 = vmatprep.subr.mxu0 0.0
  %3568 = vmatpush1.msra.mxu0 %v3507
  %3569 = vmatprep.subr.mxu0 0.0
  %3570 = vmatpush1.msra.mxu0 %v3506
  %3571 = vmatprep.subr.mxu0 0.0
  %3572 = vmatpush1.msra.mxu0 %v3505
  %3573 = vmatprep.subr.mxu0 0.0
  %3574 = vmatpush1.msra.mxu0 %v3504
  %3575 = vmatprep.subr.mxu0 0.0
  %3576 = vmatpush2.msra.mxu0 0.0
  %3577 = vmatprep.subr.mxu0 0.0
  %3578 = vmatpush2.msra.mxu0 0.0
  %3579 = vmatprep.subr.mxu0 0.0
  %3580 = vmatpush2.msra.mxu0 0.0
  %3581 = vmatprep.subr.mxu0 0.0
  %3582 = vmatpush2.msra.mxu0 0.0
  %3583 = vmatprep.subr.mxu0 0.0
  %3584 = vmatpush2.msra.mxu0 0.0
  %3585 = vmatprep.subr.mxu0 0.0
  %3586 = vmatpush2.msra.mxu0 0.0
  %3587 = vmatprep.subr.mxu0 0.0
  %3588 = vmatpush2.msra.mxu0 0.0
  %3589 = vmatprep.subr.mxu0 0.0
  %3590 = vmatpush2.msra.mxu0 0.0
  %3591 = vmatprep.subr.mxu0 0.0
  %3592 = vmatpush2.msra.mxu0 0.0
  %3593 = vmatprep.subr.mxu0 0.0
  %3594 = vmatpush2.msra.mxu0 0.0
  %3595 = vmatprep.subr.mxu0 0.0
  %3596 = vmatpush2.msra.mxu0 0.0
  %3597 = vmatprep.subr.mxu0 0.0
  %3598 = vmatpush2.msra.mxu0 0.0
  %3599 = vmatprep.subr.mxu0 0.0
  %3600 = vmatpush2.msra.mxu0 0.0
  %3601 = vmatprep.subr.mxu0 0.0
  %3602 = vmatpush2.msra.mxu0 0.0
  %3603 = vmatprep.subr.mxu0 0.0
  %3604 = vmatpush2.msra.mxu0 0.0
  %3605 = vmatprep.subr.mxu0 0.0
  %3606 = vmatpush2.msra.mxu0 0.0
  %3607 = vmatprep.mubr.f32.mxu0 0.0
  %3608 = vmatmul.mubr.f32.gmra.mxu0 %v3541
  %v3609 = vpop.f32.mrf.mxu0
  %v3610 = vadd.f32 0.0, %v3609
  %v3611 = vpop.f32.mrf.mxu0
  %3612 = vdwg.mxu0
  %v3613 = vadd.f32 %v3494, %v3610
  %v3614 = vld [vmem:[#allocation7 + $0x2] sm:$0x1]
  %v3615 = vld [vmem:[#allocation7 + $0x6] sm:$0x1]
  %v3616 = vld [vmem:[#allocation7 + $0xa] sm:$0x1]
  %v3617 = vld [vmem:[#allocation7 + $0xe] sm:$0x1]
  %v3618 = vld [vmem:[#allocation7 + $0x12] sm:$0x1]
  %v3619 = vld [vmem:[#allocation7 + $0x16] sm:$0x1]
  %v3620 = vld [vmem:[#allocation7 + $0x1a] sm:$0x1]
  %v3621 = vld [vmem:[#allocation7 + $0x1e] sm:$0x1]
  %s3622 = scalar_lea.vmem %s5, 256
  %v3623 = vld [vmem:[%s3622] sm:$0xff]
  %v3624 = vld [vmem:[%s3622 + $0x8] sm:$0xff]
  %v3625 = vld [vmem:[%s3622 + $0x10] sm:$0xff]
  %v3626 = vld [vmem:[%s3622 + $0x18] sm:$0xff]
  %v3627 = vld [vmem:[%s3622 + $0x20] sm:$0xff]
  %v3628 = vld [vmem:[%s3622 + $0x28] sm:$0xff]
  %v3629 = vld [vmem:[%s3622 + $0x30] sm:$0xff]
  %v3630 = vld [vmem:[%s3622 + $0x38] sm:$0xff]
  %v3631 = vld [vmem:[%s3622 + $0x40] sm:$0xff]
  %v3632 = vld [vmem:[%s3622 + $0x48] sm:$0xff]
  %v3633 = vld [vmem:[%s3622 + $0x50] sm:$0xff]
  %v3634 = vld [vmem:[%s3622 + $0x58] sm:$0xff]
  %v3635 = vld [vmem:[%s3622 + $0x60] sm:$0xff]
  %v3636 = vld [vmem:[%s3622 + $0x68] sm:$0xff]
  %v3637 = vld [vmem:[%s3622 + $0x70] sm:$0xff]
  %v3638 = vld [vmem:[%s3622 + $0x78] sm:$0xff]
  %v3647 = vrot.slane %v3615, 7
  %v3648 = vsel %vm3397, %v3647, %v3614
  %v3649 = vrot.slane %v3616, 6
  %v3650 = vsel %vm3400, %v3649, %v3648
  %v3651 = vrot.slane %v3617, 5
  %v3652 = vsel %vm3403, %v3651, %v3650
  %v3653 = vrot.slane %v3618, 4
  %v3654 = vsel %vm3406, %v3653, %v3652
  %v3655 = vrot.slane %v3619, 3
  %v3656 = vsel %vm3409, %v3655, %v3654
  %v3657 = vrot.slane %v3620, 2
  %v3658 = vsel %vm3412, %v3657, %v3656
  %v3659 = vrot.slane %v3621, 1
  %v3660 = vsel %vm3415, %v3659, %v3658
  %3662 = vmatprep.subr.mxu0 0.0
  %3663 = vmatpush1.msra.mxu0 %v3638
  %3664 = vmatprep.subr.mxu0 0.0
  %3665 = vmatpush1.msra.mxu0 %v3637
  %3666 = vmatprep.subr.mxu0 0.0
  %3667 = vmatpush1.msra.mxu0 %v3636
  %3668 = vmatprep.subr.mxu0 0.0
  %3669 = vmatpush1.msra.mxu0 %v3635
  %3670 = vmatprep.subr.mxu0 0.0
  %3671 = vmatpush1.msra.mxu0 %v3634
  %3672 = vmatprep.subr.mxu0 0.0
  %3673 = vmatpush1.msra.mxu0 %v3633
  %3674 = vmatprep.subr.mxu0 0.0
  %3675 = vmatpush1.msra.mxu0 %v3632
  %3676 = vmatprep.subr.mxu0 0.0
  %3677 = vmatpush1.msra.mxu0 %v3631
  %3678 = vmatprep.subr.mxu0 0.0
  %3679 = vmatpush1.msra.mxu0 %v3630
  %3680 = vmatprep.subr.mxu0 0.0
  %3681 = vmatpush1.msra.mxu0 %v3629
  %3682 = vmatprep.subr.mxu0 0.0
  %3683 = vmatpush1.msra.mxu0 %v3628
  %3684 = vmatprep.subr.mxu0 0.0
  %3685 = vmatpush1.msra.mxu0 %v3627
  %3686 = vmatprep.subr.mxu0 0.0
  %3687 = vmatpush1.msra.mxu0 %v3626
  %3688 = vmatprep.subr.mxu0 0.0
  %3689 = vmatpush1.msra.mxu0 %v3625
  %3690 = vmatprep.subr.mxu0 0.0
  %3691 = vmatpush1.msra.mxu0 %v3624
  %3692 = vmatprep.subr.mxu0 0.0
  %3693 = vmatpush1.msra.mxu0 %v3623
  %3694 = vmatprep.subr.mxu0 0.0
  %3695 = vmatpush2.msra.mxu0 0.0
  %3696 = vmatprep.subr.mxu0 0.0
  %3697 = vmatpush2.msra.mxu0 0.0
  %3698 = vmatprep.subr.mxu0 0.0
  %3699 = vmatpush2.msra.mxu0 0.0
  %3700 = vmatprep.subr.mxu0 0.0
  %3701 = vmatpush2.msra.mxu0 0.0
  %3702 = vmatprep.subr.mxu0 0.0
  %3703 = vmatpush2.msra.mxu0 0.0
  %3704 = vmatprep.subr.mxu0 0.0
  %3705 = vmatpush2.msra.mxu0 0.0
  %3706 = vmatprep.subr.mxu0 0.0
  %3707 = vmatpush2.msra.mxu0 0.0
  %3708 = vmatprep.subr.mxu0 0.0
  %3709 = vmatpush2.msra.mxu0 0.0
  %3710 = vmatprep.subr.mxu0 0.0
  %3711 = vmatpush2.msra.mxu0 0.0
  %3712 = vmatprep.subr.mxu0 0.0
  %3713 = vmatpush2.msra.mxu0 0.0
  %3714 = vmatprep.subr.mxu0 0.0
  %3715 = vmatpush2.msra.mxu0 0.0
  %3716 = vmatprep.subr.mxu0 0.0
  %3717 = vmatpush2.msra.mxu0 0.0
  %3718 = vmatprep.subr.mxu0 0.0
  %3719 = vmatpush2.msra.mxu0 0.0
  %3720 = vmatprep.subr.mxu0 0.0
  %3721 = vmatpush2.msra.mxu0 0.0
  %3722 = vmatprep.subr.mxu0 0.0
  %3723 = vmatpush2.msra.mxu0 0.0
  %3724 = vmatprep.subr.mxu0 0.0
  %3725 = vmatpush2.msra.mxu0 0.0
  %3726 = vmatprep.mubr.f32.mxu0 0.0
  %3727 = vmatmul.mubr.f32.gmra.mxu0 %v3660
  %v3728 = vpop.f32.mrf.mxu0
  %v3729 = vadd.f32 0.0, %v3728
  %v3730 = vpop.f32.mrf.mxu0
  %3731 = vdwg.mxu0
  %v3732 = vadd.f32 %v3613, %v3729
  %v3733 = vld [vmem:[#allocation7 + $0x3] sm:$0x1]
  %v3734 = vld [vmem:[#allocation7 + $0x7] sm:$0x1]
  %v3735 = vld [vmem:[#allocation7 + $0xb] sm:$0x1]
  %v3736 = vld [vmem:[#allocation7 + $0xf] sm:$0x1]
  %v3737 = vld [vmem:[#allocation7 + $0x13] sm:$0x1]
  %v3738 = vld [vmem:[#allocation7 + $0x17] sm:$0x1]
  %v3739 = vld [vmem:[#allocation7 + $0x1b] sm:$0x1]
  %v3740 = vld [vmem:[#allocation7 + $0x1f] sm:$0x1]
  %s3741 = scalar_lea.vmem %s5, 384
  %v3742 = vld [vmem:[%s3741] sm:$0xff]
  %v3743 = vld [vmem:[%s3741 + $0x8] sm:$0xff]
  %v3744 = vld [vmem:[%s3741 + $0x10] sm:$0xff]
  %v3745 = vld [vmem:[%s3741 + $0x18] sm:$0xff]
  %v3746 = vld [vmem:[%s3741 + $0x20] sm:$0xff]
  %v3747 = vld [vmem:[%s3741 + $0x28] sm:$0xff]
  %v3748 = vld [vmem:[%s3741 + $0x30] sm:$0xff]
  %v3749 = vld [vmem:[%s3741 + $0x38] sm:$0xff]
  %v3750 = vld [vmem:[%s3741 + $0x40] sm:$0xff]
  %v3751 = vld [vmem:[%s3741 + $0x48] sm:$0xff]
  %v3752 = vld [vmem:[%s3741 + $0x50] sm:$0xff]
  %v3753 = vld [vmem:[%s3741 + $0x58] sm:$0xff]
  %v3754 = vld [vmem:[%s3741 + $0x60] sm:$0xff]
  %v3755 = vld [vmem:[%s3741 + $0x68] sm:$0xff]
  %v3756 = vld [vmem:[%s3741 + $0x70] sm:$0xff]
  %v3757 = vld [vmem:[%s3741 + $0x78] sm:$0xff]
  %v3766 = vrot.slane %v3734, 7
  %v3767 = vsel %vm3397, %v3766, %v3733
  %v3768 = vrot.slane %v3735, 6
  %v3769 = vsel %vm3400, %v3768, %v3767
  %v3770 = vrot.slane %v3736, 5
  %v3771 = vsel %vm3403, %v3770, %v3769
  %v3772 = vrot.slane %v3737, 4
  %v3773 = vsel %vm3406, %v3772, %v3771
  %v3774 = vrot.slane %v3738, 3
  %v3775 = vsel %vm3409, %v3774, %v3773
  %v3776 = vrot.slane %v3739, 2
  %v3777 = vsel %vm3412, %v3776, %v3775
  %v3778 = vrot.slane %v3740, 1
  %v3779 = vsel %vm3415, %v3778, %v3777
  %3781 = vmatprep.subr.mxu0 0.0
  %3782 = vmatpush1.msra.mxu0 %v3757
  %3783 = vmatprep.subr.mxu0 0.0
  %3784 = vmatpush1.msra.mxu0 %v3756
  %3785 = vmatprep.subr.mxu0 0.0
  %3786 = vmatpush1.msra.mxu0 %v3755
  %3787 = vmatprep.subr.mxu0 0.0
  %3788 = vmatpush1.msra.mxu0 %v3754
  %3789 = vmatprep.subr.mxu0 0.0
  %3790 = vmatpush1.msra.mxu0 %v3753
  %3791 = vmatprep.subr.mxu0 0.0
  %3792 = vmatpush1.msra.mxu0 %v3752
  %3793 = vmatprep.subr.mxu0 0.0
  %3794 = vmatpush1.msra.mxu0 %v3751
  %3795 = vmatprep.subr.mxu0 0.0
  %3796 = vmatpush1.msra.mxu0 %v3750
  %3797 = vmatprep.subr.mxu0 0.0
  %3798 = vmatpush1.msra.mxu0 %v3749
  %3799 = vmatprep.subr.mxu0 0.0
  %3800 = vmatpush1.msra.mxu0 %v3748
  %3801 = vmatprep.subr.mxu0 0.0
  %3802 = vmatpush1.msra.mxu0 %v3747
  %3803 = vmatprep.subr.mxu0 0.0
  %3804 = vmatpush1.msra.mxu0 %v3746
  %3805 = vmatprep.subr.mxu0 0.0
  %3806 = vmatpush1.msra.mxu0 %v3745
  %3807 = vmatprep.subr.mxu0 0.0
  %3808 = vmatpush1.msra.mxu0 %v3744
  %3809 = vmatprep.subr.mxu0 0.0
  %3810 = vmatpush1.msra.mxu0 %v3743
  %3811 = vmatprep.subr.mxu0 0.0
  %3812 = vmatpush1.msra.mxu0 %v3742
  %3813 = vmatprep.subr.mxu0 0.0
  %3814 = vmatpush2.msra.mxu0 0.0
  %3815 = vmatprep.subr.mxu0 0.0
  %3816 = vmatpush2.msra.mxu0 0.0
  %3817 = vmatprep.subr.mxu0 0.0
  %3818 = vmatpush2.msra.mxu0 0.0
  %3819 = vmatprep.subr.mxu0 0.0
  %3820 = vmatpush2.msra.mxu0 0.0
  %3821 = vmatprep.subr.mxu0 0.0
  %3822 = vmatpush2.msra.mxu0 0.0
  %3823 = vmatprep.subr.mxu0 0.0
  %3824 = vmatpush2.msra.mxu0 0.0
  %3825 = vmatprep.subr.mxu0 0.0
  %3826 = vmatpush2.msra.mxu0 0.0
  %3827 = vmatprep.subr.mxu0 0.0
  %3828 = vmatpush2.msra.mxu0 0.0
  %3829 = vmatprep.subr.mxu0 0.0
  %3830 = vmatpush2.msra.mxu0 0.0
  %3831 = vmatprep.subr.mxu0 0.0
  %3832 = vmatpush2.msra.mxu0 0.0
  %3833 = vmatprep.subr.mxu0 0.0
  %3834 = vmatpush2.msra.mxu0 0.0
  %3835 = vmatprep.subr.mxu0 0.0
  %3836 = vmatpush2.msra.mxu0 0.0
  %3837 = vmatprep.subr.mxu0 0.0
  %3838 = vmatpush2.msra.mxu0 0.0
  %3839 = vmatprep.subr.mxu0 0.0
  %3840 = vmatpush2.msra.mxu0 0.0
  %3841 = vmatprep.subr.mxu0 0.0
  %3842 = vmatpush2.msra.mxu0 0.0
  %3843 = vmatprep.subr.mxu0 0.0
  %3844 = vmatpush2.msra.mxu0 0.0
  %3845 = vmatprep.mubr.f32.mxu0 0.0
  %3846 = vmatmul.mubr.f32.gmra.mxu0 %v3779
  %v3847 = vpop.f32.mrf.mxu0
  %v3848 = vadd.f32 0.0, %v3847
  %v3849 = vpop.f32.mrf.mxu0
  %3850 = vdwg.mxu0
  %v3851 = vadd.f32 %v3732, %v3848
  %v3852 = vmax.f32 %v3851, 0.0
  %v3853 = vld [vmem:[%s7] sm:$0xff]
  %v3854 = vld [vmem:[%s7 + $0x8] sm:$0xff]
  %v3855 = vld [vmem:[%s7 + $0x10] sm:$0xff]
  %v3856 = vld [vmem:[%s7 + $0x18] sm:$0xff]
  %v3857 = vld [vmem:[%s7 + $0x20] sm:$0xff]
  %v3858 = vld [vmem:[%s7 + $0x28] sm:$0xff]
  %v3859 = vld [vmem:[%s7 + $0x30] sm:$0xff]
  %v3860 = vld [vmem:[%s7 + $0x38] sm:$0xf]
  %v3861 = vld [vmem:[%s8] sm:$0x1]
  %v3863 = vlaneseq
  %v3864 = vshrl.u32 %v3863, 7
  %v3865 = vsub.s32 0, %v3864
  %v3866 = vrot.slane %v3861, %v3865
  %vm3868 = vcmask 490496
  %v3870 = vsel %vm3868, %v3852, 0
  %vm3872 = vcmask 1043456
  %v3874 = vsel %vm3872, %v3860, 0
  %3876 = vmatprep.subr.mxu0 0.0
  %3877 = vmatpush1.msra.mxu0 0.0
  %3878 = vmatprep.subr.mxu0 0.0
  %3879 = vmatpush1.msra.mxu0 0.0
  %3880 = vmatprep.subr.mxu0 0.0
  %3881 = vmatpush1.msra.mxu0 0.0
  %3882 = vmatprep.subr.mxu0 0.0
  %3883 = vmatpush1.msra.mxu0 0.0
  %3884 = vmatprep.subr.mxu0 0.0
  %3885 = vmatpush1.msra.mxu0 0.0
  %3886 = vmatprep.subr.mxu0 0.0
  %3887 = vmatpush1.msra.mxu0 0.0
  %3888 = vmatprep.subr.mxu0 0.0
  %3889 = vmatpush1.msra.mxu0 0.0
  %3890 = vmatprep.subr.mxu0 0.0
  %3891 = vmatpush1.msra.mxu0 0.0
  %3892 = vmatprep.subr.mxu0 0.0
  %3893 = vmatpush1.msra.mxu0 %v3874
  %3894 = vmatprep.subr.mxu0 0.0
  %3895 = vmatpush1.msra.mxu0 %v3859
  %3896 = vmatprep.subr.mxu0 0.0
  %3897 = vmatpush1.msra.mxu0 %v3858
  %3898 = vmatprep.subr.mxu0 0.0
  %3899 = vmatpush1.msra.mxu0 %v3857
  %3900 = vmatprep.subr.mxu0 0.0
  %3901 = vmatpush1.msra.mxu0 %v3856
  %3902 = vmatprep.subr.mxu0 0.0
  %3903 = vmatpush1.msra.mxu0 %v3855
  %3904 = vmatprep.subr.mxu0 0.0
  %3905 = vmatpush1.msra.mxu0 %v3854
  %3906 = vmatprep.subr.mxu0 0.0
  %3907 = vmatpush1.msra.mxu0 %v3853
  %3908 = vmatprep.subr.mxu0 0.0
  %3909 = vmatpush2.msra.mxu0 0.0
  %3910 = vmatprep.subr.mxu0 0.0
  %3911 = vmatpush2.msra.mxu0 0.0
  %3912 = vmatprep.subr.mxu0 0.0
  %3913 = vmatpush2.msra.mxu0 0.0
  %3914 = vmatprep.subr.mxu0 0.0
  %3915 = vmatpush2.msra.mxu0 0.0
  %3916 = vmatprep.subr.mxu0 0.0
  %3917 = vmatpush2.msra.mxu0 0.0
  %3918 = vmatprep.subr.mxu0 0.0
  %3919 = vmatpush2.msra.mxu0 0.0
  %3920 = vmatprep.subr.mxu0 0.0
  %3921 = vmatpush2.msra.mxu0 0.0
  %3922 = vmatprep.subr.mxu0 0.0
  %3923 = vmatpush2.msra.mxu0 0.0
  %3924 = vmatprep.subr.mxu0 0.0
  %3925 = vmatpush2.msra.mxu0 0.0
  %3926 = vmatprep.subr.mxu0 0.0
  %3927 = vmatpush2.msra.mxu0 0.0
  %3928 = vmatprep.subr.mxu0 0.0
  %3929 = vmatpush2.msra.mxu0 0.0
  %3930 = vmatprep.subr.mxu0 0.0
  %3931 = vmatpush2.msra.mxu0 0.0
  %3932 = vmatprep.subr.mxu0 0.0
  %3933 = vmatpush2.msra.mxu0 0.0
  %3934 = vmatprep.subr.mxu0 0.0
  %3935 = vmatpush2.msra.mxu0 0.0
  %3936 = vmatprep.subr.mxu0 0.0
  %3937 = vmatpush2.msra.mxu0 0.0
  %3938 = vmatprep.subr.mxu0 0.0
  %3939 = vmatpush2.msra.mxu0 0.0
  %3940 = vmatprep.mubr.f32.mxu0 0.0
  %3941 = vmatmul.mubr.f32.gmra.mxu0 %v3870
  %v3942 = vpop.f32.mrf.mxu0
  %v3943 = vadd.f32 %v3866, %v3942
  %v3944 = vpop.f32.mrf.mxu0
  %3945 = vdwg.mxu0
  %3946 = vmax.xlane.f32.xlu0 %v3943
  %v3947 = vpop.xlane.xlu0 %3946
  %v3948 = vsub.f32 %v3943, %v3947
  %v3949 = vmul.f32 %v3948, 1.442695
  %v3950 = vpow.pop %v3949
  %3951 = vadd.xlane.f32.xlu0 %v3950
  %v3952 = vpop.xlane.xlu0 %3951
  %v3953 = vlog2.pop %v3952
  %v3954 = vmul.f32 %v3953, 0.6931472
  %v3955 = vsub.f32 %v3948, %v3954
  %3956 = vst [vmem:[%s9] sm:$0xff] %v3955
  // Predicated region
  $region38: #{network_forward.1} parent=0 // pred_check
    _
  $region39: #{network_forward.1} parent=0 // pred_check_branch
    %3958 = sbr.rel (0) target = $region41
  $region40: #{network_forward.1} parent=0 // pred_region
    _
  $region41: #{network_forward.1} parent=0 // pred_fallthru
    _
  // Predicated region
  $region42: #{network_forward.1} parent=0 // pred_check
    _
  $region43: #{network_forward.1} parent=0 // pred_check_branch
    %3960 = sbr.rel (0) target = $region45
  $region44: #{network_forward.1} parent=0 // pred_region
    _
  $region45: #{network_forward.1} parent=0 // pred_fallthru
    _

</llo_original>
